<compile_context>
chip_gen: v6e
topology: v6e:2x2x1
jax: 0.10.0
libtpu: 0.0.40
codegen_flags: <defaults>
</compile_context>

<pallas_src>
import jax
import jax.numpy as jnp
from jax.experimental import pallas as pl
from jax.experimental.pallas import tpu as pltpu

BN_EPS = 1e-5
LANE = 128
VMEM_LIMIT = 32 * 1024 * 1024  # explicit scoped-VMEM cap; safe on v5e/v6e/v7x


# ----------------------------- Pallas kernels ---------------------------------
def conv_stats_kernel(x_ref, w_ref, y_ref, s_ref, ss_ref):
    """3x3 conv as 9 shifted MXU matmuls + per-channel sum / sum-of-squares.

    x_ref  : (1, H+2, W+2, Cin_p)  bf16  padded image of batch element n
    w_ref  : (9, Cin_p, Cout_p)    bf16  taps ordered (dy, dx)
    y_ref  : (1, TH, W, Cout_p)    f32   conv output tile
    s_ref  : (1, Cout_p)           f32   running sum   (resident accumulator)
    ss_ref : (1, Cout_p)           f32   running sum^2 (resident accumulator)
    """
    th = y_ref.shape[1]
    w_out = y_ref.shape[2]
    cin_p = x_ref.shape[3]
    cout_p = y_ref.shape[3]
    j = pl.program_id(1)

    @pl.when(jnp.logical_and(pl.program_id(0) == 0, j == 0))
    def _init():
        s_ref[...] = jnp.zeros_like(s_ref)
        ss_ref[...] = jnp.zeros_like(ss_ref)

    h0 = j * th  # first output image-row covered by this tile
    acc = jnp.zeros((th * w_out, cout_p), jnp.float32)
    for t in range(9):  # static unroll over the 3x3 taps
        dy, dx = divmod(t, 3)
        win = x_ref[0, pl.ds(h0 + dy, th), pl.ds(dx, w_out), :]
        acc += jnp.dot(win.reshape(th * w_out, cin_p), w_ref[t],
                       preferred_element_type=jnp.float32)

    y_ref[...] = acc.reshape(1, th, w_out, cout_p)
    s_ref[...] += jnp.sum(acc, axis=0, keepdims=True)
    ss_ref[...] += jnp.sum(acc * acc, axis=0, keepdims=True)


def bn_relu_kernel(y_ref, scale_ref, shift_ref, o_ref):
    """Per-channel affine (precomputed scale/shift) + ReLU, one FMA + max."""
    z = y_ref[...] * scale_ref[...] + shift_ref[...]
    o_ref[...] = jnp.maximum(z, 0.0).astype(o_ref.dtype)


# ------------------------------ pallas wrappers --------------------------------
def _pick_tile_h(h, w, target_rows=512):
    """Largest divisor of H whose row tile (TH*W) stays near the target."""
    best = 1
    for th in range(1, h + 1):
        if h % th == 0 and th * w <= target_rows:
            best = th
    return best


def _conv_stats(x_pad, w9, th):
    n, hp2, wp2, cin_p = x_pad.shape
    h, w = hp2 - 2, wp2 - 2
    cout_p = w9.shape[-1]
    grid = (n, h // th)
    return pl.pallas_call(
        conv_stats_kernel,
        out_shape=(
            jax.ShapeDtypeStruct((n, h, w, cout_p), jnp.float32),
            jax.ShapeDtypeStruct((1, cout_p), jnp.float32),
            jax.ShapeDtypeStruct((1, cout_p), jnp.float32),
        ),
        grid=grid,
        in_specs=[
            # Whole padded image of batch n, resident across the row tiles.
            pl.BlockSpec((1, hp2, wp2, cin_p), lambda ni, j: (ni, 0, 0, 0)),
            # Grid-invariant packed weights.
            pl.BlockSpec((9, cin_p, cout_p), lambda ni, j: (0, 0, 0)),
        ],
        out_specs=(
            pl.BlockSpec((1, th, w, cout_p), lambda ni, j: (ni, j, 0, 0)),
            pl.BlockSpec((1, cout_p), lambda ni, j: (0, 0)),
            pl.BlockSpec((1, cout_p), lambda ni, j: (0, 0)),
        ),
        compiler_params=pltpu.CompilerParams(
            # Stats accumulate across the whole grid -> reduction axes.
            dimension_semantics=("arbitrary", "arbitrary"),
            vmem_limit_bytes=VMEM_LIMIT,
        ),
    )(x_pad, w9)


def _bn_relu(y, scale, shift, th, out_dtype):
    n, h, w, cout_p = y.shape
    grid = (n, h // th)
    return pl.pallas_call(
        bn_relu_kernel,
        out_shape=jax.ShapeDtypeStruct((n, h, w, cout_p), out_dtype),
        grid=grid,
        in_specs=[
            pl.BlockSpec((1, th, w, cout_p), lambda ni, j: (ni, j, 0, 0)),
            pl.BlockSpec((1, cout_p), lambda ni, j: (0, 0)),
            pl.BlockSpec((1, cout_p), lambda ni, j: (0, 0)),
        ],
        out_specs=pl.BlockSpec((1, th, w, cout_p), lambda ni, j: (ni, j, 0, 0)),
        compiler_params=pltpu.CompilerParams(
            dimension_semantics=("parallel", "parallel"),  # both TCs on v7x
            vmem_limit_bytes=VMEM_LIMIT,
        ),
    )(y, scale, shift)


def conv_bn_relu_layer(x_pad, w9, gamma_p, beta_p, *, out_dtype):
    """x_pad: (N, H+2, W+2, Cin_p); returns (N, H, W, Cout_p) in out_dtype."""
    n, hp2, wp2, _ = x_pad.shape
    h, w = hp2 - 2, wp2 - 2
    th = _pick_tile_h(h, w)

    # Pass 1: conv + batch-stat accumulation.
    y, s, ss = _conv_stats(x_pad, w9, th)

    # Tiny per-channel XLA glue: fold BN into one scale/shift per channel.
    cnt = jnp.float32(n * h * w)
    mean = s / cnt
    var = jnp.maximum(ss / cnt - mean * mean, 0.0)   # biased variance
    scale = gamma_p * jax.lax.rsqrt(var + BN_EPS)
    shift = beta_p - mean * scale

    # Pass 2: normalize + ReLU (parallel over rows / batch).
    return _bn_relu(y, scale, shift, th, out_dtype)


# ------------------------------- glue (JAX) -----------------------------------
def _round_up(x, m):
    return ((x + m - 1) // m) * m


def _pack_conv_weight(w_oihw, cin_p, cout_p, dtype):
    """(Cout, Cin, 3, 3) torch-style -> (9, Cin_p, Cout_p), taps ordered (dy,dx)."""
    c_out, c_in, kh, kw = w_oihw.shape
    assert (kh, kw) == (3, 3)
    w = jnp.transpose(w_oihw, (2, 3, 1, 0))                       # (3,3,Cin,Cout)
    w = jnp.pad(w, ((0, 0), (0, 0), (0, cin_p - c_in), (0, cout_p - c_out)))
    return w.reshape(9, cin_p, cout_p).astype(dtype)


def _pad_vec(v, c_p):
    return jnp.pad(v.astype(jnp.float32), (0, c_p - v.shape[0])).reshape(1, c_p)


def fuse_forward(x_nchw, params, *, mxu_dtype=jnp.bfloat16):
    n, c_in, h, w = x_nchw.shape
    c_mid = params["w1"].shape[0]
    c_out = params["w2"].shape[0]
    cin_p = _round_up(c_in, LANE)
    cmid_p = _round_up(c_mid, LANE)
    cout_p = _round_up(c_out, LANE)

    # NCHW -> NHWC, pad channels to 128 lanes, pad spatially for the 3x3 halo,
    # cast to bf16 for the MXU (accumulation stays f32 inside the kernel).
    x = jnp.transpose(x_nchw, (0, 2, 3, 1))
    x = jnp.pad(x, ((0, 0), (1, 1), (1, 1), (0, cin_p - c_in))).astype(mxu_dtype)

    w1 = _pack_conv_weight(params["w1"], cin_p, cmid_p, mxu_dtype)
    w2 = _pack_conv_weight(params["w2"], cmid_p, cout_p, mxu_dtype)
    g1, be1 = _pad_vec(params["g1"], cmid_p), _pad_vec(params["beta1"], cmid_p)
    g2, be2 = _pad_vec(params["g2"], cout_p), _pad_vec(params["beta2"], cout_p)

    # NOTE: conv biases b1/b2 are intentionally NOT fed to the kernel: a
    # per-channel constant added before training-mode BatchNorm is exactly
    # cancelled by the mean subtraction.

    # Layer 1 (output stays channel-padded bf16 for the next MXU pass).
    z1 = conv_bn_relu_layer(x, w1, g1, be1, out_dtype=mxu_dtype)
    # TODO(synk): full two-layer fusion (keep z1 in VMEM with halo exchange)
    # would remove this HBM round trip; here we only avoid re-packing channels.
    z1 = jnp.pad(z1, ((0, 0), (1, 1), (1, 1), (0, 0)))            # spatial halo

    # Layer 2 (final output in f32).
    z2 = conv_bn_relu_layer(z1, w2, g2, be2, out_dtype=jnp.float32)
    z2 = z2[..., :c_out]                                          # drop channel pad
    return jnp.transpose(z2, (0, 3, 1, 2))                        # NHWC -> NCHW


# --------------------------- pure-JAX reference --------------------------------
def _ref_forward(x_nchw, params, *, mxu_dtype=jnp.bfloat16):
    def conv(x, wgt, b):
        y = jax.lax.conv_general_dilated(
            x.astype(mxu_dtype), wgt.astype(mxu_dtype),
            window_strides=(1, 1), padding="SAME",
            dimension_numbers=("NCHW", "OIHW", "NCHW"),
            preferred_element_type=jnp.float32)
        return y + b[None, :, None, None]

    def bn_relu(y, g, beta):
        mu = jnp.mean(y, axis=(0, 2, 3), keepdims=True)
        var = jnp.mean((y - mu) ** 2, axis=(0, 2, 3), keepdims=True)
        z = (y - mu) * jax.lax.rsqrt(var + BN_EPS)
        z = z * g[None, :, None, None] + beta[None, :, None, None]
        return jnp.maximum(z, 0.0)

    y = bn_relu(conv(x_nchw, params["w1"], params["b1"]),
                params["g1"], params["beta1"])
    y = bn_relu(conv(y, params["w2"], params["b2"]),
                params["g2"], params["beta2"])
    return y


# ----------------------------------- main --------------------------------------
if __name__ == "__main__":
    key = jax.random.PRNGKey(0)
    N, C_IN, C_MID, C_OUT, H, W = 2, 4, 8, 4, 16, 16

    ks = jax.random.split(key, 7)
    x = jax.random.normal(ks[0], (N, C_IN, H, W), dtype=jnp.float32)

    params = {
        "w1": 0.1 * jax.random.normal(ks[1], (C_MID, C_IN, 3, 3), jnp.float32),
        "b1": 0.1 * jax.random.normal(ks[2], (C_MID,), jnp.float32),
        "g1": jnp.ones((C_MID,), jnp.float32),
        "beta1": jnp.zeros((C_MID,), jnp.float32),
        "w2": 0.1 * jax.random.normal(ks[3], (C_OUT, C_MID, 3, 3), jnp.float32),
        "b2": 0.1 * jax.random.normal(ks[4], (C_OUT,), jnp.float32),
        "g2": 1.0 + 0.1 * jax.random.normal(ks[5], (C_OUT,), jnp.float32),
        "beta2": 0.1 * jax.random.normal(ks[6], (C_OUT,), jnp.float32),
    }

    out = jax.block_until_ready(jax.jit(fuse_forward)(x, params))
    ref = jax.block_until_ready(_ref_forward(x, params))

    assert out.shape == (N, C_OUT, H, W)
    max_err = float(jnp.max(jnp.abs(out - ref)))
    assert jnp.allclose(out, ref, atol=5e-3, rtol=5e-3), max_err

    print("KERNEL_OK")
</pallas_src>

<mosaic_0001>
module attributes {stable_mosaic.version = 11 : i64} {
  func.func @conv_stats_kernel(%arg0: i32, %arg1: i32, %arg2: memref<1x18x18x128xbf16, #tpu.memory_space<vmem>>, %arg3: memref<9x128x128xbf16, #tpu.memory_space<vmem>>, %arg4: memref<1x16x16x128xf32, #tpu.memory_space<vmem>>, %arg5: memref<1x128xf32, #tpu.memory_space<vmem>>, %arg6: memref<1x128xf32, #tpu.memory_space<vmem>>) attributes {dimension_semantics = [#tpu.dimension_semantics<arbitrary>, #tpu.dimension_semantics<arbitrary>], iteration_bounds = array<i64: 2, 1>, scalar_prefetch = 0 : i64, scratch_operands = 0 : i64, tpu.core_type = #tpu.core_type<tc>, window_params = [{transform_indices = @transform_0, window_bounds = array<i64: 1, 18, 18, 128>}, {pipeline_mode = #tpu.pipeline_mode<synchronous>, transform_indices = @transform_1, window_bounds = array<i64: 9, 128, 128>}, {transform_indices = @transform_2, window_bounds = array<i64: 1, 16, 16, 128>}, {pipeline_mode = #tpu.pipeline_mode<synchronous>, transform_indices = @transform_3, window_bounds = array<i64: 1, 128>}, {pipeline_mode = #tpu.pipeline_mode<synchronous>, transform_indices = @transform_4, window_bounds = array<i64: 1, 128>}]} {
    %c0_i32 = arith.constant 0 : i32
    %0 = arith.cmpi eq, %arg0, %c0_i32 : i32
    %c0_i32_0 = arith.constant 0 : i32
    %1 = arith.cmpi eq, %arg1, %c0_i32_0 : i32
    %2 = arith.andi %0, %1 : i1
    %3 = arith.extui %2 : i1 to i32
    %c0_i32_1 = arith.constant 0 : i32
    %4 = arith.cmpi ne, %3, %c0_i32_1 : i32
    scf.if %4 {
      %cst_77 = arith.constant 0.000000e+00 : f32
      %101 = vector.broadcast %cst_77 : f32 to vector<1x128xf32>
      %c0_78 = arith.constant 0 : index
      %c0_79 = arith.constant 0 : index
      %102 = vector.load %arg5[%c0_78, %c0_79] : memref<1x128xf32, #tpu.memory_space<vmem>>, vector<1x128xf32>
      tpu.vector_store %arg5[%c0_78, %c0_79], %101 {strides = array<i32>} : memref<1x128xf32, #tpu.memory_space<vmem>>, vector<1x128xf32>,
      %cst_80 = arith.constant 0.000000e+00 : f32
      %103 = vector.broadcast %cst_80 : f32 to vector<1x128xf32>
      %c0_81 = arith.constant 0 : index
      %c0_82 = arith.constant 0 : index
      %104 = vector.load %arg6[%c0_81, %c0_82] : memref<1x128xf32, #tpu.memory_space<vmem>>, vector<1x128xf32>
      tpu.vector_store %arg6[%c0_81, %c0_82], %103 {strides = array<i32>} : memref<1x128xf32, #tpu.memory_space<vmem>>, vector<1x128xf32>,
    } else {
    }
    %c16_i32 = arith.constant 16 : i32
    %5 = arith.muli %arg1, %c16_i32 : i32
    %cst = arith.constant 0.000000e+00 : f32
    %6 = vector.broadcast %cst : f32 to vector<256x128xf32>
    %c0_i32_2 = arith.constant 0 : i32
    %7 = arith.addi %5, %c0_i32_2 : i32
    %c0 = arith.constant 0 : index
    %8 = arith.index_cast %7 : i32 to index
    %c0_3 = arith.constant 0 : index
    %c0_4 = arith.constant 0 : index
    %9 = vector.load %arg2[%c0, %8, %c0_3, %c0_4] : memref<1x18x18x128xbf16, #tpu.memory_space<vmem>>, vector<1x16x16x128xbf16>
    %10 = vector.shape_cast %9 : vector<1x16x16x128xbf16> to vector<16x16x128xbf16>
    %11 = vector.shape_cast %10 : vector<16x16x128xbf16> to vector<256x128xbf16>
    %c0_5 = arith.constant 0 : index
    %c0_6 = arith.constant 0 : index
    %c0_7 = arith.constant 0 : index
    %12 = vector.load %arg3[%c0_5, %c0_6, %c0_7] : memref<9x128x128xbf16, #tpu.memory_space<vmem>>, vector<1x128x128xbf16>
    %13 = vector.shape_cast %12 : vector<1x128x128xbf16> to vector<128x128xbf16>
    %cst_8 = arith.constant dense<0.000000e+00> : vector<256x128xf32>
    %14 = tpu.matmul %11, %13, %cst_8 {dimension_numbers = #tpu.dot_dimension_numbers<[1], [0], [0], [1], [0, 0, 1, 1], [], []>} : vector<256x128xbf16>, vector<128x128xbf16>, vector<256x128xf32> -> vector<256x128xf32>
    %15 = arith.addf %6, %14 : vector<256x128xf32>
    %c0_i32_9 = arith.constant 0 : i32
    %16 = arith.addi %5, %c0_i32_9 : i32
    %c0_10 = arith.constant 0 : index
    %17 = arith.index_cast %16 : i32 to index
    %c1 = arith.constant 1 : index
    %c0_11 = arith.constant 0 : index
    %18 = vector.load %arg2[%c0_10, %17, %c1, %c0_11] : memref<1x18x18x128xbf16, #tpu.memory_space<vmem>>, vector<1x16x16x128xbf16>
    %19 = vector.shape_cast %18 : vector<1x16x16x128xbf16> to vector<16x16x128xbf16>
    %20 = vector.shape_cast %19 : vector<16x16x128xbf16> to vector<256x128xbf16>
    %c1_12 = arith.constant 1 : index
    %c0_13 = arith.constant 0 : index
    %c0_14 = arith.constant 0 : index
    %21 = vector.load %arg3[%c1_12, %c0_13, %c0_14] : memref<9x128x128xbf16, #tpu.memory_space<vmem>>, vector<1x128x128xbf16>
    %22 = vector.shape_cast %21 : vector<1x128x128xbf16> to vector<128x128xbf16>
    %cst_15 = arith.constant dense<0.000000e+00> : vector<256x128xf32>
    %23 = tpu.matmul %20, %22, %cst_15 {dimension_numbers = #tpu.dot_dimension_numbers<[1], [0], [0], [1], [0, 0, 1, 1], [], []>} : vector<256x128xbf16>, vector<128x128xbf16>, vector<256x128xf32> -> vector<256x128xf32>
    %24 = arith.addf %15, %23 : vector<256x128xf32>
    %c0_i32_16 = arith.constant 0 : i32
    %25 = arith.addi %5, %c0_i32_16 : i32
    %c0_17 = arith.constant 0 : index
    %26 = arith.index_cast %25 : i32 to index
    %c2 = arith.constant 2 : index
    %c0_18 = arith.constant 0 : index
    %27 = vector.load %arg2[%c0_17, %26, %c2, %c0_18] : memref<1x18x18x128xbf16, #tpu.memory_space<vmem>>, vector<1x16x16x128xbf16>
    %28 = vector.shape_cast %27 : vector<1x16x16x128xbf16> to vector<16x16x128xbf16>
    %29 = vector.shape_cast %28 : vector<16x16x128xbf16> to vector<256x128xbf16>
    %c2_19 = arith.constant 2 : index
    %c0_20 = arith.constant 0 : index
    %c0_21 = arith.constant 0 : index
    %30 = vector.load %arg3[%c2_19, %c0_20, %c0_21] : memref<9x128x128xbf16, #tpu.memory_space<vmem>>, vector<1x128x128xbf16>
    %31 = vector.shape_cast %30 : vector<1x128x128xbf16> to vector<128x128xbf16>
    %cst_22 = arith.constant dense<0.000000e+00> : vector<256x128xf32>
    %32 = tpu.matmul %29, %31, %cst_22 {dimension_numbers = #tpu.dot_dimension_numbers<[1], [0], [0], [1], [0, 0, 1, 1], [], []>} : vector<256x128xbf16>, vector<128x128xbf16>, vector<256x128xf32> -> vector<256x128xf32>
    %33 = arith.addf %24, %32 : vector<256x128xf32>
    %c1_i32 = arith.constant 1 : i32
    %34 = arith.addi %5, %c1_i32 : i32
    %c0_23 = arith.constant 0 : index
    %35 = arith.index_cast %34 : i32 to index
    %c0_24 = arith.constant 0 : index
    %c0_25 = arith.constant 0 : index
    %36 = vector.load %arg2[%c0_23, %35, %c0_24, %c0_25] : memref<1x18x18x128xbf16, #tpu.memory_space<vmem>>, vector<1x16x16x128xbf16>
    %37 = vector.shape_cast %36 : vector<1x16x16x128xbf16> to vector<16x16x128xbf16>
    %38 = vector.shape_cast %37 : vector<16x16x128xbf16> to vector<256x128xbf16>
    %c3 = arith.constant 3 : index
    %c0_26 = arith.constant 0 : index
    %c0_27 = arith.constant 0 : index
    %39 = vector.load %arg3[%c3, %c0_26, %c0_27] : memref<9x128x128xbf16, #tpu.memory_space<vmem>>, vector<1x128x128xbf16>
    %40 = vector.shape_cast %39 : vector<1x128x128xbf16> to vector<128x128xbf16>
    %cst_28 = arith.constant dense<0.000000e+00> : vector<256x128xf32>
    %41 = tpu.matmul %38, %40, %cst_28 {dimension_numbers = #tpu.dot_dimension_numbers<[1], [0], [0], [1], [0, 0, 1, 1], [], []>} : vector<256x128xbf16>, vector<128x128xbf16>, vector<256x128xf32> -> vector<256x128xf32>
    %42 = arith.addf %33, %41 : vector<256x128xf32>
    %c1_i32_29 = arith.constant 1 : i32
    %43 = arith.addi %5, %c1_i32_29 : i32
    %c0_30 = arith.constant 0 : index
    %44 = arith.index_cast %43 : i32 to index
    %c1_31 = arith.constant 1 : index
    %c0_32 = arith.constant 0 : index
    %45 = vector.load %arg2[%c0_30, %44, %c1_31, %c0_32] : memref<1x18x18x128xbf16, #tpu.memory_space<vmem>>, vector<1x16x16x128xbf16>
    %46 = vector.shape_cast %45 : vector<1x16x16x128xbf16> to vector<16x16x128xbf16>
    %47 = vector.shape_cast %46 : vector<16x16x128xbf16> to vector<256x128xbf16>
    %c4 = arith.constant 4 : index
    %c0_33 = arith.constant 0 : index
    %c0_34 = arith.constant 0 : index
    %48 = vector.load %arg3[%c4, %c0_33, %c0_34] : memref<9x128x128xbf16, #tpu.memory_space<vmem>>, vector<1x128x128xbf16>
    %49 = vector.shape_cast %48 : vector<1x128x128xbf16> to vector<128x128xbf16>
    %cst_35 = arith.constant dense<0.000000e+00> : vector<256x128xf32>
    %50 = tpu.matmul %47, %49, %cst_35 {dimension_numbers = #tpu.dot_dimension_numbers<[1], [0], [0], [1], [0, 0, 1, 1], [], []>} : vector<256x128xbf16>, vector<128x128xbf16>, vector<256x128xf32> -> vector<256x128xf32>
    %51 = arith.addf %42, %50 : vector<256x128xf32>
    %c1_i32_36 = arith.constant 1 : i32
    %52 = arith.addi %5, %c1_i32_36 : i32
    %c0_37 = arith.constant 0 : index
    %53 = arith.index_cast %52 : i32 to index
    %c2_38 = arith.constant 2 : index
    %c0_39 = arith.constant 0 : index
    %54 = vector.load %arg2[%c0_37, %53, %c2_38, %c0_39] : memref<1x18x18x128xbf16, #tpu.memory_space<vmem>>, vector<1x16x16x128xbf16>
    %55 = vector.shape_cast %54 : vector<1x16x16x128xbf16> to vector<16x16x128xbf16>
    %56 = vector.shape_cast %55 : vector<16x16x128xbf16> to vector<256x128xbf16>
    %c5 = arith.constant 5 : index
    %c0_40 = arith.constant 0 : index
    %c0_41 = arith.constant 0 : index
    %57 = vector.load %arg3[%c5, %c0_40, %c0_41] : memref<9x128x128xbf16, #tpu.memory_space<vmem>>, vector<1x128x128xbf16>
    %58 = vector.shape_cast %57 : vector<1x128x128xbf16> to vector<128x128xbf16>
    %cst_42 = arith.constant dense<0.000000e+00> : vector<256x128xf32>
    %59 = tpu.matmul %56, %58, %cst_42 {dimension_numbers = #tpu.dot_dimension_numbers<[1], [0], [0], [1], [0, 0, 1, 1], [], []>} : vector<256x128xbf16>, vector<128x128xbf16>, vector<256x128xf32> -> vector<256x128xf32>
    %60 = arith.addf %51, %59 : vector<256x128xf32>
    %c2_i32 = arith.constant 2 : i32
    %61 = arith.addi %5, %c2_i32 : i32
    %c0_43 = arith.constant 0 : index
    %62 = arith.index_cast %61 : i32 to index
    %c0_44 = arith.constant 0 : index
    %c0_45 = arith.constant 0 : index
    %63 = vector.load %arg2[%c0_43, %62, %c0_44, %c0_45] : memref<1x18x18x128xbf16, #tpu.memory_space<vmem>>, vector<1x16x16x128xbf16>
    %64 = vector.shape_cast %63 : vector<1x16x16x128xbf16> to vector<16x16x128xbf16>
    %65 = vector.shape_cast %64 : vector<16x16x128xbf16> to vector<256x128xbf16>
    %c6 = arith.constant 6 : index
    %c0_46 = arith.constant 0 : index
    %c0_47 = arith.constant 0 : index
    %66 = vector.load %arg3[%c6, %c0_46, %c0_47] : memref<9x128x128xbf16, #tpu.memory_space<vmem>>, vector<1x128x128xbf16>
    %67 = vector.shape_cast %66 : vector<1x128x128xbf16> to vector<128x128xbf16>
    %cst_48 = arith.constant dense<0.000000e+00> : vector<256x128xf32>
    %68 = tpu.matmul %65, %67, %cst_48 {dimension_numbers = #tpu.dot_dimension_numbers<[1], [0], [0], [1], [0, 0, 1, 1], [], []>} : vector<256x128xbf16>, vector<128x128xbf16>, vector<256x128xf32> -> vector<256x128xf32>
    %69 = arith.addf %60, %68 : vector<256x128xf32>
    %c2_i32_49 = arith.constant 2 : i32
    %70 = arith.addi %5, %c2_i32_49 : i32
    %c0_50 = arith.constant 0 : index
    %71 = arith.index_cast %70 : i32 to index
    %c1_51 = arith.constant 1 : index
    %c0_52 = arith.constant 0 : index
    %72 = vector.load %arg2[%c0_50, %71, %c1_51, %c0_52] : memref<1x18x18x128xbf16, #tpu.memory_space<vmem>>, vector<1x16x16x128xbf16>
    %73 = vector.shape_cast %72 : vector<1x16x16x128xbf16> to vector<16x16x128xbf16>
    %74 = vector.shape_cast %73 : vector<16x16x128xbf16> to vector<256x128xbf16>
    %c7 = arith.constant 7 : index
    %c0_53 = arith.constant 0 : index
    %c0_54 = arith.constant 0 : index
    %75 = vector.load %arg3[%c7, %c0_53, %c0_54] : memref<9x128x128xbf16, #tpu.memory_space<vmem>>, vector<1x128x128xbf16>
    %76 = vector.shape_cast %75 : vector<1x128x128xbf16> to vector<128x128xbf16>
    %cst_55 = arith.constant dense<0.000000e+00> : vector<256x128xf32>
    %77 = tpu.matmul %74, %76, %cst_55 {dimension_numbers = #tpu.dot_dimension_numbers<[1], [0], [0], [1], [0, 0, 1, 1], [], []>} : vector<256x128xbf16>, vector<128x128xbf16>, vector<256x128xf32> -> vector<256x128xf32>
    %78 = arith.addf %69, %77 : vector<256x128xf32>
    %c2_i32_56 = arith.constant 2 : i32
    %79 = arith.addi %5, %c2_i32_56 : i32
    %c0_57 = arith.constant 0 : index
    %80 = arith.index_cast %79 : i32 to index
    %c2_58 = arith.constant 2 : index
    %c0_59 = arith.constant 0 : index
    %81 = vector.load %arg2[%c0_57, %80, %c2_58, %c0_59] : memref<1x18x18x128xbf16, #tpu.memory_space<vmem>>, vector<1x16x16x128xbf16>
    %82 = vector.shape_cast %81 : vector<1x16x16x128xbf16> to vector<16x16x128xbf16>
    %83 = vector.shape_cast %82 : vector<16x16x128xbf16> to vector<256x128xbf16>
    %c8 = arith.constant 8 : index
    %c0_60 = arith.constant 0 : index
    %c0_61 = arith.constant 0 : index
    %84 = vector.load %arg3[%c8, %c0_60, %c0_61] : memref<9x128x128xbf16, #tpu.memory_space<vmem>>, vector<1x128x128xbf16>
    %85 = vector.shape_cast %84 : vector<1x128x128xbf16> to vector<128x128xbf16>
    %cst_62 = arith.constant dense<0.000000e+00> : vector<256x128xf32>
    %86 = tpu.matmul %83, %85, %cst_62 {dimension_numbers = #tpu.dot_dimension_numbers<[1], [0], [0], [1], [0, 0, 1, 1], [], []>} : vector<256x128xbf16>, vector<128x128xbf16>, vector<256x128xf32> -> vector<256x128xf32>
    %87 = arith.addf %78, %86 : vector<256x128xf32>
    %88 = vector.shape_cast %87 : vector<256x128xf32> to vector<1x16x16x128xf32>
    %c0_63 = arith.constant 0 : index
    %c0_64 = arith.constant 0 : index
    %c0_65 = arith.constant 0 : index
    %c0_66 = arith.constant 0 : index
    %89 = vector.load %arg4[%c0_63, %c0_64, %c0_65, %c0_66] : memref<1x16x16x128xf32, #tpu.memory_space<vmem>>, vector<1x16x16x128xf32>
    tpu.vector_store %arg4[%c0_63, %c0_64, %c0_65, %c0_66], %88 {strides = array<i32>} : memref<1x16x16x128xf32, #tpu.memory_space<vmem>>, vector<1x16x16x128xf32>,
    %c0_67 = arith.constant 0 : index
    %c0_68 = arith.constant 0 : index
    %90 = vector.load %arg5[%c0_67, %c0_68] : memref<1x128xf32, #tpu.memory_space<vmem>>, vector<1x128xf32>
    %cst_69 = arith.constant dense<0.000000e+00> : vector<128xf32>
    %91 = vector.multi_reduction <add>, %87, %cst_69 [0] : vector<256x128xf32> to vector<128xf32>
    %92 = vector.shape_cast %91 : vector<128xf32> to vector<1x128xf32>
    %93 = arith.addf %90, %92 : vector<1x128xf32>
    %c0_70 = arith.constant 0 : index
    %c0_71 = arith.constant 0 : index
    %94 = vector.load %arg5[%c0_70, %c0_71] : memref<1x128xf32, #tpu.memory_space<vmem>>, vector<1x128xf32>
    tpu.vector_store %arg5[%c0_70, %c0_71], %93 {strides = array<i32>} : memref<1x128xf32, #tpu.memory_space<vmem>>, vector<1x128xf32>,
    %c0_72 = arith.constant 0 : index
    %c0_73 = arith.constant 0 : index
    %95 = vector.load %arg6[%c0_72, %c0_73] : memref<1x128xf32, #tpu.memory_space<vmem>>, vector<1x128xf32>
    %96 = arith.mulf %87, %87 : vector<256x128xf32>
    %cst_74 = arith.constant dense<0.000000e+00> : vector<128xf32>
    %97 = vector.multi_reduction <add>, %96, %cst_74 [0] : vector<256x128xf32> to vector<128xf32>
    %98 = vector.shape_cast %97 : vector<128xf32> to vector<1x128xf32>
    %99 = arith.addf %95, %98 : vector<1x128xf32>
    %c0_75 = arith.constant 0 : index
    %c0_76 = arith.constant 0 : index
    %100 = vector.load %arg6[%c0_75, %c0_76] : memref<1x128xf32, #tpu.memory_space<vmem>>, vector<1x128xf32>
    tpu.vector_store %arg6[%c0_75, %c0_76], %99 {strides = array<i32>} : memref<1x128xf32, #tpu.memory_space<vmem>>, vector<1x128xf32>,
    return
  }
  func.func @transform_0(%arg0: i32, %arg1: i32) -> (i32, i32, i32, i32) {
    %c0_i32 = arith.constant 0 : i32
    %c0_i32_0 = arith.constant 0 : i32
    %c0_i32_1 = arith.constant 0 : i32
    %c0_i32_2 = arith.constant 0 : i32
    return %arg0, %c0_i32, %c0_i32_0, %c0_i32_1 : i32, i32, i32, i32
  }
  func.func @transform_1(%arg0: i32, %arg1: i32) -> (i32, i32, i32) {
    %c0_i32 = arith.constant 0 : i32
    %c0_i32_0 = arith.constant 0 : i32
    %c0_i32_1 = arith.constant 0 : i32
    %c0_i32_2 = arith.constant 0 : i32
    return %c0_i32, %c0_i32_0, %c0_i32_1 : i32, i32, i32
  }
  func.func @transform_2(%arg0: i32, %arg1: i32) -> (i32, i32, i32, i32) {
    %c0_i32 = arith.constant 0 : i32
    %c0_i32_0 = arith.constant 0 : i32
    %c0_i32_1 = arith.constant 0 : i32
    return %arg0, %arg1, %c0_i32, %c0_i32_0 : i32, i32, i32, i32
  }
  func.func @transform_3(%arg0: i32, %arg1: i32) -> (i32, i32) {
    %c0_i32 = arith.constant 0 : i32
    %c0_i32_0 = arith.constant 0 : i32
    %c0_i32_1 = arith.constant 0 : i32
    return %c0_i32, %c0_i32_0 : i32, i32
  }
  func.func @transform_4(%arg0: i32, %arg1: i32) -> (i32, i32) {
    %c0_i32 = arith.constant 0 : i32
    %c0_i32_0 = arith.constant 0 : i32
    %c0_i32_1 = arith.constant 0 : i32
    return %c0_i32, %c0_i32_0 : i32, i32
  }
}

module attributes {stable_mosaic.version = 11 : i64} {
  func.func @bn_relu_kernel(%arg0: i32, %arg1: i32, %arg2: memref<1x16x16x128xf32, #tpu.memory_space<vmem>>, %arg3: memref<1x128xf32, #tpu.memory_space<vmem>>, %arg4: memref<1x128xf32, #tpu.memory_space<vmem>>, %arg5: memref<1x16x16x128xbf16, #tpu.memory_space<vmem>>) attributes {dimension_semantics = [#tpu.dimension_semantics<parallel>, #tpu.dimension_semantics<parallel>], iteration_bounds = array<i64: 2, 1>, scalar_prefetch = 0 : i64, scratch_operands = 0 : i64, tpu.core_type = #tpu.core_type<tc>, window_params = [{transform_indices = @transform_0, window_bounds = array<i64: 1, 16, 16, 128>}, {pipeline_mode = #tpu.pipeline_mode<synchronous>, transform_indices = @transform_1, window_bounds = array<i64: 1, 128>}, {pipeline_mode = #tpu.pipeline_mode<synchronous>, transform_indices = @transform_2, window_bounds = array<i64: 1, 128>}, {transform_indices = @transform_3, window_bounds = array<i64: 1, 16, 16, 128>}]} {
    %c0 = arith.constant 0 : index
    %c0_0 = arith.constant 0 : index
    %c0_1 = arith.constant 0 : index
    %c0_2 = arith.constant 0 : index
    %0 = vector.load %arg2[%c0, %c0_0, %c0_1, %c0_2] : memref<1x16x16x128xf32, #tpu.memory_space<vmem>>, vector<1x16x16x128xf32>
    %c0_3 = arith.constant 0 : index
    %c0_4 = arith.constant 0 : index
    %1 = vector.load %arg3[%c0_3, %c0_4] : memref<1x128xf32, #tpu.memory_space<vmem>>, vector<1x128xf32>
    %2 = vector.shape_cast %1 : vector<1x128xf32> to vector<1x1x1x128xf32>
    %3 = vector.broadcast %2 : vector<1x1x1x128xf32> to vector<1x16x16x128xf32>
    %4 = arith.mulf %0, %3 : vector<1x16x16x128xf32>
    %c0_5 = arith.constant 0 : index
    %c0_6 = arith.constant 0 : index
    %5 = vector.load %arg4[%c0_5, %c0_6] : memref<1x128xf32, #tpu.memory_space<vmem>>, vector<1x128xf32>
    %6 = vector.shape_cast %5 : vector<1x128xf32> to vector<1x1x1x128xf32>
    %7 = vector.broadcast %6 : vector<1x1x1x128xf32> to vector<1x16x16x128xf32>
    %8 = arith.addf %4, %7 : vector<1x16x16x128xf32>
    %cst = arith.constant 0.000000e+00 : f32
    %9 = vector.broadcast %cst : f32 to vector<1x16x16x128xf32>
    %10 = arith.maximumf %8, %9 : vector<1x16x16x128xf32>
    %11 = arith.truncf %10 : vector<1x16x16x128xf32> to vector<1x16x16x128xbf16>
    %c0_7 = arith.constant 0 : index
    %c0_8 = arith.constant 0 : index
    %c0_9 = arith.constant 0 : index
    %c0_10 = arith.constant 0 : index
    %12 = vector.load %arg5[%c0_7, %c0_8, %c0_9, %c0_10] : memref<1x16x16x128xbf16, #tpu.memory_space<vmem>>, vector<1x16x16x128xbf16>
    tpu.vector_store %arg5[%c0_7, %c0_8, %c0_9, %c0_10], %11 {strides = array<i32>} : memref<1x16x16x128xbf16, #tpu.memory_space<vmem>>, vector<1x16x16x128xbf16>,
    return
  }
  func.func @transform_0(%arg0: i32, %arg1: i32) -> (i32, i32, i32, i32) {
    %c0_i32 = arith.constant 0 : i32
    %c0_i32_0 = arith.constant 0 : i32
    %c0_i32_1 = arith.constant 0 : i32
    return %arg0, %arg1, %c0_i32, %c0_i32_0 : i32, i32, i32, i32
  }
  func.func @transform_1(%arg0: i32, %arg1: i32) -> (i32, i32) {
    %c0_i32 = arith.constant 0 : i32
    %c0_i32_0 = arith.constant 0 : i32
    %c0_i32_1 = arith.constant 0 : i32
    return %c0_i32, %c0_i32_0 : i32, i32
  }
  func.func @transform_2(%arg0: i32, %arg1: i32) -> (i32, i32) {
    %c0_i32 = arith.constant 0 : i32
    %c0_i32_0 = arith.constant 0 : i32
    %c0_i32_1 = arith.constant 0 : i32
    return %c0_i32, %c0_i32_0 : i32, i32
  }
  func.func @transform_3(%arg0: i32, %arg1: i32) -> (i32, i32, i32, i32) {
    %c0_i32 = arith.constant 0 : i32
    %c0_i32_0 = arith.constant 0 : i32
    %c0_i32_1 = arith.constant 0 : i32
    return %arg0, %arg1, %c0_i32, %c0_i32_0 : i32, i32, i32, i32
  }
}

module attributes {stable_mosaic.version = 11 : i64} {
  func.func @bn_relu_kernel(%arg0: i32, %arg1: i32, %arg2: memref<1x16x16x128xf32, #tpu.memory_space<vmem>>, %arg3: memref<1x128xf32, #tpu.memory_space<vmem>>, %arg4: memref<1x128xf32, #tpu.memory_space<vmem>>, %arg5: memref<1x16x16x128xf32, #tpu.memory_space<vmem>>) attributes {dimension_semantics = [#tpu.dimension_semantics<parallel>, #tpu.dimension_semantics<parallel>], iteration_bounds = array<i64: 2, 1>, scalar_prefetch = 0 : i64, scratch_operands = 0 : i64, tpu.core_type = #tpu.core_type<tc>, window_params = [{transform_indices = @transform_0, window_bounds = array<i64: 1, 16, 16, 128>}, {pipeline_mode = #tpu.pipeline_mode<synchronous>, transform_indices = @transform_1, window_bounds = array<i64: 1, 128>}, {pipeline_mode = #tpu.pipeline_mode<synchronous>, transform_indices = @transform_2, window_bounds = array<i64: 1, 128>}, {transform_indices = @transform_3, window_bounds = array<i64: 1, 16, 16, 128>}]} {
    %c0 = arith.constant 0 : index
    %c0_0 = arith.constant 0 : index
    %c0_1 = arith.constant 0 : index
    %c0_2 = arith.constant 0 : index
    %0 = vector.load %arg2[%c0, %c0_0, %c0_1, %c0_2] : memref<1x16x16x128xf32, #tpu.memory_space<vmem>>, vector<1x16x16x128xf32>
    %c0_3 = arith.constant 0 : index
    %c0_4 = arith.constant 0 : index
    %1 = vector.load %arg3[%c0_3, %c0_4] : memref<1x128xf32, #tpu.memory_space<vmem>>, vector<1x128xf32>
    %2 = vector.shape_cast %1 : vector<1x128xf32> to vector<1x1x1x128xf32>
    %3 = vector.broadcast %2 : vector<1x1x1x128xf32> to vector<1x16x16x128xf32>
    %4 = arith.mulf %0, %3 : vector<1x16x16x128xf32>
    %c0_5 = arith.constant 0 : index
    %c0_6 = arith.constant 0 : index
    %5 = vector.load %arg4[%c0_5, %c0_6] : memref<1x128xf32, #tpu.memory_space<vmem>>, vector<1x128xf32>
    %6 = vector.shape_cast %5 : vector<1x128xf32> to vector<1x1x1x128xf32>
    %7 = vector.broadcast %6 : vector<1x1x1x128xf32> to vector<1x16x16x128xf32>
    %8 = arith.addf %4, %7 : vector<1x16x16x128xf32>
    %cst = arith.constant 0.000000e+00 : f32
    %9 = vector.broadcast %cst : f32 to vector<1x16x16x128xf32>
    %10 = arith.maximumf %8, %9 : vector<1x16x16x128xf32>
    %c0_7 = arith.constant 0 : index
    %c0_8 = arith.constant 0 : index
    %c0_9 = arith.constant 0 : index
    %c0_10 = arith.constant 0 : index
    %11 = vector.load %arg5[%c0_7, %c0_8, %c0_9, %c0_10] : memref<1x16x16x128xf32, #tpu.memory_space<vmem>>, vector<1x16x16x128xf32>
    tpu.vector_store %arg5[%c0_7, %c0_8, %c0_9, %c0_10], %10 {strides = array<i32>} : memref<1x16x16x128xf32, #tpu.memory_space<vmem>>, vector<1x16x16x128xf32>,
    return
  }
  func.func @transform_0(%arg0: i32, %arg1: i32) -> (i32, i32, i32, i32) {
    %c0_i32 = arith.constant 0 : i32
    %c0_i32_0 = arith.constant 0 : i32
    %c0_i32_1 = arith.constant 0 : i32
    return %arg0, %arg1, %c0_i32, %c0_i32_0 : i32, i32, i32, i32
  }
  func.func @transform_1(%arg0: i32, %arg1: i32) -> (i32, i32) {
    %c0_i32 = arith.constant 0 : i32
    %c0_i32_0 = arith.constant 0 : i32
    %c0_i32_1 = arith.constant 0 : i32
    return %c0_i32, %c0_i32_0 : i32, i32
  }
  func.func @transform_2(%arg0: i32, %arg1: i32) -> (i32, i32) {
    %c0_i32 = arith.constant 0 : i32
    %c0_i32_0 = arith.constant 0 : i32
    %c0_i32_1 = arith.constant 0 : i32
    return %c0_i32, %c0_i32_0 : i32, i32
  }
  func.func @transform_3(%arg0: i32, %arg1: i32) -> (i32, i32, i32, i32) {
    %c0_i32 = arith.constant 0 : i32
    %c0_i32_0 = arith.constant 0 : i32
    %c0_i32_1 = arith.constant 0 : i32
    return %arg0, %arg1, %c0_i32, %c0_i32_0 : i32, i32, i32, i32
  }
}

</mosaic_0001>

<llo_original>
// kernel: fuse_forward.5
$region0: #{fuse_forward.5}
  #allocation0 [shape = 'u32[]', space=smem, size = 0x4, offset = 0x4, fixed_abs, tag = 'smem constant byte address 0x4 - core index']
  #allocation1 [shape = 'u32[144,128]{1,0:T(1,128)}', space=vmem, size = 0x12000, scoped, tag = 'internal scratch']
  %s0 = inlined_call_operand.vmem [shape: f32[2,16,16,128], index: 0, kind: input, shape index: {}]
  %s1 = inlined_call_operand.vmem [shape: f32[1,128], index: 1, kind: input, shape index: {}]
  %s2 = inlined_call_operand.vmem [shape: f32[1,128], index: 2, kind: input, shape index: {}]
  %s3 = inlined_call_operand.vmem [shape: bf16[2,16,16,128], index: 3, kind: output, shape index: {}]
  %s4 = sld [smem:[#allocation0]]
  $region45: #{fuse_forward.5} parent=0
    _
  %s6 = ssub.s32 1, %s4
  %s7 = scalar_select 0, %s6, %s4
  loop: start=0, step=1, limit=4
  $region2: #{fuse_forward.5} parent=0 // loop_pre_header
    _
  $region3: #{fuse_forward.5} parent=0 // loop_header
    %s9 = sphi 0, %s13
    %p10 = scmp.ge.s32.totalorder %s9, 4
    %s16 = sphi 0, %s28
    %s17 = sphi 0, %s24
    %s18 = sphi 0, %s16
    %s19 = sphi 0, %s17
    %s20 = sphi 0, %s18
    %s21 = sphi 0, %s19
    %s33 = sphi 0, %s35
    %s36 = sphi 0, %s33
    %s37 = sphi 0, %s36
    %s53 = sphi 0, %s37
    %s57 = sphi 0, %s57
    %s59 = sphi 0, %s57
    %s60 = sphi 0, %s59
    %s74 = sphi 0, %s60
    %s78 = sphi 0, %s78
    %s80 = sphi 0, %s78
    %s81 = sphi 0, %s80
    %s95 = sphi 0, %s81
    %s103 = sphi 0, %s105
    %s106 = sphi 0, %s103
    %s107 = sphi 0, %s106
    %s123 = sphi 0, %s107
  $region4: #{fuse_forward.5} parent=0 // loop_header_branch
    %12 = sbr.rel (%p10) target = $region8
  $region5: #{fuse_forward.5} parent=0 // loop_body
    %s14 = ssub.s32 %s9, 1
    %s15 = ssub.s32 %s9, 2
    %s22 = sadd.s32 1, %s17
    %p23 = scmp.ge.s32.totalorder %s22, 1
    %s24 = scalar_select %p23, 0, %s22
    %s25 = sadd.s32 1, %s16
    %s26 = scalar_select %p23, %s25, %s16
    %p27 = scmp.ge.s32.totalorder %s26, 2
    %s28 = scalar_select %p27, 0, %s26
    %s29 = ssub.s32 %s16, %s28
    %s30 = ssub.s32 %s17, %s24
    %s31 = sor.u32 %s29, %s30
    %p32 = scmp.eq.s32.totalorder %s31, 0
    %s34 = sadd.s32 %s33, 1
    %s35 = scalar_select %p32, %s33, %s34
    %p38 = pneg %p32
    %p39 = scmp.eq.s32.totalorder %s9, 1
    %p40 = por %p38, %p39
    %p41 = scmp.ne.s32.totalorder %s33, %s36
    %p42 = scmp.eq.s32.totalorder %s9, 0
    %p43 = por %p41, %p42
    %p44 = scmp.ne.s32.totalorder %s33, %s36
    %p45 = scmp.eq.s32.totalorder %s14, 1
    %p46 = por %p44, %p45
    %p47 = scmp.ne.s32.totalorder %s36, %s37
    %p48 = scmp.eq.s32.totalorder %s14, 0
    %p49 = por %p47, %p48
    %p50 = scmp.ne.s32.totalorder %s36, %s37
    %p51 = scmp.eq.s32.totalorder %s15, 1
    %p52 = por %p50, %p51
    %p54 = scmp.ne.s32.totalorder %s37, %s53
    %p55 = scmp.eq.s32.totalorder %s15, 0
    %p56 = por %p54, %p55
    %s58 = sadd.s32 %s57, 1
    %p61 = scmp.eq.s32.totalorder %s9, 1
    %p62 = scmp.ne.s32.totalorder %s57, %s59
    %p63 = scmp.eq.s32.totalorder %s9, 0
    %p64 = por %p62, %p63
    %p65 = scmp.ne.s32.totalorder %s57, %s59
    %p66 = scmp.eq.s32.totalorder %s14, 1
    %p67 = por %p65, %p66
    %p68 = scmp.ne.s32.totalorder %s59, %s60
    %p69 = scmp.eq.s32.totalorder %s14, 0
    %p70 = por %p68, %p69
    %p71 = scmp.ne.s32.totalorder %s59, %s60
    %p72 = scmp.eq.s32.totalorder %s15, 1
    %p73 = por %p71, %p72
    %p75 = scmp.ne.s32.totalorder %s60, %s74
    %p76 = scmp.eq.s32.totalorder %s15, 0
    %p77 = por %p75, %p76
    %s79 = sadd.s32 %s78, 1
    %p82 = scmp.eq.s32.totalorder %s9, 1
    %p83 = scmp.ne.s32.totalorder %s78, %s80
    %p84 = scmp.eq.s32.totalorder %s9, 0
    %p85 = por %p83, %p84
    %p86 = scmp.ne.s32.totalorder %s78, %s80
    %p87 = scmp.eq.s32.totalorder %s14, 1
    %p88 = por %p86, %p87
    %p89 = scmp.ne.s32.totalorder %s80, %s81
    %p90 = scmp.eq.s32.totalorder %s14, 0
    %p91 = por %p89, %p90
    %p92 = scmp.ne.s32.totalorder %s80, %s81
    %p93 = scmp.eq.s32.totalorder %s15, 1
    %p94 = por %p92, %p93
    %p96 = scmp.ne.s32.totalorder %s81, %s95
    %p97 = scmp.eq.s32.totalorder %s15, 0
    %p98 = por %p96, %p97
    %s99 = ssub.s32 %s16, %s28
    %s100 = ssub.s32 %s17, %s24
    %s101 = sor.u32 %s99, %s100
    %p102 = scmp.eq.s32.totalorder %s101, 0
    %s104 = sadd.s32 %s103, 1
    %s105 = scalar_select %p102, %s103, %s104
    %p108 = pneg %p102
    %p109 = scmp.eq.s32.totalorder %s9, 1
    %p110 = por %p108, %p109
    %p111 = scmp.ne.s32.totalorder %s103, %s106
    %p112 = scmp.eq.s32.totalorder %s9, 0
    %p113 = por %p111, %p112
    %p114 = scmp.ne.s32.totalorder %s103, %s106
    %p115 = scmp.eq.s32.totalorder %s14, 1
    %p116 = por %p114, %p115
    %p117 = scmp.ne.s32.totalorder %s106, %s107
    %p118 = scmp.eq.s32.totalorder %s14, 0
    %p119 = por %p117, %p118
    %p120 = scmp.ne.s32.totalorder %s106, %s107
    %p121 = scmp.eq.s32.totalorder %s15, 1
    %p122 = por %p120, %p121
    %p124 = scmp.ne.s32.totalorder %s107, %s123
    %p125 = scmp.eq.s32.totalorder %s15, 0
    %p126 = por %p124, %p125
    %p127 = scmp.le.s32.totalorder 1, %s9
    %p128 = scmp.lt.s32.totalorder %s9, 3
    %p129 = pnand %p127, %p128
    %p130 = pneg %p129
    // Predicated region
    $region9: #{fuse_forward.5} parent=5 // pred_check
      _
    $region10: #{fuse_forward.5} parent=5 // pred_check_branch
      %132 = sbr.rel (%p129) target = $region12
    $region11: #{fuse_forward.5} parent=5 // pred_region
      %s133 = ssub.s32 %s9, 1
      // Predicated region
      $region13: #{fuse_forward.5} parent=11 // pred_check
        %p134 = pneg %p70
      $region14: #{fuse_forward.5} parent=11 // pred_check_branch
        %136 = sbr.rel (%p134) target = $region16
      $region15: #{fuse_forward.5} parent=11 // pred_region
        _
      $region16: #{fuse_forward.5} parent=11 // pred_fallthru
        _
      // Predicated region
      $region17: #{fuse_forward.5} parent=11 // pred_check
        %p137 = pneg %p91
      $region18: #{fuse_forward.5} parent=11 // pred_check_branch
        %139 = sbr.rel (%p137) target = $region20
      $region19: #{fuse_forward.5} parent=11 // pred_region
        _
      $region20: #{fuse_forward.5} parent=11 // pred_fallthru
        _
    $region12: #{fuse_forward.5} parent=5 // pred_fallthru
      _
    %p140 = scmp.lt.s32.totalorder %s9, 2
    // Predicated region
    $region21: #{fuse_forward.5} parent=5 // pred_check
      %p141 = pneg %p140
    $region22: #{fuse_forward.5} parent=5 // pred_check_branch
      %143 = sbr.rel (%p141) target = $region24
    $region23: #{fuse_forward.5} parent=5 // pred_region
      // Predicated region
      $region25: #{fuse_forward.5} parent=23 // pred_check
        %p144 = pneg %p43
      $region26: #{fuse_forward.5} parent=23 // pred_check_branch
        %146 = sbr.rel (%p144) target = $region28
      $region27: #{fuse_forward.5} parent=23 // pred_region
        %s147 = smul.u32 16, %s17
        %p148 = scmp.lt.s32.totalorder %s16, 1
        %s149 = scalar_select %p148, %s16, 1
        %p150 = scmp.lt.s32.totalorder %s147, 15
        %s151 = scalar_select %p150, %s147, 15
        %s152 = smul.addr %s151, 2
        %s153 = smul.addr %s149, 32
        %s154 = sadd.s32 %s152, %s153
        %s155 = smul.addr %s154, 8
        %s156 = scalar_lea.vmem %s0, %s155
        %s157 = smul.u32 16, %s17
      $region28: #{fuse_forward.5} parent=23 // pred_fallthru
        _
    $region24: #{fuse_forward.5} parent=5 // pred_fallthru
      _
    %p158 = scmp.le.s32.totalorder 1, %s9
    %p159 = scmp.lt.s32.totalorder %s9, 3
    %p160 = pnand %p158, %p159
    %p161 = pneg %p160
    // Predicated region
    $region29: #{fuse_forward.5} parent=5 // pred_check
      _
    $region30: #{fuse_forward.5} parent=5 // pred_check_branch
      %163 = sbr.rel (%p160) target = $region32
    $region31: #{fuse_forward.5} parent=5 // pred_region
      %s164 = ssub.s32 %s9, 1
      %s165 = smul.u32 16, %s19
      %p166 = scmp.lt.s32.totalorder %s18, 1
      %s167 = scalar_select %p166, %s18, 1
      %p168 = scmp.lt.s32.totalorder %s165, 15
      %s169 = scalar_select %p168, %s165, 15
      %s170 = smul.addr %s169, 2
      %s171 = smul.addr %s167, 32
      %s172 = sadd.s32 %s170, %s171
      %s173 = smul.addr %s172, 8
      %s174 = scalar_lea.vmem %s0, %s173
      %p175 = pneg %p49
      %p176 = pneg %p46
      %p177 = pneg %p70
      %p178 = pneg %p67
      %p179 = pneg %p91
      %p180 = pneg %p88
      %p181 = pneg %p119
      %p182 = pneg %p116
      %s183 = smul.u32 16, %s19
      %p184 = scmp.lt.s32.totalorder %s18, 1
      %s185 = scalar_select %p184, %s18, 1
      %p186 = scmp.lt.s32.totalorder %s183, 15
      %s187 = scalar_select %p186, %s183, 15
      %s188 = smul.addr %s187, 2
      %s189 = smul.addr %s185, 32
      %s190 = sadd.s32 %s188, %s189
      %s191 = smul.addr %s190, 4
      %s192 = scalar_lea.vmem %s3, %s191
      %s193 = smul.u32 16, %s19
      %p194 = scmp.lt.s32.totalorder %s18, 1
      %s195 = scalar_select %p194, %s18, 1
      %p196 = scmp.lt.s32.totalorder %s193, 15
      %s197 = scalar_select %p196, %s193, 15
      %s198 = smul.addr %s197, 2
      %s199 = smul.addr %s195, 32
      %s200 = sadd.s32 %s198, %s199
      %s201 = smul.addr %s200, 8
      %s202 = scalar_lea.vmem %s0, %s201
      %s203 = smul.u32 16, %s19
      %s204 = smul.u32 16, %s19
      %p205 = scmp.lt.s32.totalorder %s18, 1
      %s206 = scalar_select %p205, %s18, 1
      %p207 = scmp.lt.s32.totalorder %s204, 15
      %s208 = scalar_select %p207, %s204, 15
      %s209 = smul.addr %s208, 2
      %s210 = smul.addr %s206, 32
      %s211 = sadd.s32 %s209, %s210
      %s212 = smul.addr %s211, 4
      %s213 = scalar_lea.vmem %s3, %s212
      %s214 = smul.u32 16, %s19
      %v215 = vld [vmem:[%s202] sm:$0xff]
      %v216 = vld [vmem:[%s202 + $0x8] sm:$0xff]
      %v217 = vld [vmem:[%s202 + $0x10] sm:$0xff]
      %v218 = vld [vmem:[%s202 + $0x18] sm:$0xff]
      %v219 = vld [vmem:[%s202 + $0x20] sm:$0xff]
      %v220 = vld [vmem:[%s202 + $0x28] sm:$0xff]
      %v221 = vld [vmem:[%s202 + $0x30] sm:$0xff]
      %v222 = vld [vmem:[%s202 + $0x38] sm:$0xff]
      %v223 = vld [vmem:[%s202 + $0x40] sm:$0xff]
      %v224 = vld [vmem:[%s202 + $0x48] sm:$0xff]
      %v225 = vld [vmem:[%s202 + $0x50] sm:$0xff]
      %v226 = vld [vmem:[%s202 + $0x58] sm:$0xff]
      %v227 = vld [vmem:[%s202 + $0x60] sm:$0xff]
      %v228 = vld [vmem:[%s202 + $0x68] sm:$0xff]
      %v229 = vld [vmem:[%s202 + $0x70] sm:$0xff]
      %v230 = vld [vmem:[%s202 + $0x78] sm:$0xff]
      %v231 = vld [vmem:[%s202 + $0x80] sm:$0xff]
      %v232 = vld [vmem:[%s202 + $0x88] sm:$0xff]
      %v233 = vld [vmem:[%s202 + $0x90] sm:$0xff]
      %v234 = vld [vmem:[%s202 + $0x98] sm:$0xff]
      %v235 = vld [vmem:[%s202 + $0xa0] sm:$0xff]
      %v236 = vld [vmem:[%s202 + $0xa8] sm:$0xff]
      %v237 = vld [vmem:[%s202 + $0xb0] sm:$0xff]
      %v238 = vld [vmem:[%s202 + $0xb8] sm:$0xff]
      %v239 = vld [vmem:[%s202 + $0xc0] sm:$0xff]
      %v240 = vld [vmem:[%s202 + $0xc8] sm:$0xff]
      %v241 = vld [vmem:[%s202 + $0xd0] sm:$0xff]
      %v242 = vld [vmem:[%s202 + $0xd8] sm:$0xff]
      %v243 = vld [vmem:[%s202 + $0xe0] sm:$0xff]
      %v244 = vld [vmem:[%s202 + $0xe8] sm:$0xff]
      %v245 = vld [vmem:[%s202 + $0xf0] sm:$0xff]
      %v246 = vld [vmem:[%s202 + $0xf8] sm:$0xff]
      %v247 = vld [vmem:[%s1] sm:$0x1]
      %v249 = vlaneseq
      %v250 = vshrl.u32 %v249, 7
      %v251 = vsub.s32 0, %v250
      %v252 = vrot.slane %v247, %v251
      %v254 = vmul.f32 %v215, %v252
      %v255 = vmul.f32 %v216, %v252
      %v256 = vmul.f32 %v217, %v252
      %v257 = vmul.f32 %v218, %v252
      %v258 = vmul.f32 %v219, %v252
      %v259 = vmul.f32 %v220, %v252
      %v260 = vmul.f32 %v221, %v252
      %v261 = vmul.f32 %v222, %v252
      %v262 = vmul.f32 %v223, %v252
      %v263 = vmul.f32 %v224, %v252
      %v264 = vmul.f32 %v225, %v252
      %v265 = vmul.f32 %v226, %v252
      %v266 = vmul.f32 %v227, %v252
      %v267 = vmul.f32 %v228, %v252
      %v268 = vmul.f32 %v229, %v252
      %v269 = vmul.f32 %v230, %v252
      %v270 = vmul.f32 %v231, %v252
      %v271 = vmul.f32 %v232, %v252
      %v272 = vmul.f32 %v233, %v252
      %v273 = vmul.f32 %v234, %v252
      %v274 = vmul.f32 %v235, %v252
      %v275 = vmul.f32 %v236, %v252
      %v276 = vmul.f32 %v237, %v252
      %v277 = vmul.f32 %v238, %v252
      %v278 = vmul.f32 %v239, %v252
      %v279 = vmul.f32 %v240, %v252
      %v280 = vmul.f32 %v241, %v252
      %v281 = vmul.f32 %v242, %v252
      %v282 = vmul.f32 %v243, %v252
      %v283 = vmul.f32 %v244, %v252
      %v284 = vmul.f32 %v245, %v252
      %v285 = vmul.f32 %v246, %v252
      %v286 = vld [vmem:[%s2] sm:$0x1]
      %v288 = vlaneseq
      %v289 = vshrl.u32 %v288, 7
      %v290 = vsub.s32 0, %v289
      %v291 = vrot.slane %v286, %v290
      %v293 = vadd.f32 %v254, %v291
      %v294 = vadd.f32 %v255, %v291
      %v295 = vadd.f32 %v256, %v291
      %v296 = vadd.f32 %v257, %v291
      %v297 = vadd.f32 %v258, %v291
      %v298 = vadd.f32 %v259, %v291
      %v299 = vadd.f32 %v260, %v291
      %v300 = vadd.f32 %v261, %v291
      %v301 = vadd.f32 %v262, %v291
      %v302 = vadd.f32 %v263, %v291
      %v303 = vadd.f32 %v264, %v291
      %v304 = vadd.f32 %v265, %v291
      %v305 = vadd.f32 %v266, %v291
      %v306 = vadd.f32 %v267, %v291
      %v307 = vadd.f32 %v268, %v291
      %v308 = vadd.f32 %v269, %v291
      %v309 = vadd.f32 %v270, %v291
      %v310 = vadd.f32 %v271, %v291
      %v311 = vadd.f32 %v272, %v291
      %v312 = vadd.f32 %v273, %v291
      %v313 = vadd.f32 %v274, %v291
      %v314 = vadd.f32 %v275, %v291
      %v315 = vadd.f32 %v276, %v291
      %v316 = vadd.f32 %v277, %v291
      %v317 = vadd.f32 %v278, %v291
      %v318 = vadd.f32 %v279, %v291
      %v319 = vadd.f32 %v280, %v291
      %v320 = vadd.f32 %v281, %v291
      %v321 = vadd.f32 %v282, %v291
      %v322 = vadd.f32 %v283, %v291
      %v323 = vadd.f32 %v284, %v291
      %v324 = vadd.f32 %v285, %v291
      %v325 = vmax.f32 %v293, 0.0
      %v326 = vmax.f32 %v294, 0.0
      %v327 = vmax.f32 %v295, 0.0
      %v328 = vmax.f32 %v296, 0.0
      %v329 = vmax.f32 %v297, 0.0
      %v330 = vmax.f32 %v298, 0.0
      %v331 = vmax.f32 %v299, 0.0
      %v332 = vmax.f32 %v300, 0.0
      %v333 = vmax.f32 %v301, 0.0
      %v334 = vmax.f32 %v302, 0.0
      %v335 = vmax.f32 %v303, 0.0
      %v336 = vmax.f32 %v304, 0.0
      %v337 = vmax.f32 %v305, 0.0
      %v338 = vmax.f32 %v306, 0.0
      %v339 = vmax.f32 %v307, 0.0
      %v340 = vmax.f32 %v308, 0.0
      %v341 = vmax.f32 %v309, 0.0
      %v342 = vmax.f32 %v310, 0.0
      %v343 = vmax.f32 %v311, 0.0
      %v344 = vmax.f32 %v312, 0.0
      %v345 = vmax.f32 %v313, 0.0
      %v346 = vmax.f32 %v314, 0.0
      %v347 = vmax.f32 %v315, 0.0
      %v348 = vmax.f32 %v316, 0.0
      %v349 = vmax.f32 %v317, 0.0
      %v350 = vmax.f32 %v318, 0.0
      %v351 = vmax.f32 %v319, 0.0
      %v352 = vmax.f32 %v320, 0.0
      %v353 = vmax.f32 %v321, 0.0
      %v354 = vmax.f32 %v322, 0.0
      %v355 = vmax.f32 %v323, 0.0
      %v356 = vmax.f32 %v324, 0.0
      %v357 = vpack.c.bf16 %v326, %v325
      %v358 = vpack.c.bf16 %v328, %v327
      %v359 = vpack.c.bf16 %v330, %v329
      %v360 = vpack.c.bf16 %v332, %v331
      %v361 = vpack.c.bf16 %v334, %v333
      %v362 = vpack.c.bf16 %v336, %v335
      %v363 = vpack.c.bf16 %v338, %v337
      %v364 = vpack.c.bf16 %v340, %v339
      %v365 = vpack.c.bf16 %v342, %v341
      %v366 = vpack.c.bf16 %v344, %v343
      %v367 = vpack.c.bf16 %v346, %v345
      %v368 = vpack.c.bf16 %v348, %v347
      %v369 = vpack.c.bf16 %v350, %v349
      %v370 = vpack.c.bf16 %v352, %v351
      %v371 = vpack.c.bf16 %v354, %v353
      %v372 = vpack.c.bf16 %v356, %v355
      %v389 = vunpack.c.l.b16 %v357
      %v390 = vunpack.c.h.b16 %v357
      %v391 = vunpack.c.l.b16 %v358
      %v392 = vunpack.c.h.b16 %v358
      %v393 = vunpack.c.l.b16 %v359
      %v394 = vunpack.c.h.b16 %v359
      %v395 = vunpack.c.l.b16 %v360
      %v396 = vunpack.c.h.b16 %v360
      %v397 = vunpack.c.l.b16 %v361
      %v398 = vunpack.c.h.b16 %v361
      %v399 = vunpack.c.l.b16 %v362
      %v400 = vunpack.c.h.b16 %v362
      %v401 = vunpack.c.l.b16 %v363
      %v402 = vunpack.c.h.b16 %v363
      %v403 = vunpack.c.l.b16 %v364
      %v404 = vunpack.c.h.b16 %v364
      %v405 = vunpack.c.l.b16 %v365
      %v406 = vunpack.c.h.b16 %v365
      %v407 = vunpack.c.l.b16 %v366
      %v408 = vunpack.c.h.b16 %v366
      %v409 = vunpack.c.l.b16 %v367
      %v410 = vunpack.c.h.b16 %v367
      %v411 = vunpack.c.l.b16 %v368
      %v412 = vunpack.c.h.b16 %v368
      %v413 = vunpack.c.l.b16 %v369
      %v414 = vunpack.c.h.b16 %v369
      %v415 = vunpack.c.l.b16 %v370
      %v416 = vunpack.c.h.b16 %v370
      %v417 = vunpack.c.l.b16 %v371
      %v418 = vunpack.c.h.b16 %v371
      %v419 = vunpack.c.l.b16 %v372
      %v420 = vunpack.c.h.b16 %v372
      %v421 = vpack.c.b16 %v389, %v389
      %v422 = vpack.c.b16 %v390, %v390
      %v423 = vpack.c.b16 %v391, %v391
      %v424 = vpack.c.b16 %v392, %v392
      %v425 = vpack.c.b16 %v393, %v393
      %v426 = vpack.c.b16 %v394, %v394
      %v427 = vpack.c.b16 %v395, %v395
      %v428 = vpack.c.b16 %v396, %v396
      %v429 = vpack.c.b16 %v397, %v397
      %v430 = vpack.c.b16 %v398, %v398
      %v431 = vpack.c.b16 %v399, %v399
      %v432 = vpack.c.b16 %v400, %v400
      %v433 = vpack.c.b16 %v401, %v401
      %v434 = vpack.c.b16 %v402, %v402
      %v435 = vpack.c.b16 %v403, %v403
      %v436 = vpack.c.b16 %v404, %v404
      %v437 = vpack.c.b16 %v405, %v405
      %v438 = vpack.c.b16 %v406, %v406
      %v439 = vpack.c.b16 %v407, %v407
      %v440 = vpack.c.b16 %v408, %v408
      %v441 = vpack.c.b16 %v409, %v409
      %v442 = vpack.c.b16 %v410, %v410
      %v443 = vpack.c.b16 %v411, %v411
      %v444 = vpack.c.b16 %v412, %v412
      %v445 = vpack.c.b16 %v413, %v413
      %v446 = vpack.c.b16 %v414, %v414
      %v447 = vpack.c.b16 %v415, %v415
      %v448 = vpack.c.b16 %v416, %v416
      %v449 = vpack.c.b16 %v417, %v417
      %v450 = vpack.c.b16 %v418, %v418
      %v451 = vpack.c.b16 %v419, %v419
      %v452 = vpack.c.b16 %v420, %v420
      %485 = vst [vmem:[%s213] sm:$0xf] %v421
      %486 = vst [vmem:[%s213 + $0x4] sm:$0xf] %v422
      %487 = vst [vmem:[%s213 + $0x8] sm:$0xf] %v423
      %488 = vst [vmem:[%s213 + $0xc] sm:$0xf] %v424
      %489 = vst [vmem:[%s213 + $0x10] sm:$0xf] %v425
      %490 = vst [vmem:[%s213 + $0x14] sm:$0xf] %v426
      %491 = vst [vmem:[%s213 + $0x18] sm:$0xf] %v427
      %492 = vst [vmem:[%s213 + $0x1c] sm:$0xf] %v428
      %493 = vst [vmem:[%s213 + $0x20] sm:$0xf] %v429
      %494 = vst [vmem:[%s213 + $0x24] sm:$0xf] %v430
      %495 = vst [vmem:[%s213 + $0x28] sm:$0xf] %v431
      %496 = vst [vmem:[%s213 + $0x2c] sm:$0xf] %v432
      %497 = vst [vmem:[%s213 + $0x30] sm:$0xf] %v433
      %498 = vst [vmem:[%s213 + $0x34] sm:$0xf] %v434
      %499 = vst [vmem:[%s213 + $0x38] sm:$0xf] %v435
      %500 = vst [vmem:[%s213 + $0x3c] sm:$0xf] %v436
      %501 = vst [vmem:[%s213 + $0x40] sm:$0xf] %v437
      %502 = vst [vmem:[%s213 + $0x44] sm:$0xf] %v438
      %503 = vst [vmem:[%s213 + $0x48] sm:$0xf] %v439
      %504 = vst [vmem:[%s213 + $0x4c] sm:$0xf] %v440
      %505 = vst [vmem:[%s213 + $0x50] sm:$0xf] %v441
      %506 = vst [vmem:[%s213 + $0x54] sm:$0xf] %v442
      %507 = vst [vmem:[%s213 + $0x58] sm:$0xf] %v443
      %508 = vst [vmem:[%s213 + $0x5c] sm:$0xf] %v444
      %509 = vst [vmem:[%s213 + $0x60] sm:$0xf] %v445
      %510 = vst [vmem:[%s213 + $0x64] sm:$0xf] %v446
      %511 = vst [vmem:[%s213 + $0x68] sm:$0xf] %v447
      %512 = vst [vmem:[%s213 + $0x6c] sm:$0xf] %v448
      %513 = vst [vmem:[%s213 + $0x70] sm:$0xf] %v449
      %514 = vst [vmem:[%s213 + $0x74] sm:$0xf] %v450
      %515 = vst [vmem:[%s213 + $0x78] sm:$0xf] %v451
      %516 = vst [vmem:[%s213 + $0x7c] sm:$0xf] %v452
      %s517 = smul.u32 16, %s19
      %p518 = scmp.lt.s32.totalorder %s18, 1
      %s519 = scalar_select %p518, %s18, 1
      %p520 = scmp.lt.s32.totalorder %s517, 15
      %s521 = scalar_select %p520, %s517, 15
      %s522 = smul.addr %s521, 2
      %s523 = smul.addr %s519, 32
      %s524 = sadd.s32 %s522, %s523
      %s525 = smul.addr %s524, 4
      %s526 = scalar_lea.vmem %s3, %s525
      // Predicated region
      $region33: #{fuse_forward.5} parent=31 // pred_check
        %p527 = pneg %p116
      $region34: #{fuse_forward.5} parent=31 // pred_check_branch
        %529 = sbr.rel (%p527) target = $region36
      $region35: #{fuse_forward.5} parent=31 // pred_region
        %s530 = smul.u32 16, %s19
      $region36: #{fuse_forward.5} parent=31 // pred_fallthru
        _
    $region32: #{fuse_forward.5} parent=5 // pred_fallthru
      _
    %p531 = scmp.le.s32.totalorder 2, %s9
    // Predicated region
    $region37: #{fuse_forward.5} parent=5 // pred_check
      %p532 = pneg %p531
    $region38: #{fuse_forward.5} parent=5 // pred_check_branch
      %534 = sbr.rel (%p532) target = $region40
    $region39: #{fuse_forward.5} parent=5 // pred_region
      %s535 = ssub.s32 %s9, 2
      // Predicated region
      $region41: #{fuse_forward.5} parent=39 // pred_check
        %p536 = pneg %p122
      $region42: #{fuse_forward.5} parent=39 // pred_check_branch
        %538 = sbr.rel (%p536) target = $region44
      $region43: #{fuse_forward.5} parent=39 // pred_region
        %s539 = smul.u32 16, %s21
        %p540 = scmp.lt.s32.totalorder %s20, 1
        %s541 = scalar_select %p540, %s20, 1
        %p542 = scmp.lt.s32.totalorder %s539, 15
        %s543 = scalar_select %p542, %s539, 15
        %s544 = smul.addr %s543, 2
        %s545 = smul.addr %s541, 32
        %s546 = sadd.s32 %s544, %s545
        %s547 = smul.addr %s546, 4
        %s548 = scalar_lea.vmem %s3, %s547
      $region44: #{fuse_forward.5} parent=39 // pred_fallthru
        _
    $region40: #{fuse_forward.5} parent=5 // pred_fallthru
      _
  $region6: #{fuse_forward.5} parent=0 // loop_footer
    %s13 = sadd.s32 1, %s9
  $region7: #{fuse_forward.5} parent=0 // loop_footer_branch
    %8 = sbr.rel target = $region3
  $region8: #{fuse_forward.5} parent=0 // loop_exit
    _

// kernel: fuse_forward.7
$region0: #{fuse_forward.7}
  #allocation0 [shape = 'u32[]', space=smem, size = 0x4, offset = 0x4, fixed_abs, tag = 'smem constant byte address 0x4 - core index']
  #allocation1 [shape = 'u32[144,128]{1,0:T(1,128)}', space=vmem, size = 0x12000, scoped, tag = 'internal scratch']
  %s0 = inlined_call_operand.vmem [shape: f32[2,16,16,128], index: 0, kind: input, shape index: {}]
  %s1 = inlined_call_operand.vmem [shape: f32[1,128], index: 1, kind: input, shape index: {}]
  %s2 = inlined_call_operand.vmem [shape: f32[1,128], index: 2, kind: input, shape index: {}]
  %s3 = inlined_call_operand.vmem [shape: f32[2,16,16,128], index: 3, kind: output, shape index: {}]
  %s4 = sld [smem:[#allocation0]]
  $region45: #{fuse_forward.7} parent=0
    _
  %s6 = ssub.s32 1, %s4
  %s7 = scalar_select 0, %s6, %s4
  loop: start=0, step=1, limit=4
  $region2: #{fuse_forward.7} parent=0 // loop_pre_header
    _
  $region3: #{fuse_forward.7} parent=0 // loop_header
    %s9 = sphi 0, %s13
    %p10 = scmp.ge.s32.totalorder %s9, 4
    %s16 = sphi 0, %s28
    %s17 = sphi 0, %s24
    %s18 = sphi 0, %s16
    %s19 = sphi 0, %s17
    %s20 = sphi 0, %s18
    %s21 = sphi 0, %s19
    %s33 = sphi 0, %s35
    %s36 = sphi 0, %s33
    %s37 = sphi 0, %s36
    %s53 = sphi 0, %s37
    %s57 = sphi 0, %s57
    %s59 = sphi 0, %s57
    %s60 = sphi 0, %s59
    %s74 = sphi 0, %s60
    %s78 = sphi 0, %s78
    %s80 = sphi 0, %s78
    %s81 = sphi 0, %s80
    %s95 = sphi 0, %s81
    %s103 = sphi 0, %s105
    %s106 = sphi 0, %s103
    %s107 = sphi 0, %s106
    %s123 = sphi 0, %s107
  $region4: #{fuse_forward.7} parent=0 // loop_header_branch
    %12 = sbr.rel (%p10) target = $region8
  $region5: #{fuse_forward.7} parent=0 // loop_body
    %s14 = ssub.s32 %s9, 1
    %s15 = ssub.s32 %s9, 2
    %s22 = sadd.s32 1, %s17
    %p23 = scmp.ge.s32.totalorder %s22, 1
    %s24 = scalar_select %p23, 0, %s22
    %s25 = sadd.s32 1, %s16
    %s26 = scalar_select %p23, %s25, %s16
    %p27 = scmp.ge.s32.totalorder %s26, 2
    %s28 = scalar_select %p27, 0, %s26
    %s29 = ssub.s32 %s16, %s28
    %s30 = ssub.s32 %s17, %s24
    %s31 = sor.u32 %s29, %s30
    %p32 = scmp.eq.s32.totalorder %s31, 0
    %s34 = sadd.s32 %s33, 1
    %s35 = scalar_select %p32, %s33, %s34
    %p38 = pneg %p32
    %p39 = scmp.eq.s32.totalorder %s9, 1
    %p40 = por %p38, %p39
    %p41 = scmp.ne.s32.totalorder %s33, %s36
    %p42 = scmp.eq.s32.totalorder %s9, 0
    %p43 = por %p41, %p42
    %p44 = scmp.ne.s32.totalorder %s33, %s36
    %p45 = scmp.eq.s32.totalorder %s14, 1
    %p46 = por %p44, %p45
    %p47 = scmp.ne.s32.totalorder %s36, %s37
    %p48 = scmp.eq.s32.totalorder %s14, 0
    %p49 = por %p47, %p48
    %p50 = scmp.ne.s32.totalorder %s36, %s37
    %p51 = scmp.eq.s32.totalorder %s15, 1
    %p52 = por %p50, %p51
    %p54 = scmp.ne.s32.totalorder %s37, %s53
    %p55 = scmp.eq.s32.totalorder %s15, 0
    %p56 = por %p54, %p55
    %s58 = sadd.s32 %s57, 1
    %p61 = scmp.eq.s32.totalorder %s9, 1
    %p62 = scmp.ne.s32.totalorder %s57, %s59
    %p63 = scmp.eq.s32.totalorder %s9, 0
    %p64 = por %p62, %p63
    %p65 = scmp.ne.s32.totalorder %s57, %s59
    %p66 = scmp.eq.s32.totalorder %s14, 1
    %p67 = por %p65, %p66
    %p68 = scmp.ne.s32.totalorder %s59, %s60
    %p69 = scmp.eq.s32.totalorder %s14, 0
    %p70 = por %p68, %p69
    %p71 = scmp.ne.s32.totalorder %s59, %s60
    %p72 = scmp.eq.s32.totalorder %s15, 1
    %p73 = por %p71, %p72
    %p75 = scmp.ne.s32.totalorder %s60, %s74
    %p76 = scmp.eq.s32.totalorder %s15, 0
    %p77 = por %p75, %p76
    %s79 = sadd.s32 %s78, 1
    %p82 = scmp.eq.s32.totalorder %s9, 1
    %p83 = scmp.ne.s32.totalorder %s78, %s80
    %p84 = scmp.eq.s32.totalorder %s9, 0
    %p85 = por %p83, %p84
    %p86 = scmp.ne.s32.totalorder %s78, %s80
    %p87 = scmp.eq.s32.totalorder %s14, 1
    %p88 = por %p86, %p87
    %p89 = scmp.ne.s32.totalorder %s80, %s81
    %p90 = scmp.eq.s32.totalorder %s14, 0
    %p91 = por %p89, %p90
    %p92 = scmp.ne.s32.totalorder %s80, %s81
    %p93 = scmp.eq.s32.totalorder %s15, 1
    %p94 = por %p92, %p93
    %p96 = scmp.ne.s32.totalorder %s81, %s95
    %p97 = scmp.eq.s32.totalorder %s15, 0
    %p98 = por %p96, %p97
    %s99 = ssub.s32 %s16, %s28
    %s100 = ssub.s32 %s17, %s24
    %s101 = sor.u32 %s99, %s100
    %p102 = scmp.eq.s32.totalorder %s101, 0
    %s104 = sadd.s32 %s103, 1
    %s105 = scalar_select %p102, %s103, %s104
    %p108 = pneg %p102
    %p109 = scmp.eq.s32.totalorder %s9, 1
    %p110 = por %p108, %p109
    %p111 = scmp.ne.s32.totalorder %s103, %s106
    %p112 = scmp.eq.s32.totalorder %s9, 0
    %p113 = por %p111, %p112
    %p114 = scmp.ne.s32.totalorder %s103, %s106
    %p115 = scmp.eq.s32.totalorder %s14, 1
    %p116 = por %p114, %p115
    %p117 = scmp.ne.s32.totalorder %s106, %s107
    %p118 = scmp.eq.s32.totalorder %s14, 0
    %p119 = por %p117, %p118
    %p120 = scmp.ne.s32.totalorder %s106, %s107
    %p121 = scmp.eq.s32.totalorder %s15, 1
    %p122 = por %p120, %p121
    %p124 = scmp.ne.s32.totalorder %s107, %s123
    %p125 = scmp.eq.s32.totalorder %s15, 0
    %p126 = por %p124, %p125
    %p127 = scmp.le.s32.totalorder 1, %s9
    %p128 = scmp.lt.s32.totalorder %s9, 3
    %p129 = pnand %p127, %p128
    %p130 = pneg %p129
    // Predicated region
    $region9: #{fuse_forward.7} parent=5 // pred_check
      _
    $region10: #{fuse_forward.7} parent=5 // pred_check_branch
      %132 = sbr.rel (%p129) target = $region12
    $region11: #{fuse_forward.7} parent=5 // pred_region
      %s133 = ssub.s32 %s9, 1
      // Predicated region
      $region13: #{fuse_forward.7} parent=11 // pred_check
        %p134 = pneg %p70
      $region14: #{fuse_forward.7} parent=11 // pred_check_branch
        %136 = sbr.rel (%p134) target = $region16
      $region15: #{fuse_forward.7} parent=11 // pred_region
        _
      $region16: #{fuse_forward.7} parent=11 // pred_fallthru
        _
      // Predicated region
      $region17: #{fuse_forward.7} parent=11 // pred_check
        %p137 = pneg %p91
      $region18: #{fuse_forward.7} parent=11 // pred_check_branch
        %139 = sbr.rel (%p137) target = $region20
      $region19: #{fuse_forward.7} parent=11 // pred_region
        _
      $region20: #{fuse_forward.7} parent=11 // pred_fallthru
        _
    $region12: #{fuse_forward.7} parent=5 // pred_fallthru
      _
    %p140 = scmp.lt.s32.totalorder %s9, 2
    // Predicated region
    $region21: #{fuse_forward.7} parent=5 // pred_check
      %p141 = pneg %p140
    $region22: #{fuse_forward.7} parent=5 // pred_check_branch
      %143 = sbr.rel (%p141) target = $region24
    $region23: #{fuse_forward.7} parent=5 // pred_region
      // Predicated region
      $region25: #{fuse_forward.7} parent=23 // pred_check
        %p144 = pneg %p43
      $region26: #{fuse_forward.7} parent=23 // pred_check_branch
        %146 = sbr.rel (%p144) target = $region28
      $region27: #{fuse_forward.7} parent=23 // pred_region
        %s147 = smul.u32 16, %s17
        %p148 = scmp.lt.s32.totalorder %s16, 1
        %s149 = scalar_select %p148, %s16, 1
        %p150 = scmp.lt.s32.totalorder %s147, 15
        %s151 = scalar_select %p150, %s147, 15
        %s152 = smul.addr %s151, 2
        %s153 = smul.addr %s149, 32
        %s154 = sadd.s32 %s152, %s153
        %s155 = smul.addr %s154, 8
        %s156 = scalar_lea.vmem %s0, %s155
        %s157 = smul.u32 16, %s17
      $region28: #{fuse_forward.7} parent=23 // pred_fallthru
        _
    $region24: #{fuse_forward.7} parent=5 // pred_fallthru
      _
    %p158 = scmp.le.s32.totalorder 1, %s9
    %p159 = scmp.lt.s32.totalorder %s9, 3
    %p160 = pnand %p158, %p159
    %p161 = pneg %p160
    // Predicated region
    $region29: #{fuse_forward.7} parent=5 // pred_check
      _
    $region30: #{fuse_forward.7} parent=5 // pred_check_branch
      %163 = sbr.rel (%p160) target = $region32
    $region31: #{fuse_forward.7} parent=5 // pred_region
      %s164 = ssub.s32 %s9, 1
      %s165 = smul.u32 16, %s19
      %p166 = scmp.lt.s32.totalorder %s18, 1
      %s167 = scalar_select %p166, %s18, 1
      %p168 = scmp.lt.s32.totalorder %s165, 15
      %s169 = scalar_select %p168, %s165, 15
      %s170 = smul.addr %s169, 2
      %s171 = smul.addr %s167, 32
      %s172 = sadd.s32 %s170, %s171
      %s173 = smul.addr %s172, 8
      %s174 = scalar_lea.vmem %s0, %s173
      %p175 = pneg %p49
      %p176 = pneg %p46
      %p177 = pneg %p70
      %p178 = pneg %p67
      %p179 = pneg %p91
      %p180 = pneg %p88
      %p181 = pneg %p119
      %p182 = pneg %p116
      %s183 = smul.u32 16, %s19
      %p184 = scmp.lt.s32.totalorder %s18, 1
      %s185 = scalar_select %p184, %s18, 1
      %p186 = scmp.lt.s32.totalorder %s183, 15
      %s187 = scalar_select %p186, %s183, 15
      %s188 = smul.addr %s187, 2
      %s189 = smul.addr %s185, 32
      %s190 = sadd.s32 %s188, %s189
      %s191 = smul.addr %s190, 8
      %s192 = scalar_lea.vmem %s3, %s191
      %s193 = smul.u32 16, %s19
      %p194 = scmp.lt.s32.totalorder %s18, 1
      %s195 = scalar_select %p194, %s18, 1
      %p196 = scmp.lt.s32.totalorder %s193, 15
      %s197 = scalar_select %p196, %s193, 15
      %s198 = smul.addr %s197, 2
      %s199 = smul.addr %s195, 32
      %s200 = sadd.s32 %s198, %s199
      %s201 = smul.addr %s200, 8
      %s202 = scalar_lea.vmem %s0, %s201
      %s203 = smul.u32 16, %s19
      %s204 = smul.u32 16, %s19
      %p205 = scmp.lt.s32.totalorder %s18, 1
      %s206 = scalar_select %p205, %s18, 1
      %p207 = scmp.lt.s32.totalorder %s204, 15
      %s208 = scalar_select %p207, %s204, 15
      %s209 = smul.addr %s208, 2
      %s210 = smul.addr %s206, 32
      %s211 = sadd.s32 %s209, %s210
      %s212 = smul.addr %s211, 8
      %s213 = scalar_lea.vmem %s3, %s212
      %s214 = smul.u32 16, %s19
      %v215 = vld [vmem:[%s202] sm:$0xff]
      %v216 = vld [vmem:[%s202 + $0x8] sm:$0xff]
      %v217 = vld [vmem:[%s202 + $0x10] sm:$0xff]
      %v218 = vld [vmem:[%s202 + $0x18] sm:$0xff]
      %v219 = vld [vmem:[%s202 + $0x20] sm:$0xff]
      %v220 = vld [vmem:[%s202 + $0x28] sm:$0xff]
      %v221 = vld [vmem:[%s202 + $0x30] sm:$0xff]
      %v222 = vld [vmem:[%s202 + $0x38] sm:$0xff]
      %v223 = vld [vmem:[%s202 + $0x40] sm:$0xff]
      %v224 = vld [vmem:[%s202 + $0x48] sm:$0xff]
      %v225 = vld [vmem:[%s202 + $0x50] sm:$0xff]
      %v226 = vld [vmem:[%s202 + $0x58] sm:$0xff]
      %v227 = vld [vmem:[%s202 + $0x60] sm:$0xff]
      %v228 = vld [vmem:[%s202 + $0x68] sm:$0xff]
      %v229 = vld [vmem:[%s202 + $0x70] sm:$0xff]
      %v230 = vld [vmem:[%s202 + $0x78] sm:$0xff]
      %v231 = vld [vmem:[%s202 + $0x80] sm:$0xff]
      %v232 = vld [vmem:[%s202 + $0x88] sm:$0xff]
      %v233 = vld [vmem:[%s202 + $0x90] sm:$0xff]
      %v234 = vld [vmem:[%s202 + $0x98] sm:$0xff]
      %v235 = vld [vmem:[%s202 + $0xa0] sm:$0xff]
      %v236 = vld [vmem:[%s202 + $0xa8] sm:$0xff]
      %v237 = vld [vmem:[%s202 + $0xb0] sm:$0xff]
      %v238 = vld [vmem:[%s202 + $0xb8] sm:$0xff]
      %v239 = vld [vmem:[%s202 + $0xc0] sm:$0xff]
      %v240 = vld [vmem:[%s202 + $0xc8] sm:$0xff]
      %v241 = vld [vmem:[%s202 + $0xd0] sm:$0xff]
      %v242 = vld [vmem:[%s202 + $0xd8] sm:$0xff]
      %v243 = vld [vmem:[%s202 + $0xe0] sm:$0xff]
      %v244 = vld [vmem:[%s202 + $0xe8] sm:$0xff]
      %v245 = vld [vmem:[%s202 + $0xf0] sm:$0xff]
      %v246 = vld [vmem:[%s202 + $0xf8] sm:$0xff]
      %v247 = vld [vmem:[%s1] sm:$0x1]
      %v249 = vlaneseq
      %v250 = vshrl.u32 %v249, 7
      %v251 = vsub.s32 0, %v250
      %v252 = vrot.slane %v247, %v251
      %v254 = vmul.f32 %v215, %v252
      %v255 = vmul.f32 %v216, %v252
      %v256 = vmul.f32 %v217, %v252
      %v257 = vmul.f32 %v218, %v252
      %v258 = vmul.f32 %v219, %v252
      %v259 = vmul.f32 %v220, %v252
      %v260 = vmul.f32 %v221, %v252
      %v261 = vmul.f32 %v222, %v252
      %v262 = vmul.f32 %v223, %v252
      %v263 = vmul.f32 %v224, %v252
      %v264 = vmul.f32 %v225, %v252
      %v265 = vmul.f32 %v226, %v252
      %v266 = vmul.f32 %v227, %v252
      %v267 = vmul.f32 %v228, %v252
      %v268 = vmul.f32 %v229, %v252
      %v269 = vmul.f32 %v230, %v252
      %v270 = vmul.f32 %v231, %v252
      %v271 = vmul.f32 %v232, %v252
      %v272 = vmul.f32 %v233, %v252
      %v273 = vmul.f32 %v234, %v252
      %v274 = vmul.f32 %v235, %v252
      %v275 = vmul.f32 %v236, %v252
      %v276 = vmul.f32 %v237, %v252
      %v277 = vmul.f32 %v238, %v252
      %v278 = vmul.f32 %v239, %v252
      %v279 = vmul.f32 %v240, %v252
      %v280 = vmul.f32 %v241, %v252
      %v281 = vmul.f32 %v242, %v252
      %v282 = vmul.f32 %v243, %v252
      %v283 = vmul.f32 %v244, %v252
      %v284 = vmul.f32 %v245, %v252
      %v285 = vmul.f32 %v246, %v252
      %v286 = vld [vmem:[%s2] sm:$0x1]
      %v288 = vlaneseq
      %v289 = vshrl.u32 %v288, 7
      %v290 = vsub.s32 0, %v289
      %v291 = vrot.slane %v286, %v290
      %v293 = vadd.f32 %v254, %v291
      %v294 = vadd.f32 %v255, %v291
      %v295 = vadd.f32 %v256, %v291
      %v296 = vadd.f32 %v257, %v291
      %v297 = vadd.f32 %v258, %v291
      %v298 = vadd.f32 %v259, %v291
      %v299 = vadd.f32 %v260, %v291
      %v300 = vadd.f32 %v261, %v291
      %v301 = vadd.f32 %v262, %v291
      %v302 = vadd.f32 %v263, %v291
      %v303 = vadd.f32 %v264, %v291
      %v304 = vadd.f32 %v265, %v291
      %v305 = vadd.f32 %v266, %v291
      %v306 = vadd.f32 %v267, %v291
      %v307 = vadd.f32 %v268, %v291
      %v308 = vadd.f32 %v269, %v291
      %v309 = vadd.f32 %v270, %v291
      %v310 = vadd.f32 %v271, %v291
      %v311 = vadd.f32 %v272, %v291
      %v312 = vadd.f32 %v273, %v291
      %v313 = vadd.f32 %v274, %v291
      %v314 = vadd.f32 %v275, %v291
      %v315 = vadd.f32 %v276, %v291
      %v316 = vadd.f32 %v277, %v291
      %v317 = vadd.f32 %v278, %v291
      %v318 = vadd.f32 %v279, %v291
      %v319 = vadd.f32 %v280, %v291
      %v320 = vadd.f32 %v281, %v291
      %v321 = vadd.f32 %v282, %v291
      %v322 = vadd.f32 %v283, %v291
      %v323 = vadd.f32 %v284, %v291
      %v324 = vadd.f32 %v285, %v291
      %v325 = vmax.f32 %v293, 0.0
      %v326 = vmax.f32 %v294, 0.0
      %v327 = vmax.f32 %v295, 0.0
      %v328 = vmax.f32 %v296, 0.0
      %v329 = vmax.f32 %v297, 0.0
      %v330 = vmax.f32 %v298, 0.0
      %v331 = vmax.f32 %v299, 0.0
      %v332 = vmax.f32 %v300, 0.0
      %v333 = vmax.f32 %v301, 0.0
      %v334 = vmax.f32 %v302, 0.0
      %v335 = vmax.f32 %v303, 0.0
      %v336 = vmax.f32 %v304, 0.0
      %v337 = vmax.f32 %v305, 0.0
      %v338 = vmax.f32 %v306, 0.0
      %v339 = vmax.f32 %v307, 0.0
      %v340 = vmax.f32 %v308, 0.0
      %v341 = vmax.f32 %v309, 0.0
      %v342 = vmax.f32 %v310, 0.0
      %v343 = vmax.f32 %v311, 0.0
      %v344 = vmax.f32 %v312, 0.0
      %v345 = vmax.f32 %v313, 0.0
      %v346 = vmax.f32 %v314, 0.0
      %v347 = vmax.f32 %v315, 0.0
      %v348 = vmax.f32 %v316, 0.0
      %v349 = vmax.f32 %v317, 0.0
      %v350 = vmax.f32 %v318, 0.0
      %v351 = vmax.f32 %v319, 0.0
      %v352 = vmax.f32 %v320, 0.0
      %v353 = vmax.f32 %v321, 0.0
      %v354 = vmax.f32 %v322, 0.0
      %v355 = vmax.f32 %v323, 0.0
      %v356 = vmax.f32 %v324, 0.0
      %357 = vst [vmem:[%s213] sm:$0xff] %v325
      %358 = vst [vmem:[%s213 + $0x8] sm:$0xff] %v326
      %359 = vst [vmem:[%s213 + $0x10] sm:$0xff] %v327
      %360 = vst [vmem:[%s213 + $0x18] sm:$0xff] %v328
      %361 = vst [vmem:[%s213 + $0x20] sm:$0xff] %v329
      %362 = vst [vmem:[%s213 + $0x28] sm:$0xff] %v330
      %363 = vst [vmem:[%s213 + $0x30] sm:$0xff] %v331
      %364 = vst [vmem:[%s213 + $0x38] sm:$0xff] %v332
      %365 = vst [vmem:[%s213 + $0x40] sm:$0xff] %v333
      %366 = vst [vmem:[%s213 + $0x48] sm:$0xff] %v334
      %367 = vst [vmem:[%s213 + $0x50] sm:$0xff] %v335
      %368 = vst [vmem:[%s213 + $0x58] sm:$0xff] %v336
      %369 = vst [vmem:[%s213 + $0x60] sm:$0xff] %v337
      %370 = vst [vmem:[%s213 + $0x68] sm:$0xff] %v338
      %371 = vst [vmem:[%s213 + $0x70] sm:$0xff] %v339
      %372 = vst [vmem:[%s213 + $0x78] sm:$0xff] %v340
      %373 = vst [vmem:[%s213 + $0x80] sm:$0xff] %v341
      %374 = vst [vmem:[%s213 + $0x88] sm:$0xff] %v342
      %375 = vst [vmem:[%s213 + $0x90] sm:$0xff] %v343
      %376 = vst [vmem:[%s213 + $0x98] sm:$0xff] %v344
      %377 = vst [vmem:[%s213 + $0xa0] sm:$0xff] %v345
      %378 = vst [vmem:[%s213 + $0xa8] sm:$0xff] %v346
      %379 = vst [vmem:[%s213 + $0xb0] sm:$0xff] %v347
      %380 = vst [vmem:[%s213 + $0xb8] sm:$0xff] %v348
      %381 = vst [vmem:[%s213 + $0xc0] sm:$0xff] %v349
      %382 = vst [vmem:[%s213 + $0xc8] sm:$0xff] %v350
      %383 = vst [vmem:[%s213 + $0xd0] sm:$0xff] %v351
      %384 = vst [vmem:[%s213 + $0xd8] sm:$0xff] %v352
      %385 = vst [vmem:[%s213 + $0xe0] sm:$0xff] %v353
      %386 = vst [vmem:[%s213 + $0xe8] sm:$0xff] %v354
      %387 = vst [vmem:[%s213 + $0xf0] sm:$0xff] %v355
      %388 = vst [vmem:[%s213 + $0xf8] sm:$0xff] %v356
      %s389 = smul.u32 16, %s19
      %p390 = scmp.lt.s32.totalorder %s18, 1
      %s391 = scalar_select %p390, %s18, 1
      %p392 = scmp.lt.s32.totalorder %s389, 15
      %s393 = scalar_select %p392, %s389, 15
      %s394 = smul.addr %s393, 2
      %s395 = smul.addr %s391, 32
      %s396 = sadd.s32 %s394, %s395
      %s397 = smul.addr %s396, 8
      %s398 = scalar_lea.vmem %s3, %s397
      // Predicated region
      $region33: #{fuse_forward.7} parent=31 // pred_check
        %p399 = pneg %p116
      $region34: #{fuse_forward.7} parent=31 // pred_check_branch
        %401 = sbr.rel (%p399) target = $region36
      $region35: #{fuse_forward.7} parent=31 // pred_region
        %s402 = smul.u32 16, %s19
      $region36: #{fuse_forward.7} parent=31 // pred_fallthru
        _
    $region32: #{fuse_forward.7} parent=5 // pred_fallthru
      _
    %p403 = scmp.le.s32.totalorder 2, %s9
    // Predicated region
    $region37: #{fuse_forward.7} parent=5 // pred_check
      %p404 = pneg %p403
    $region38: #{fuse_forward.7} parent=5 // pred_check_branch
      %406 = sbr.rel (%p404) target = $region40
    $region39: #{fuse_forward.7} parent=5 // pred_region
      %s407 = ssub.s32 %s9, 2
      // Predicated region
      $region41: #{fuse_forward.7} parent=39 // pred_check
        %p408 = pneg %p122
      $region42: #{fuse_forward.7} parent=39 // pred_check_branch
        %410 = sbr.rel (%p408) target = $region44
      $region43: #{fuse_forward.7} parent=39 // pred_region
        %s411 = smul.u32 16, %s21
        %p412 = scmp.lt.s32.totalorder %s20, 1
        %s413 = scalar_select %p412, %s20, 1
        %p414 = scmp.lt.s32.totalorder %s411, 15
        %s415 = scalar_select %p414, %s411, 15
        %s416 = smul.addr %s415, 2
        %s417 = smul.addr %s413, 32
        %s418 = sadd.s32 %s416, %s417
        %s419 = smul.addr %s418, 8
        %s420 = scalar_lea.vmem %s3, %s419
      $region44: #{fuse_forward.7} parent=39 // pred_fallthru
        _
    $region40: #{fuse_forward.7} parent=5 // pred_fallthru
      _
  $region6: #{fuse_forward.7} parent=0 // loop_footer
    %s13 = sadd.s32 1, %s9
  $region7: #{fuse_forward.7} parent=0 // loop_footer_branch
    %8 = sbr.rel target = $region3
  $region8: #{fuse_forward.7} parent=0 // loop_exit
    _

// kernel: fuse_forward.4
$region0: #{fuse_forward.4}
  #allocation0 [shape = 'u32[]', space=smem, size = 0x4, offset = 0x4, fixed_abs, tag = 'smem constant byte address 0x4 - core index']
  #allocation1 [shape = 'u32[144,128]{1,0:T(1,128)}', space=vmem, size = 0x12000, scoped, tag = 'internal scratch']
  %s0 = inlined_call_operand.vmem [shape: bf16[2,18,18,128], index: 0, kind: input, shape index: {}]
  %s1 = inlined_call_operand.vmem [shape: bf16[9,128,128], index: 1, kind: input, shape index: {}]
  %s2 = inlined_call_operand.vmem [shape: f32[2,16,16,128], index: 2, kind: output, shape index: {0}]
  %s3 = inlined_call_operand.vmem [shape: f32[1,128], index: 3, kind: output, shape index: {1}]
  %s4 = inlined_call_operand.vmem [shape: f32[1,128], index: 4, kind: output, shape index: {2}]
  %5 = xla_tuple %s2, %s3, %s4
  %s6 = sld [smem:[#allocation0]]
  $region61: #{fuse_forward.4} parent=0
    _
  %s8 = ssub.s32 1, %s6
  %s9 = scalar_select 0, %s8, %s6
  loop: start=0, step=1, limit=4
  $region2: #{fuse_forward.4} parent=0 // loop_pre_header
    _
  $region3: #{fuse_forward.4} parent=0 // loop_header
    %s11 = sphi 0, %s15
    %p12 = scmp.ge.s32.totalorder %s11, 4
    %s18 = sphi 0, %s30
    %s19 = sphi 0, %s26
    %s20 = sphi 0, %s18
    %s21 = sphi 0, %s19
    %s22 = sphi 0, %s20
    %s23 = sphi 0, %s21
    %s33 = sphi 0, %s35
    %s36 = sphi 0, %s33
    %s37 = sphi 0, %s36
    %s53 = sphi 0, %s37
    %s57 = sphi 0, %s57
    %s59 = sphi 0, %s57
    %s60 = sphi 0, %s59
    %s74 = sphi 0, %s60
    %s82 = sphi 0, %s84
    %s85 = sphi 0, %s82
    %s86 = sphi 0, %s85
    %s102 = sphi 0, %s86
    %s106 = sphi 0, %s106
    %s108 = sphi 0, %s106
    %s109 = sphi 0, %s108
    %s123 = sphi 0, %s109
    %s127 = sphi 0, %s127
    %s129 = sphi 0, %s127
    %s130 = sphi 0, %s129
    %s144 = sphi 0, %s130
  $region4: #{fuse_forward.4} parent=0 // loop_header_branch
    %14 = sbr.rel (%p12) target = $region8
  $region5: #{fuse_forward.4} parent=0 // loop_body
    %s16 = ssub.s32 %s11, 1
    %s17 = ssub.s32 %s11, 2
    %s24 = sadd.s32 1, %s19
    %p25 = scmp.ge.s32.totalorder %s24, 1
    %s26 = scalar_select %p25, 0, %s24
    %s27 = sadd.s32 1, %s18
    %s28 = scalar_select %p25, %s27, %s18
    %p29 = scmp.ge.s32.totalorder %s28, 2
    %s30 = scalar_select %p29, 0, %s28
    %s31 = ssub.s32 %s18, %s30
    %p32 = scmp.eq.s32.totalorder %s31, 0
    %s34 = sadd.s32 %s33, 1
    %s35 = scalar_select %p32, %s33, %s34
    %p38 = pneg %p32
    %p39 = scmp.eq.s32.totalorder %s11, 1
    %p40 = por %p38, %p39
    %p41 = scmp.ne.s32.totalorder %s33, %s36
    %p42 = scmp.eq.s32.totalorder %s11, 0
    %p43 = por %p41, %p42
    %p44 = scmp.ne.s32.totalorder %s33, %s36
    %p45 = scmp.eq.s32.totalorder %s16, 1
    %p46 = por %p44, %p45
    %p47 = scmp.ne.s32.totalorder %s36, %s37
    %p48 = scmp.eq.s32.totalorder %s16, 0
    %p49 = por %p47, %p48
    %p50 = scmp.ne.s32.totalorder %s36, %s37
    %p51 = scmp.eq.s32.totalorder %s17, 1
    %p52 = por %p50, %p51
    %p54 = scmp.ne.s32.totalorder %s37, %s53
    %p55 = scmp.eq.s32.totalorder %s17, 0
    %p56 = por %p54, %p55
    %s58 = sadd.s32 %s57, 1
    %p61 = scmp.eq.s32.totalorder %s11, 1
    %p62 = scmp.ne.s32.totalorder %s57, %s59
    %p63 = scmp.eq.s32.totalorder %s11, 0
    %p64 = por %p62, %p63
    %p65 = scmp.ne.s32.totalorder %s57, %s59
    %p66 = scmp.eq.s32.totalorder %s16, 1
    %p67 = por %p65, %p66
    %p68 = scmp.ne.s32.totalorder %s59, %s60
    %p69 = scmp.eq.s32.totalorder %s16, 0
    %p70 = por %p68, %p69
    %p71 = scmp.ne.s32.totalorder %s59, %s60
    %p72 = scmp.eq.s32.totalorder %s17, 1
    %p73 = por %p71, %p72
    %p75 = scmp.ne.s32.totalorder %s60, %s74
    %p76 = scmp.eq.s32.totalorder %s17, 0
    %p77 = por %p75, %p76
    %s78 = ssub.s32 %s18, %s30
    %s79 = ssub.s32 %s19, %s26
    %s80 = sor.u32 %s78, %s79
    %p81 = scmp.eq.s32.totalorder %s80, 0
    %s83 = sadd.s32 %s82, 1
    %s84 = scalar_select %p81, %s82, %s83
    %p87 = pneg %p81
    %p88 = scmp.eq.s32.totalorder %s11, 1
    %p89 = por %p87, %p88
    %p90 = scmp.ne.s32.totalorder %s82, %s85
    %p91 = scmp.eq.s32.totalorder %s11, 0
    %p92 = por %p90, %p91
    %p93 = scmp.ne.s32.totalorder %s82, %s85
    %p94 = scmp.eq.s32.totalorder %s16, 1
    %p95 = por %p93, %p94
    %p96 = scmp.ne.s32.totalorder %s85, %s86
    %p97 = scmp.eq.s32.totalorder %s16, 0
    %p98 = por %p96, %p97
    %p99 = scmp.ne.s32.totalorder %s85, %s86
    %p100 = scmp.eq.s32.totalorder %s17, 1
    %p101 = por %p99, %p100
    %p103 = scmp.ne.s32.totalorder %s86, %s102
    %p104 = scmp.eq.s32.totalorder %s17, 0
    %p105 = por %p103, %p104
    %s107 = sadd.s32 %s106, 1
    %p110 = scmp.eq.s32.totalorder %s11, 1
    %p111 = scmp.ne.s32.totalorder %s106, %s108
    %p112 = scmp.eq.s32.totalorder %s11, 0
    %p113 = por %p111, %p112
    %p114 = scmp.ne.s32.totalorder %s106, %s108
    %p115 = scmp.eq.s32.totalorder %s16, 1
    %p116 = por %p114, %p115
    %p117 = scmp.ne.s32.totalorder %s108, %s109
    %p118 = scmp.eq.s32.totalorder %s16, 0
    %p119 = por %p117, %p118
    %p120 = scmp.ne.s32.totalorder %s108, %s109
    %p121 = scmp.eq.s32.totalorder %s17, 1
    %p122 = por %p120, %p121
    %p124 = scmp.ne.s32.totalorder %s109, %s123
    %p125 = scmp.eq.s32.totalorder %s17, 0
    %p126 = por %p124, %p125
    %s128 = sadd.s32 %s127, 1
    %p131 = scmp.eq.s32.totalorder %s11, 1
    %p132 = scmp.ne.s32.totalorder %s127, %s129
    %p133 = scmp.eq.s32.totalorder %s11, 0
    %p134 = por %p132, %p133
    %p135 = scmp.ne.s32.totalorder %s127, %s129
    %p136 = scmp.eq.s32.totalorder %s16, 1
    %p137 = por %p135, %p136
    %p138 = scmp.ne.s32.totalorder %s129, %s130
    %p139 = scmp.eq.s32.totalorder %s16, 0
    %p140 = por %p138, %p139
    %p141 = scmp.ne.s32.totalorder %s129, %s130
    %p142 = scmp.eq.s32.totalorder %s17, 1
    %p143 = por %p141, %p142
    %p145 = scmp.ne.s32.totalorder %s130, %s144
    %p146 = scmp.eq.s32.totalorder %s17, 0
    %p147 = por %p145, %p146
    %p148 = scmp.le.s32.totalorder 1, %s11
    %p149 = scmp.lt.s32.totalorder %s11, 3
    %p150 = pnand %p148, %p149
    %p151 = pneg %p150
    // Predicated region
    $region9: #{fuse_forward.4} parent=5 // pred_check
      _
    $region10: #{fuse_forward.4} parent=5 // pred_check_branch
      %153 = sbr.rel (%p150) target = $region12
    $region11: #{fuse_forward.4} parent=5 // pred_region
      %s154 = ssub.s32 %s11, 1
      // Predicated region
      $region13: #{fuse_forward.4} parent=11 // pred_check
        %p155 = pneg %p70
      $region14: #{fuse_forward.4} parent=11 // pred_check_branch
        %157 = sbr.rel (%p155) target = $region16
      $region15: #{fuse_forward.4} parent=11 // pred_region
        _
      $region16: #{fuse_forward.4} parent=11 // pred_fallthru
        _
    $region12: #{fuse_forward.4} parent=5 // pred_fallthru
      _
    %p158 = scmp.lt.s32.totalorder %s11, 2
    // Predicated region
    $region17: #{fuse_forward.4} parent=5 // pred_check
      %p159 = pneg %p158
    $region18: #{fuse_forward.4} parent=5 // pred_check_branch
      %161 = sbr.rel (%p159) target = $region20
    $region19: #{fuse_forward.4} parent=5 // pred_region
      // Predicated region
      $region21: #{fuse_forward.4} parent=19 // pred_check
        %p162 = pneg %p43
      $region22: #{fuse_forward.4} parent=19 // pred_check_branch
        %164 = sbr.rel (%p162) target = $region24
      $region23: #{fuse_forward.4} parent=19 // pred_region
        %p165 = scmp.lt.s32.totalorder %s18, 1
        %s166 = scalar_select %p165, %s18, 1
        %s167 = smul.addr %s166, 54
        %s168 = smul.addr %s167, 4
        %s169 = scalar_lea.vmem %s0, %s168
      $region24: #{fuse_forward.4} parent=19 // pred_fallthru
        _
    $region20: #{fuse_forward.4} parent=5 // pred_fallthru
      _
    %p170 = scmp.le.s32.totalorder 1, %s11
    %p171 = scmp.lt.s32.totalorder %s11, 3
    %p172 = pnand %p170, %p171
    %p173 = pneg %p172
    // Predicated region
    $region25: #{fuse_forward.4} parent=5 // pred_check
      _
    $region26: #{fuse_forward.4} parent=5 // pred_check_branch
      %175 = sbr.rel (%p172) target = $region28
    $region27: #{fuse_forward.4} parent=5 // pred_region
      %s176 = ssub.s32 %s11, 1
      %p177 = scmp.lt.s32.totalorder %s20, 1
      %s178 = scalar_select %p177, %s20, 1
      %s179 = smul.addr %s178, 54
      %s180 = smul.addr %s179, 4
      %s181 = scalar_lea.vmem %s0, %s180
      %p182 = pneg %p49
      %p183 = pneg %p46
      %p184 = pneg %p70
      %p185 = pneg %p67
      %p186 = pneg %p98
      %p187 = pneg %p95
      %s188 = smul.u32 16, %s21
      %p189 = scmp.lt.s32.totalorder %s20, 1
      %s190 = scalar_select %p189, %s20, 1
      %p191 = scmp.lt.s32.totalorder %s188, 15
      %s192 = scalar_select %p191, %s188, 15
      %s193 = smul.addr %s192, 2
      %s194 = smul.addr %s190, 32
      %s195 = sadd.s32 %s193, %s194
      %s196 = smul.addr %s195, 8
      %s197 = scalar_lea.vmem %s2, %s196
      %p198 = pneg %p119
      %p199 = pneg %p116
      %p200 = pneg %p140
      %p201 = pneg %p137
      %p202 = scmp.lt.s32.totalorder %s20, 1
      %s203 = scalar_select %p202, %s20, 1
      %s204 = smul.addr %s203, 54
      %s205 = smul.addr %s204, 4
      %s206 = scalar_lea.vmem %s0, %s205
      %s207 = smul.u32 16, %s21
      %p208 = scmp.lt.s32.totalorder %s20, 1
      %s209 = scalar_select %p208, %s20, 1
      %p210 = scmp.lt.s32.totalorder %s207, 15
      %s211 = scalar_select %p210, %s207, 15
      %s212 = smul.addr %s211, 2
      %s213 = smul.addr %s209, 32
      %s214 = sadd.s32 %s212, %s213
      %s215 = smul.addr %s214, 8
      %s216 = scalar_lea.vmem %s2, %s215
      %s217 = smul.u32 16, %s21
      %p219 = scmp.eq.s32.totalorder %s20, 0
      %p220 = scmp.eq.s32.totalorder %s21, 0
      %p221 = pnand %p219, %p220
      %p222 = pneg %p221
      // Predicated region
      $region29: #{fuse_forward.4} parent=27 // pred_check
        _
      $region30: #{fuse_forward.4} parent=27 // pred_check_branch
        %224 = sbr.rel (%p221) target = $region32
      $region31: #{fuse_forward.4} parent=27 // pred_region
        %225 = vst [vmem:[%s3] sm:$0x1] 0.0
        %226 = vst [vmem:[%s4] sm:$0x1] 0.0
      $region32: #{fuse_forward.4} parent=27 // pred_fallthru
        _
      %s227 = smul.u32 %s21, 16
      %s228 = smul.u32 %s227, 3
      %s229 = smul.addr %s228, 4
      %s230 = scalar_lea.vmem %s206, %s229
      %v231 = vld [vmem:[%s230] sm:$0xf]
      %v232 = vld [vmem:[%s230 + $0x4] sm:$0xf]
      %v233 = vld [vmem:[%s230 + $0xc] sm:$0xf]
      %v234 = vld [vmem:[%s230 + $0x10] sm:$0xf]
      %v235 = vld [vmem:[%s230 + $0x18] sm:$0xf]
      %v236 = vld [vmem:[%s230 + $0x1c] sm:$0xf]
      %v237 = vld [vmem:[%s230 + $0x24] sm:$0xf]
      %v238 = vld [vmem:[%s230 + $0x28] sm:$0xf]
      %v239 = vld [vmem:[%s230 + $0x30] sm:$0xf]
      %v240 = vld [vmem:[%s230 + $0x34] sm:$0xf]
      %v241 = vld [vmem:[%s230 + $0x3c] sm:$0xf]
      %v242 = vld [vmem:[%s230 + $0x40] sm:$0xf]
      %v243 = vld [vmem:[%s230 + $0x48] sm:$0xf]
      %v244 = vld [vmem:[%s230 + $0x4c] sm:$0xf]
      %v245 = vld [vmem:[%s230 + $0x54] sm:$0xf]
      %v246 = vld [vmem:[%s230 + $0x58] sm:$0xf]
      %v247 = vld [vmem:[%s230 + $0x60] sm:$0xf]
      %v248 = vld [vmem:[%s230 + $0x64] sm:$0xf]
      %v249 = vld [vmem:[%s230 + $0x6c] sm:$0xf]
      %v250 = vld [vmem:[%s230 + $0x70] sm:$0xf]
      %v251 = vld [vmem:[%s230 + $0x78] sm:$0xf]
      %v252 = vld [vmem:[%s230 + $0x7c] sm:$0xf]
      %v253 = vld [vmem:[%s230 + $0x84] sm:$0xf]
      %v254 = vld [vmem:[%s230 + $0x88] sm:$0xf]
      %v255 = vld [vmem:[%s230 + $0x90] sm:$0xf]
      %v256 = vld [vmem:[%s230 + $0x94] sm:$0xf]
      %v257 = vld [vmem:[%s230 + $0x9c] sm:$0xf]
      %v258 = vld [vmem:[%s230 + $0xa0] sm:$0xf]
      %v259 = vld [vmem:[%s230 + $0xa8] sm:$0xf]
      %v260 = vld [vmem:[%s230 + $0xac] sm:$0xf]
      %v261 = vld [vmem:[%s230 + $0xb4] sm:$0xf]
      %v262 = vld [vmem:[%s230 + $0xb8] sm:$0xf]
      %v263 = vld [vmem:[%s1] sm:$0xf]
      %v264 = vld [vmem:[%s1 + $0x4] sm:$0xf]
      %v265 = vld [vmem:[%s1 + $0x8] sm:$0xf]
      %v266 = vld [vmem:[%s1 + $0xc] sm:$0xf]
      %v267 = vld [vmem:[%s1 + $0x10] sm:$0xf]
      %v268 = vld [vmem:[%s1 + $0x14] sm:$0xf]
      %v269 = vld [vmem:[%s1 + $0x18] sm:$0xf]
      %v270 = vld [vmem:[%s1 + $0x1c] sm:$0xf]
      %v271 = vld [vmem:[%s1 + $0x20] sm:$0xf]
      %v272 = vld [vmem:[%s1 + $0x24] sm:$0xf]
      %v273 = vld [vmem:[%s1 + $0x28] sm:$0xf]
      %v274 = vld [vmem:[%s1 + $0x2c] sm:$0xf]
      %v275 = vld [vmem:[%s1 + $0x30] sm:$0xf]
      %v276 = vld [vmem:[%s1 + $0x34] sm:$0xf]
      %v277 = vld [vmem:[%s1 + $0x38] sm:$0xf]
      %v278 = vld [vmem:[%s1 + $0x3c] sm:$0xf]
      %v279 = vld [vmem:[%s230 + $0x8] sm:$0x1]
      %v280 = vld [vmem:[%s230 + $0x14] sm:$0x1]
      %v281 = vld [vmem:[%s230 + $0x20] sm:$0x1]
      %v282 = vld [vmem:[%s230 + $0x2c] sm:$0x1]
      %v283 = vld [vmem:[%s230 + $0x38] sm:$0x1]
      %v284 = vld [vmem:[%s230 + $0x44] sm:$0x1]
      %v285 = vld [vmem:[%s230 + $0x50] sm:$0x1]
      %v286 = vld [vmem:[%s230 + $0x5c] sm:$0x1]
      %v287 = vld [vmem:[%s230 + $0x68] sm:$0x1]
      %v288 = vld [vmem:[%s230 + $0x74] sm:$0x1]
      %v289 = vld [vmem:[%s230 + $0x80] sm:$0x1]
      %v290 = vld [vmem:[%s230 + $0x8c] sm:$0x1]
      %v291 = vld [vmem:[%s230 + $0x98] sm:$0x1]
      %v292 = vld [vmem:[%s230 + $0xa4] sm:$0x1]
      %v293 = vld [vmem:[%s230 + $0xb0] sm:$0x1]
      %v294 = vld [vmem:[%s230 + $0xbc] sm:$0x1]
      %vm295 = vsmask.f32 3328
      %vm296 = vsmask.f32 7440
      %vm297 = vmor %vm295, %vm296
      %v299 = vshrl.u32 %v231, 16
      %v301 = vrot.slane %v299, 4
      %v302 = vshll.u32 %v231, 16
      %v304 = vrot.slane %v302, 5
      %v305 = vor.u32 %v301, %v304
      %v306 = vrot.slane %v305, 4
      %v308 = vshll.u32 %v232, 16
      %v310 = vrot.slane %v308, 5
      %v311 = vsel %vm297, %v306, %v310
      %v312 = vshrl.u32 %v232, 16
      %v314 = vrot.slane %v312, 4
      %v315 = vor.u32 %v314, %v310
      %v316 = vrot.slane %v315, 4
      %v318 = vshll.u32 %v279, 16
      %v320 = vrot.slane %v318, 5
      %v321 = vsel %vm297, %v316, %v320
      %v323 = vshrl.u32 %v233, 16
      %v325 = vrot.slane %v323, 4
      %v326 = vshll.u32 %v233, 16
      %v328 = vrot.slane %v326, 5
      %v329 = vor.u32 %v325, %v328
      %v330 = vrot.slane %v329, 4
      %v332 = vshll.u32 %v234, 16
      %v334 = vrot.slane %v332, 5
      %v335 = vsel %vm297, %v330, %v334
      %v336 = vshrl.u32 %v234, 16
      %v338 = vrot.slane %v336, 4
      %v339 = vor.u32 %v338, %v334
      %v340 = vrot.slane %v339, 4
      %v342 = vshll.u32 %v280, 16
      %v344 = vrot.slane %v342, 5
      %v345 = vsel %vm297, %v340, %v344
      %v347 = vshrl.u32 %v235, 16
      %v349 = vrot.slane %v347, 4
      %v350 = vshll.u32 %v235, 16
      %v352 = vrot.slane %v350, 5
      %v353 = vor.u32 %v349, %v352
      %v354 = vrot.slane %v353, 4
      %v356 = vshll.u32 %v236, 16
      %v358 = vrot.slane %v356, 5
      %v359 = vsel %vm297, %v354, %v358
      %v360 = vshrl.u32 %v236, 16
      %v362 = vrot.slane %v360, 4
      %v363 = vor.u32 %v362, %v358
      %v364 = vrot.slane %v363, 4
      %v366 = vshll.u32 %v281, 16
      %v368 = vrot.slane %v366, 5
      %v369 = vsel %vm297, %v364, %v368
      %v371 = vshrl.u32 %v237, 16
      %v373 = vrot.slane %v371, 4
      %v374 = vshll.u32 %v237, 16
      %v376 = vrot.slane %v374, 5
      %v377 = vor.u32 %v373, %v376
      %v378 = vrot.slane %v377, 4
      %v380 = vshll.u32 %v238, 16
      %v382 = vrot.slane %v380, 5
      %v383 = vsel %vm297, %v378, %v382
      %v384 = vshrl.u32 %v238, 16
      %v386 = vrot.slane %v384, 4
      %v387 = vor.u32 %v386, %v382
      %v388 = vrot.slane %v387, 4
      %v390 = vshll.u32 %v282, 16
      %v392 = vrot.slane %v390, 5
      %v393 = vsel %vm297, %v388, %v392
      %v395 = vshrl.u32 %v239, 16
      %v397 = vrot.slane %v395, 4
      %v398 = vshll.u32 %v239, 16
      %v400 = vrot.slane %v398, 5
      %v401 = vor.u32 %v397, %v400
      %v402 = vrot.slane %v401, 4
      %v404 = vshll.u32 %v240, 16
      %v406 = vrot.slane %v404, 5
      %v407 = vsel %vm297, %v402, %v406
      %v408 = vshrl.u32 %v240, 16
      %v410 = vrot.slane %v408, 4
      %v411 = vor.u32 %v410, %v406
      %v412 = vrot.slane %v411, 4
      %v414 = vshll.u32 %v283, 16
      %v416 = vrot.slane %v414, 5
      %v417 = vsel %vm297, %v412, %v416
      %v419 = vshrl.u32 %v241, 16
      %v421 = vrot.slane %v419, 4
      %v422 = vshll.u32 %v241, 16
      %v424 = vrot.slane %v422, 5
      %v425 = vor.u32 %v421, %v424
      %v426 = vrot.slane %v425, 4
      %v428 = vshll.u32 %v242, 16
      %v430 = vrot.slane %v428, 5
      %v431 = vsel %vm297, %v426, %v430
      %v432 = vshrl.u32 %v242, 16
      %v434 = vrot.slane %v432, 4
      %v435 = vor.u32 %v434, %v430
      %v436 = vrot.slane %v435, 4
      %v438 = vshll.u32 %v284, 16
      %v440 = vrot.slane %v438, 5
      %v441 = vsel %vm297, %v436, %v440
      %v443 = vshrl.u32 %v243, 16
      %v445 = vrot.slane %v443, 4
      %v446 = vshll.u32 %v243, 16
      %v448 = vrot.slane %v446, 5
      %v449 = vor.u32 %v445, %v448
      %v450 = vrot.slane %v449, 4
      %v452 = vshll.u32 %v244, 16
      %v454 = vrot.slane %v452, 5
      %v455 = vsel %vm297, %v450, %v454
      %v456 = vshrl.u32 %v244, 16
      %v458 = vrot.slane %v456, 4
      %v459 = vor.u32 %v458, %v454
      %v460 = vrot.slane %v459, 4
      %v462 = vshll.u32 %v285, 16
      %v464 = vrot.slane %v462, 5
      %v465 = vsel %vm297, %v460, %v464
      %v467 = vshrl.u32 %v245, 16
      %v469 = vrot.slane %v467, 4
      %v470 = vshll.u32 %v245, 16
      %v472 = vrot.slane %v470, 5
      %v473 = vor.u32 %v469, %v472
      %v474 = vrot.slane %v473, 4
      %v476 = vshll.u32 %v246, 16
      %v478 = vrot.slane %v476, 5
      %v479 = vsel %vm297, %v474, %v478
      %v480 = vshrl.u32 %v246, 16
      %v482 = vrot.slane %v480, 4
      %v483 = vor.u32 %v482, %v478
      %v484 = vrot.slane %v483, 4
      %v486 = vshll.u32 %v286, 16
      %v488 = vrot.slane %v486, 5
      %v489 = vsel %vm297, %v484, %v488
      %v491 = vshrl.u32 %v247, 16
      %v493 = vrot.slane %v491, 4
      %v494 = vshll.u32 %v247, 16
      %v496 = vrot.slane %v494, 5
      %v497 = vor.u32 %v493, %v496
      %v498 = vrot.slane %v497, 4
      %v500 = vshll.u32 %v248, 16
      %v502 = vrot.slane %v500, 5
      %v503 = vsel %vm297, %v498, %v502
      %v504 = vshrl.u32 %v248, 16
      %v506 = vrot.slane %v504, 4
      %v507 = vor.u32 %v506, %v502
      %v508 = vrot.slane %v507, 4
      %v510 = vshll.u32 %v287, 16
      %v512 = vrot.slane %v510, 5
      %v513 = vsel %vm297, %v508, %v512
      %v515 = vshrl.u32 %v249, 16
      %v517 = vrot.slane %v515, 4
      %v518 = vshll.u32 %v249, 16
      %v520 = vrot.slane %v518, 5
      %v521 = vor.u32 %v517, %v520
      %v522 = vrot.slane %v521, 4
      %v524 = vshll.u32 %v250, 16
      %v526 = vrot.slane %v524, 5
      %v527 = vsel %vm297, %v522, %v526
      %v528 = vshrl.u32 %v250, 16
      %v530 = vrot.slane %v528, 4
      %v531 = vor.u32 %v530, %v526
      %v532 = vrot.slane %v531, 4
      %v534 = vshll.u32 %v288, 16
      %v536 = vrot.slane %v534, 5
      %v537 = vsel %vm297, %v532, %v536
      %v539 = vshrl.u32 %v251, 16
      %v541 = vrot.slane %v539, 4
      %v542 = vshll.u32 %v251, 16
      %v544 = vrot.slane %v542, 5
      %v545 = vor.u32 %v541, %v544
      %v546 = vrot.slane %v545, 4
      %v548 = vshll.u32 %v252, 16
      %v550 = vrot.slane %v548, 5
      %v551 = vsel %vm297, %v546, %v550
      %v552 = vshrl.u32 %v252, 16
      %v554 = vrot.slane %v552, 4
      %v555 = vor.u32 %v554, %v550
      %v556 = vrot.slane %v555, 4
      %v558 = vshll.u32 %v289, 16
      %v560 = vrot.slane %v558, 5
      %v561 = vsel %vm297, %v556, %v560
      %v563 = vshrl.u32 %v253, 16
      %v565 = vrot.slane %v563, 4
      %v566 = vshll.u32 %v253, 16
      %v568 = vrot.slane %v566, 5
      %v569 = vor.u32 %v565, %v568
      %v570 = vrot.slane %v569, 4
      %v572 = vshll.u32 %v254, 16
      %v574 = vrot.slane %v572, 5
      %v575 = vsel %vm297, %v570, %v574
      %v576 = vshrl.u32 %v254, 16
      %v578 = vrot.slane %v576, 4
      %v579 = vor.u32 %v578, %v574
      %v580 = vrot.slane %v579, 4
      %v582 = vshll.u32 %v290, 16
      %v584 = vrot.slane %v582, 5
      %v585 = vsel %vm297, %v580, %v584
      %v587 = vshrl.u32 %v255, 16
      %v589 = vrot.slane %v587, 4
      %v590 = vshll.u32 %v255, 16
      %v592 = vrot.slane %v590, 5
      %v593 = vor.u32 %v589, %v592
      %v594 = vrot.slane %v593, 4
      %v596 = vshll.u32 %v256, 16
      %v598 = vrot.slane %v596, 5
      %v599 = vsel %vm297, %v594, %v598
      %v600 = vshrl.u32 %v256, 16
      %v602 = vrot.slane %v600, 4
      %v603 = vor.u32 %v602, %v598
      %v604 = vrot.slane %v603, 4
      %v606 = vshll.u32 %v291, 16
      %v608 = vrot.slane %v606, 5
      %v609 = vsel %vm297, %v604, %v608
      %v611 = vshrl.u32 %v257, 16
      %v613 = vrot.slane %v611, 4
      %v614 = vshll.u32 %v257, 16
      %v616 = vrot.slane %v614, 5
      %v617 = vor.u32 %v613, %v616
      %v618 = vrot.slane %v617, 4
      %v620 = vshll.u32 %v258, 16
      %v622 = vrot.slane %v620, 5
      %v623 = vsel %vm297, %v618, %v622
      %v624 = vshrl.u32 %v258, 16
      %v626 = vrot.slane %v624, 4
      %v627 = vor.u32 %v626, %v622
      %v628 = vrot.slane %v627, 4
      %v630 = vshll.u32 %v292, 16
      %v632 = vrot.slane %v630, 5
      %v633 = vsel %vm297, %v628, %v632
      %v635 = vshrl.u32 %v259, 16
      %v637 = vrot.slane %v635, 4
      %v638 = vshll.u32 %v259, 16
      %v640 = vrot.slane %v638, 5
      %v641 = vor.u32 %v637, %v640
      %v642 = vrot.slane %v641, 4
      %v644 = vshll.u32 %v260, 16
      %v646 = vrot.slane %v644, 5
      %v647 = vsel %vm297, %v642, %v646
      %v648 = vshrl.u32 %v260, 16
      %v650 = vrot.slane %v648, 4
      %v651 = vor.u32 %v650, %v646
      %v652 = vrot.slane %v651, 4
      %v654 = vshll.u32 %v293, 16
      %v656 = vrot.slane %v654, 5
      %v657 = vsel %vm297, %v652, %v656
      %v659 = vshrl.u32 %v261, 16
      %v661 = vrot.slane %v659, 4
      %v662 = vshll.u32 %v261, 16
      %v664 = vrot.slane %v662, 5
      %v665 = vor.u32 %v661, %v664
      %v666 = vrot.slane %v665, 4
      %v668 = vshll.u32 %v262, 16
      %v670 = vrot.slane %v668, 5
      %v671 = vsel %vm297, %v666, %v670
      %v672 = vshrl.u32 %v262, 16
      %v674 = vrot.slane %v672, 4
      %v675 = vor.u32 %v674, %v670
      %v676 = vrot.slane %v675, 4
      %v678 = vshll.u32 %v294, 16
      %v680 = vrot.slane %v678, 5
      %v681 = vsel %vm297, %v676, %v680
      %s682 = scalar_lea.vmem %s1, 64
      %v683 = vld [vmem:[%s682] sm:$0xf]
      %v684 = vld [vmem:[%s682 + $0x4] sm:$0xf]
      %v685 = vld [vmem:[%s682 + $0x8] sm:$0xf]
      %v686 = vld [vmem:[%s682 + $0xc] sm:$0xf]
      %v687 = vld [vmem:[%s682 + $0x10] sm:$0xf]
      %v688 = vld [vmem:[%s682 + $0x14] sm:$0xf]
      %v689 = vld [vmem:[%s682 + $0x18] sm:$0xf]
      %v690 = vld [vmem:[%s682 + $0x1c] sm:$0xf]
      %v691 = vld [vmem:[%s682 + $0x20] sm:$0xf]
      %v692 = vld [vmem:[%s682 + $0x24] sm:$0xf]
      %v693 = vld [vmem:[%s682 + $0x28] sm:$0xf]
      %v694 = vld [vmem:[%s682 + $0x2c] sm:$0xf]
      %v695 = vld [vmem:[%s682 + $0x30] sm:$0xf]
      %v696 = vld [vmem:[%s682 + $0x34] sm:$0xf]
      %v697 = vld [vmem:[%s682 + $0x38] sm:$0xf]
      %v698 = vld [vmem:[%s682 + $0x3c] sm:$0xf]
      %v699 = vunpack.c.l.b16 %v311
      %v700 = vunpack.c.l.b16 %v321
      %v701 = vunpack.c.l.b16 %v335
      %v702 = vunpack.c.l.b16 %v345
      %v703 = vunpack.c.l.b16 %v359
      %v704 = vunpack.c.l.b16 %v369
      %v705 = vunpack.c.l.b16 %v383
      %v706 = vunpack.c.l.b16 %v393
      %v707 = vunpack.c.l.b16 %v407
      %v708 = vunpack.c.l.b16 %v417
      %v709 = vunpack.c.l.b16 %v431
      %v710 = vunpack.c.l.b16 %v441
      %v711 = vunpack.c.l.b16 %v455
      %v712 = vunpack.c.l.b16 %v465
      %v713 = vunpack.c.l.b16 %v479
      %v714 = vunpack.c.l.b16 %v489
      %v715 = vunpack.c.l.b16 %v503
      %v716 = vunpack.c.l.b16 %v513
      %v717 = vunpack.c.l.b16 %v527
      %v718 = vunpack.c.l.b16 %v537
      %v719 = vunpack.c.l.b16 %v551
      %v720 = vunpack.c.l.b16 %v561
      %v721 = vunpack.c.l.b16 %v575
      %v722 = vunpack.c.l.b16 %v585
      %v723 = vunpack.c.l.b16 %v599
      %v724 = vunpack.c.l.b16 %v609
      %v725 = vunpack.c.l.b16 %v623
      %v726 = vunpack.c.l.b16 %v633
      %v727 = vunpack.c.l.b16 %v647
      %v728 = vunpack.c.l.b16 %v657
      %v729 = vunpack.c.l.b16 %v671
      %v730 = vunpack.c.l.b16 %v681
      %v731 = vpack.c.b16 %v700, %v699
      %v732 = vpack.c.b16 %v702, %v701
      %v733 = vpack.c.b16 %v704, %v703
      %v734 = vpack.c.b16 %v706, %v705
      %v735 = vpack.c.b16 %v708, %v707
      %v736 = vpack.c.b16 %v710, %v709
      %v737 = vpack.c.b16 %v712, %v711
      %v738 = vpack.c.b16 %v714, %v713
      %v739 = vpack.c.b16 %v716, %v715
      %v740 = vpack.c.b16 %v718, %v717
      %v741 = vpack.c.b16 %v720, %v719
      %v742 = vpack.c.b16 %v722, %v721
      %v743 = vpack.c.b16 %v724, %v723
      %v744 = vpack.c.b16 %v726, %v725
      %v745 = vpack.c.b16 %v728, %v727
      %v746 = vpack.c.b16 %v730, %v729
      %v779 = vunpack.c.l.b16 %v683
      %v780 = vunpack.c.l.b16 %v684
      %v781 = vunpack.c.l.b16 %v685
      %v782 = vunpack.c.l.b16 %v686
      %v783 = vunpack.c.l.b16 %v687
      %v784 = vunpack.c.l.b16 %v688
      %v785 = vunpack.c.l.b16 %v689
      %v786 = vunpack.c.l.b16 %v690
      %v787 = vunpack.c.l.b16 %v691
      %v788 = vunpack.c.l.b16 %v692
      %v789 = vunpack.c.l.b16 %v693
      %v790 = vunpack.c.l.b16 %v694
      %v791 = vunpack.c.l.b16 %v695
      %v792 = vunpack.c.l.b16 %v696
      %v793 = vunpack.c.l.b16 %v697
      %v794 = vunpack.c.l.b16 %v698
      %v795 = vpack.c.b16 %v780, %v779
      %v796 = vpack.c.b16 %v782, %v781
      %v797 = vpack.c.b16 %v784, %v783
      %v798 = vpack.c.b16 %v786, %v785
      %v799 = vpack.c.b16 %v788, %v787
      %v800 = vpack.c.b16 %v790, %v789
      %v801 = vpack.c.b16 %v792, %v791
      %v802 = vpack.c.b16 %v794, %v793
      %811 = vmatprep.subr.bf16.mxu0 0
      %812 = vmatpush1.bf16.msra.mxu0 %v802
      %813 = vmatprep.subr.bf16.mxu0 0
      %814 = vmatpush1.bf16.msra.mxu0 %v801
      %815 = vmatprep.subr.bf16.mxu0 0
      %816 = vmatpush1.bf16.msra.mxu0 %v800
      %817 = vmatprep.subr.bf16.mxu0 0
      %818 = vmatpush1.bf16.msra.mxu0 %v799
      %819 = vmatprep.subr.bf16.mxu0 0
      %820 = vmatpush1.bf16.msra.mxu0 %v798
      %821 = vmatprep.subr.bf16.mxu0 0
      %822 = vmatpush1.bf16.msra.mxu0 %v797
      %823 = vmatprep.subr.bf16.mxu0 0
      %824 = vmatpush1.bf16.msra.mxu0 %v796
      %825 = vmatprep.subr.bf16.mxu0 0
      %826 = vmatpush1.bf16.msra.mxu0 %v795
      %827 = vmatprep.subr.bf16.mxu0 0
      %828 = vmatpush2.bf16.msra.mxu0 0
      %829 = vmatprep.subr.bf16.mxu0 0
      %830 = vmatpush2.bf16.msra.mxu0 0
      %831 = vmatprep.subr.bf16.mxu0 0
      %832 = vmatpush2.bf16.msra.mxu0 0
      %833 = vmatprep.subr.bf16.mxu0 0
      %834 = vmatpush2.bf16.msra.mxu0 0
      %835 = vmatprep.subr.bf16.mxu0 0
      %836 = vmatpush2.bf16.msra.mxu0 0
      %837 = vmatprep.subr.bf16.mxu0 0
      %838 = vmatpush2.bf16.msra.mxu0 0
      %839 = vmatprep.subr.bf16.mxu0 0
      %840 = vmatpush2.bf16.msra.mxu0 0
      %841 = vmatprep.subr.bf16.mxu0 0
      %842 = vmatpush2.bf16.msra.mxu0 0
      %843 = vmatprep.mubr.bf16.mxu0 0
      %844 = vmatmul.mubr.bf16.gmra.mxu0 %v731
      %v845 = vpop.f32.mrf.mxu0
      %v846 = vadd.f32 0.0, %v845
      %v847 = vpop.f32.mrf.mxu0
      %v848 = vpop.f32.mrf.mxu0
      %v849 = vadd.f32 0.0, %v848
      %v850 = vpop.f32.mrf.mxu0
      %851 = vmatprep.mubr.bf16.mxu0 0
      %852 = vmatmul.mubr.bf16.gmra.mxu0 %v732
      %v853 = vpop.f32.mrf.mxu0
      %v854 = vadd.f32 0.0, %v853
      %v855 = vpop.f32.mrf.mxu0
      %v856 = vpop.f32.mrf.mxu0
      %v857 = vadd.f32 0.0, %v856
      %v858 = vpop.f32.mrf.mxu0
      %859 = vmatprep.mubr.bf16.mxu0 0
      %860 = vmatmul.mubr.bf16.gmra.mxu0 %v733
      %v861 = vpop.f32.mrf.mxu0
      %v862 = vadd.f32 0.0, %v861
      %v863 = vpop.f32.mrf.mxu0
      %v864 = vpop.f32.mrf.mxu0
      %v865 = vadd.f32 0.0, %v864
      %v866 = vpop.f32.mrf.mxu0
      %867 = vmatprep.mubr.bf16.mxu0 0
      %868 = vmatmul.mubr.bf16.gmra.mxu0 %v734
      %v869 = vpop.f32.mrf.mxu0
      %v870 = vadd.f32 0.0, %v869
      %v871 = vpop.f32.mrf.mxu0
      %v872 = vpop.f32.mrf.mxu0
      %v873 = vadd.f32 0.0, %v872
      %v874 = vpop.f32.mrf.mxu0
      %875 = vmatprep.mubr.bf16.mxu0 0
      %876 = vmatmul.mubr.bf16.gmra.mxu0 %v735
      %v877 = vpop.f32.mrf.mxu0
      %v878 = vadd.f32 0.0, %v877
      %v879 = vpop.f32.mrf.mxu0
      %v880 = vpop.f32.mrf.mxu0
      %v881 = vadd.f32 0.0, %v880
      %v882 = vpop.f32.mrf.mxu0
      %883 = vmatprep.mubr.bf16.mxu0 0
      %884 = vmatmul.mubr.bf16.gmra.mxu0 %v736
      %v885 = vpop.f32.mrf.mxu0
      %v886 = vadd.f32 0.0, %v885
      %v887 = vpop.f32.mrf.mxu0
      %v888 = vpop.f32.mrf.mxu0
      %v889 = vadd.f32 0.0, %v888
      %v890 = vpop.f32.mrf.mxu0
      %891 = vmatprep.mubr.bf16.mxu0 0
      %892 = vmatmul.mubr.bf16.gmra.mxu0 %v737
      %v893 = vpop.f32.mrf.mxu0
      %v894 = vadd.f32 0.0, %v893
      %v895 = vpop.f32.mrf.mxu0
      %v896 = vpop.f32.mrf.mxu0
      %v897 = vadd.f32 0.0, %v896
      %v898 = vpop.f32.mrf.mxu0
      %899 = vmatprep.mubr.bf16.mxu0 0
      %900 = vmatmul.mubr.bf16.gmra.mxu0 %v738
      %v901 = vpop.f32.mrf.mxu0
      %v902 = vadd.f32 0.0, %v901
      %v903 = vpop.f32.mrf.mxu0
      %v904 = vpop.f32.mrf.mxu0
      %v905 = vadd.f32 0.0, %v904
      %v906 = vpop.f32.mrf.mxu0
      %907 = vmatprep.mubr.bf16.mxu0 0
      %908 = vmatmul.mubr.bf16.gmra.mxu0 %v739
      %v909 = vpop.f32.mrf.mxu0
      %v910 = vadd.f32 0.0, %v909
      %v911 = vpop.f32.mrf.mxu0
      %v912 = vpop.f32.mrf.mxu0
      %v913 = vadd.f32 0.0, %v912
      %v914 = vpop.f32.mrf.mxu0
      %915 = vmatprep.mubr.bf16.mxu0 0
      %916 = vmatmul.mubr.bf16.gmra.mxu0 %v740
      %v917 = vpop.f32.mrf.mxu0
      %v918 = vadd.f32 0.0, %v917
      %v919 = vpop.f32.mrf.mxu0
      %v920 = vpop.f32.mrf.mxu0
      %v921 = vadd.f32 0.0, %v920
      %v922 = vpop.f32.mrf.mxu0
      %923 = vmatprep.mubr.bf16.mxu0 0
      %924 = vmatmul.mubr.bf16.gmra.mxu0 %v741
      %v925 = vpop.f32.mrf.mxu0
      %v926 = vadd.f32 0.0, %v925
      %v927 = vpop.f32.mrf.mxu0
      %v928 = vpop.f32.mrf.mxu0
      %v929 = vadd.f32 0.0, %v928
      %v930 = vpop.f32.mrf.mxu0
      %931 = vmatprep.mubr.bf16.mxu0 0
      %932 = vmatmul.mubr.bf16.gmra.mxu0 %v742
      %v933 = vpop.f32.mrf.mxu0
      %v934 = vadd.f32 0.0, %v933
      %v935 = vpop.f32.mrf.mxu0
      %v936 = vpop.f32.mrf.mxu0
      %v937 = vadd.f32 0.0, %v936
      %v938 = vpop.f32.mrf.mxu0
      %939 = vmatprep.mubr.bf16.mxu0 0
      %940 = vmatmul.mubr.bf16.gmra.mxu0 %v743
      %v941 = vpop.f32.mrf.mxu0
      %v942 = vadd.f32 0.0, %v941
      %v943 = vpop.f32.mrf.mxu0
      %v944 = vpop.f32.mrf.mxu0
      %v945 = vadd.f32 0.0, %v944
      %v946 = vpop.f32.mrf.mxu0
      %947 = vmatprep.mubr.bf16.mxu0 0
      %948 = vmatmul.mubr.bf16.gmra.mxu0 %v744
      %v949 = vpop.f32.mrf.mxu0
      %v950 = vadd.f32 0.0, %v949
      %v951 = vpop.f32.mrf.mxu0
      %v952 = vpop.f32.mrf.mxu0
      %v953 = vadd.f32 0.0, %v952
      %v954 = vpop.f32.mrf.mxu0
      %955 = vmatprep.mubr.bf16.mxu0 0
      %956 = vmatmul.mubr.bf16.gmra.mxu0 %v745
      %v957 = vpop.f32.mrf.mxu0
      %v958 = vadd.f32 0.0, %v957
      %v959 = vpop.f32.mrf.mxu0
      %v960 = vpop.f32.mrf.mxu0
      %v961 = vadd.f32 0.0, %v960
      %v962 = vpop.f32.mrf.mxu0
      %963 = vmatprep.mubr.bf16.mxu0 0
      %964 = vmatmul.mubr.bf16.gmra.mxu0 %v746
      %v965 = vpop.f32.mrf.mxu0
      %v966 = vadd.f32 0.0, %v965
      %v967 = vpop.f32.mrf.mxu0
      %v968 = vpop.f32.mrf.mxu0
      %v969 = vadd.f32 0.0, %v968
      %v970 = vpop.f32.mrf.mxu0
      %971 = vdwg.mxu0
      %v1004 = vunpack.c.l.b16 %v231
      %v1005 = vunpack.c.l.b16 %v232
      %v1006 = vunpack.c.l.b16 %v233
      %v1007 = vunpack.c.l.b16 %v234
      %v1008 = vunpack.c.l.b16 %v235
      %v1009 = vunpack.c.l.b16 %v236
      %v1010 = vunpack.c.l.b16 %v237
      %v1011 = vunpack.c.l.b16 %v238
      %v1012 = vunpack.c.l.b16 %v239
      %v1013 = vunpack.c.l.b16 %v240
      %v1014 = vunpack.c.l.b16 %v241
      %v1015 = vunpack.c.l.b16 %v242
      %v1016 = vunpack.c.l.b16 %v243
      %v1017 = vunpack.c.l.b16 %v244
      %v1018 = vunpack.c.l.b16 %v245
      %v1019 = vunpack.c.l.b16 %v246
      %v1020 = vunpack.c.l.b16 %v247
      %v1021 = vunpack.c.l.b16 %v248
      %v1022 = vunpack.c.l.b16 %v249
      %v1023 = vunpack.c.l.b16 %v250
      %v1024 = vunpack.c.l.b16 %v251
      %v1025 = vunpack.c.l.b16 %v252
      %v1026 = vunpack.c.l.b16 %v253
      %v1027 = vunpack.c.l.b16 %v254
      %v1028 = vunpack.c.l.b16 %v255
      %v1029 = vunpack.c.l.b16 %v256
      %v1030 = vunpack.c.l.b16 %v257
      %v1031 = vunpack.c.l.b16 %v258
      %v1032 = vunpack.c.l.b16 %v259
      %v1033 = vunpack.c.l.b16 %v260
      %v1034 = vunpack.c.l.b16 %v261
      %v1035 = vunpack.c.l.b16 %v262
      %v1036 = vpack.c.b16 %v1005, %v1004
      %v1037 = vpack.c.b16 %v1007, %v1006
      %v1038 = vpack.c.b16 %v1009, %v1008
      %v1039 = vpack.c.b16 %v1011, %v1010
      %v1040 = vpack.c.b16 %v1013, %v1012
      %v1041 = vpack.c.b16 %v1015, %v1014
      %v1042 = vpack.c.b16 %v1017, %v1016
      %v1043 = vpack.c.b16 %v1019, %v1018
      %v1044 = vpack.c.b16 %v1021, %v1020
      %v1045 = vpack.c.b16 %v1023, %v1022
      %v1046 = vpack.c.b16 %v1025, %v1024
      %v1047 = vpack.c.b16 %v1027, %v1026
      %v1048 = vpack.c.b16 %v1029, %v1028
      %v1049 = vpack.c.b16 %v1031, %v1030
      %v1050 = vpack.c.b16 %v1033, %v1032
      %v1051 = vpack.c.b16 %v1035, %v1034
      %v1084 = vunpack.c.l.b16 %v263
      %v1085 = vunpack.c.l.b16 %v264
      %v1086 = vunpack.c.l.b16 %v265
      %v1087 = vunpack.c.l.b16 %v266
      %v1088 = vunpack.c.l.b16 %v267
      %v1089 = vunpack.c.l.b16 %v268
      %v1090 = vunpack.c.l.b16 %v269
      %v1091 = vunpack.c.l.b16 %v270
      %v1092 = vunpack.c.l.b16 %v271
      %v1093 = vunpack.c.l.b16 %v272
      %v1094 = vunpack.c.l.b16 %v273
      %v1095 = vunpack.c.l.b16 %v274
      %v1096 = vunpack.c.l.b16 %v275
      %v1097 = vunpack.c.l.b16 %v276
      %v1098 = vunpack.c.l.b16 %v277
      %v1099 = vunpack.c.l.b16 %v278
      %v1100 = vpack.c.b16 %v1085, %v1084
      %v1101 = vpack.c.b16 %v1087, %v1086
      %v1102 = vpack.c.b16 %v1089, %v1088
      %v1103 = vpack.c.b16 %v1091, %v1090
      %v1104 = vpack.c.b16 %v1093, %v1092
      %v1105 = vpack.c.b16 %v1095, %v1094
      %v1106 = vpack.c.b16 %v1097, %v1096
      %v1107 = vpack.c.b16 %v1099, %v1098
      %1116 = vmatprep.subr.bf16.mxu0 0
      %1117 = vmatpush1.bf16.msra.mxu0 %v1107
      %1118 = vmatprep.subr.bf16.mxu0 0
      %1119 = vmatpush1.bf16.msra.mxu0 %v1106
      %1120 = vmatprep.subr.bf16.mxu0 0
      %1121 = vmatpush1.bf16.msra.mxu0 %v1105
      %1122 = vmatprep.subr.bf16.mxu0 0
      %1123 = vmatpush1.bf16.msra.mxu0 %v1104
      %1124 = vmatprep.subr.bf16.mxu0 0
      %1125 = vmatpush1.bf16.msra.mxu0 %v1103
      %1126 = vmatprep.subr.bf16.mxu0 0
      %1127 = vmatpush1.bf16.msra.mxu0 %v1102
      %1128 = vmatprep.subr.bf16.mxu0 0
      %1129 = vmatpush1.bf16.msra.mxu0 %v1101
      %1130 = vmatprep.subr.bf16.mxu0 0
      %1131 = vmatpush1.bf16.msra.mxu0 %v1100
      %1132 = vmatprep.subr.bf16.mxu0 0
      %1133 = vmatpush2.bf16.msra.mxu0 0
      %1134 = vmatprep.subr.bf16.mxu0 0
      %1135 = vmatpush2.bf16.msra.mxu0 0
      %1136 = vmatprep.subr.bf16.mxu0 0
      %1137 = vmatpush2.bf16.msra.mxu0 0
      %1138 = vmatprep.subr.bf16.mxu0 0
      %1139 = vmatpush2.bf16.msra.mxu0 0
      %1140 = vmatprep.subr.bf16.mxu0 0
      %1141 = vmatpush2.bf16.msra.mxu0 0
      %1142 = vmatprep.subr.bf16.mxu0 0
      %1143 = vmatpush2.bf16.msra.mxu0 0
      %1144 = vmatprep.subr.bf16.mxu0 0
      %1145 = vmatpush2.bf16.msra.mxu0 0
      %1146 = vmatprep.subr.bf16.mxu0 0
      %1147 = vmatpush2.bf16.msra.mxu0 0
      %1148 = vmatprep.mubr.bf16.mxu0 0
      %1149 = vmatmul.mubr.bf16.gmra.mxu0 %v1036
      %v1150 = vpop.f32.mrf.mxu0
      %v1151 = vadd.f32 %v846, %v1150
      %v1152 = vpop.f32.mrf.mxu0
      %v1153 = vpop.f32.mrf.mxu0
      %v1154 = vadd.f32 %v849, %v1153
      %v1155 = vpop.f32.mrf.mxu0
      %1156 = vmatprep.mubr.bf16.mxu0 0
      %1157 = vmatmul.mubr.bf16.gmra.mxu0 %v1037
      %v1158 = vpop.f32.mrf.mxu0
      %v1159 = vadd.f32 %v854, %v1158
      %v1160 = vpop.f32.mrf.mxu0
      %v1161 = vpop.f32.mrf.mxu0
      %v1162 = vadd.f32 %v857, %v1161
      %v1163 = vpop.f32.mrf.mxu0
      %1164 = vmatprep.mubr.bf16.mxu0 0
      %1165 = vmatmul.mubr.bf16.gmra.mxu0 %v1038
      %v1166 = vpop.f32.mrf.mxu0
      %v1167 = vadd.f32 %v862, %v1166
      %v1168 = vpop.f32.mrf.mxu0
      %v1169 = vpop.f32.mrf.mxu0
      %v1170 = vadd.f32 %v865, %v1169
      %v1171 = vpop.f32.mrf.mxu0
      %1172 = vmatprep.mubr.bf16.mxu0 0
      %1173 = vmatmul.mubr.bf16.gmra.mxu0 %v1039
      %v1174 = vpop.f32.mrf.mxu0
      %v1175 = vadd.f32 %v870, %v1174
      %v1176 = vpop.f32.mrf.mxu0
      %v1177 = vpop.f32.mrf.mxu0
      %v1178 = vadd.f32 %v873, %v1177
      %v1179 = vpop.f32.mrf.mxu0
      %1180 = vmatprep.mubr.bf16.mxu0 0
      %1181 = vmatmul.mubr.bf16.gmra.mxu0 %v1040
      %v1182 = vpop.f32.mrf.mxu0
      %v1183 = vadd.f32 %v878, %v1182
      %v1184 = vpop.f32.mrf.mxu0
      %v1185 = vpop.f32.mrf.mxu0
      %v1186 = vadd.f32 %v881, %v1185
      %v1187 = vpop.f32.mrf.mxu0
      %1188 = vmatprep.mubr.bf16.mxu0 0
      %1189 = vmatmul.mubr.bf16.gmra.mxu0 %v1041
      %v1190 = vpop.f32.mrf.mxu0
      %v1191 = vadd.f32 %v886, %v1190
      %v1192 = vpop.f32.mrf.mxu0
      %v1193 = vpop.f32.mrf.mxu0
      %v1194 = vadd.f32 %v889, %v1193
      %v1195 = vpop.f32.mrf.mxu0
      %1196 = vmatprep.mubr.bf16.mxu0 0
      %1197 = vmatmul.mubr.bf16.gmra.mxu0 %v1042
      %v1198 = vpop.f32.mrf.mxu0
      %v1199 = vadd.f32 %v894, %v1198
      %v1200 = vpop.f32.mrf.mxu0
      %v1201 = vpop.f32.mrf.mxu0
      %v1202 = vadd.f32 %v897, %v1201
      %v1203 = vpop.f32.mrf.mxu0
      %1204 = vmatprep.mubr.bf16.mxu0 0
      %1205 = vmatmul.mubr.bf16.gmra.mxu0 %v1043
      %v1206 = vpop.f32.mrf.mxu0
      %v1207 = vadd.f32 %v902, %v1206
      %v1208 = vpop.f32.mrf.mxu0
      %v1209 = vpop.f32.mrf.mxu0
      %v1210 = vadd.f32 %v905, %v1209
      %v1211 = vpop.f32.mrf.mxu0
      %1212 = vmatprep.mubr.bf16.mxu0 0
      %1213 = vmatmul.mubr.bf16.gmra.mxu0 %v1044
      %v1214 = vpop.f32.mrf.mxu0
      %v1215 = vadd.f32 %v910, %v1214
      %v1216 = vpop.f32.mrf.mxu0
      %v1217 = vpop.f32.mrf.mxu0
      %v1218 = vadd.f32 %v913, %v1217
      %v1219 = vpop.f32.mrf.mxu0
      %1220 = vmatprep.mubr.bf16.mxu0 0
      %1221 = vmatmul.mubr.bf16.gmra.mxu0 %v1045
      %v1222 = vpop.f32.mrf.mxu0
      %v1223 = vadd.f32 %v918, %v1222
      %v1224 = vpop.f32.mrf.mxu0
      %v1225 = vpop.f32.mrf.mxu0
      %v1226 = vadd.f32 %v921, %v1225
      %v1227 = vpop.f32.mrf.mxu0
      %1228 = vmatprep.mubr.bf16.mxu0 0
      %1229 = vmatmul.mubr.bf16.gmra.mxu0 %v1046
      %v1230 = vpop.f32.mrf.mxu0
      %v1231 = vadd.f32 %v926, %v1230
      %v1232 = vpop.f32.mrf.mxu0
      %v1233 = vpop.f32.mrf.mxu0
      %v1234 = vadd.f32 %v929, %v1233
      %v1235 = vpop.f32.mrf.mxu0
      %1236 = vmatprep.mubr.bf16.mxu0 0
      %1237 = vmatmul.mubr.bf16.gmra.mxu0 %v1047
      %v1238 = vpop.f32.mrf.mxu0
      %v1239 = vadd.f32 %v934, %v1238
      %v1240 = vpop.f32.mrf.mxu0
      %v1241 = vpop.f32.mrf.mxu0
      %v1242 = vadd.f32 %v937, %v1241
      %v1243 = vpop.f32.mrf.mxu0
      %1244 = vmatprep.mubr.bf16.mxu0 0
      %1245 = vmatmul.mubr.bf16.gmra.mxu0 %v1048
      %v1246 = vpop.f32.mrf.mxu0
      %v1247 = vadd.f32 %v942, %v1246
      %v1248 = vpop.f32.mrf.mxu0
      %v1249 = vpop.f32.mrf.mxu0
      %v1250 = vadd.f32 %v945, %v1249
      %v1251 = vpop.f32.mrf.mxu0
      %1252 = vmatprep.mubr.bf16.mxu0 0
      %1253 = vmatmul.mubr.bf16.gmra.mxu0 %v1049
      %v1254 = vpop.f32.mrf.mxu0
      %v1255 = vadd.f32 %v950, %v1254
      %v1256 = vpop.f32.mrf.mxu0
      %v1257 = vpop.f32.mrf.mxu0
      %v1258 = vadd.f32 %v953, %v1257
      %v1259 = vpop.f32.mrf.mxu0
      %1260 = vmatprep.mubr.bf16.mxu0 0
      %1261 = vmatmul.mubr.bf16.gmra.mxu0 %v1050
      %v1262 = vpop.f32.mrf.mxu0
      %v1263 = vadd.f32 %v958, %v1262
      %v1264 = vpop.f32.mrf.mxu0
      %v1265 = vpop.f32.mrf.mxu0
      %v1266 = vadd.f32 %v961, %v1265
      %v1267 = vpop.f32.mrf.mxu0
      %1268 = vmatprep.mubr.bf16.mxu0 0
      %1269 = vmatmul.mubr.bf16.gmra.mxu0 %v1051
      %v1270 = vpop.f32.mrf.mxu0
      %v1271 = vadd.f32 %v966, %v1270
      %v1272 = vpop.f32.mrf.mxu0
      %v1273 = vpop.f32.mrf.mxu0
      %v1274 = vadd.f32 %v969, %v1273
      %v1275 = vpop.f32.mrf.mxu0
      %1276 = vdwg.mxu0
      %v1277 = vld [vmem:[%s230] sm:$0xe]
      %v1278 = vld [vmem:[%s230 + $0xc] sm:$0xe]
      %v1279 = vld [vmem:[%s230 + $0x18] sm:$0xe]
      %v1280 = vld [vmem:[%s230 + $0x24] sm:$0xe]
      %v1281 = vld [vmem:[%s230 + $0x30] sm:$0xe]
      %v1282 = vld [vmem:[%s230 + $0x3c] sm:$0xe]
      %v1283 = vld [vmem:[%s230 + $0x48] sm:$0xe]
      %v1284 = vld [vmem:[%s230 + $0x54] sm:$0xe]
      %v1285 = vld [vmem:[%s230 + $0x60] sm:$0xe]
      %v1286 = vld [vmem:[%s230 + $0x6c] sm:$0xe]
      %v1287 = vld [vmem:[%s230 + $0x78] sm:$0xe]
      %v1288 = vld [vmem:[%s230 + $0x84] sm:$0xe]
      %v1289 = vld [vmem:[%s230 + $0x90] sm:$0xe]
      %v1290 = vld [vmem:[%s230 + $0x9c] sm:$0xe]
      %v1291 = vld [vmem:[%s230 + $0xa8] sm:$0xe]
      %v1292 = vld [vmem:[%s230 + $0xb4] sm:$0xe]
      %vm1325 = vcmask 1042432
      %vm1326 = vcmask 1046532
      %vm1327 = vmor %vm1325, %vm1326
      %v1328 = vrot.slane %v1277, 5
      %v1329 = vrot.slane %v1328, 4
      %v1330 = vrot.slane %v232, 5
      %v1331 = vsel %vm1327, %v1329, %v1330
      %v1332 = vrot.slane %v1330, 4
      %v1333 = vrot.slane %v279, 5
      %v1334 = vsel %vm1327, %v1332, %v1333
      %v1335 = vrot.slane %v1278, 5
      %v1336 = vrot.slane %v1335, 4
      %v1337 = vrot.slane %v234, 5
      %v1338 = vsel %vm1327, %v1336, %v1337
      %v1339 = vrot.slane %v1337, 4
      %v1340 = vrot.slane %v280, 5
      %v1341 = vsel %vm1327, %v1339, %v1340
      %v1342 = vrot.slane %v1279, 5
      %v1343 = vrot.slane %v1342, 4
      %v1344 = vrot.slane %v236, 5
      %v1345 = vsel %vm1327, %v1343, %v1344
      %v1346 = vrot.slane %v1344, 4
      %v1347 = vrot.slane %v281, 5
      %v1348 = vsel %vm1327, %v1346, %v1347
      %v1349 = vrot.slane %v1280, 5
      %v1350 = vrot.slane %v1349, 4
      %v1351 = vrot.slane %v238, 5
      %v1352 = vsel %vm1327, %v1350, %v1351
      %v1353 = vrot.slane %v1351, 4
      %v1354 = vrot.slane %v282, 5
      %v1355 = vsel %vm1327, %v1353, %v1354
      %v1356 = vrot.slane %v1281, 5
      %v1357 = vrot.slane %v1356, 4
      %v1358 = vrot.slane %v240, 5
      %v1359 = vsel %vm1327, %v1357, %v1358
      %v1360 = vrot.slane %v1358, 4
      %v1361 = vrot.slane %v283, 5
      %v1362 = vsel %vm1327, %v1360, %v1361
      %v1363 = vrot.slane %v1282, 5
      %v1364 = vrot.slane %v1363, 4
      %v1365 = vrot.slane %v242, 5
      %v1366 = vsel %vm1327, %v1364, %v1365
      %v1367 = vrot.slane %v1365, 4
      %v1368 = vrot.slane %v284, 5
      %v1369 = vsel %vm1327, %v1367, %v1368
      %v1370 = vrot.slane %v1283, 5
      %v1371 = vrot.slane %v1370, 4
      %v1372 = vrot.slane %v244, 5
      %v1373 = vsel %vm1327, %v1371, %v1372
      %v1374 = vrot.slane %v1372, 4
      %v1375 = vrot.slane %v285, 5
      %v1376 = vsel %vm1327, %v1374, %v1375
      %v1377 = vrot.slane %v1284, 5
      %v1378 = vrot.slane %v1377, 4
      %v1379 = vrot.slane %v246, 5
      %v1380 = vsel %vm1327, %v1378, %v1379
      %v1381 = vrot.slane %v1379, 4
      %v1382 = vrot.slane %v286, 5
      %v1383 = vsel %vm1327, %v1381, %v1382
      %v1384 = vrot.slane %v1285, 5
      %v1385 = vrot.slane %v1384, 4
      %v1386 = vrot.slane %v248, 5
      %v1387 = vsel %vm1327, %v1385, %v1386
      %v1388 = vrot.slane %v1386, 4
      %v1389 = vrot.slane %v287, 5
      %v1390 = vsel %vm1327, %v1388, %v1389
      %v1391 = vrot.slane %v1286, 5
      %v1392 = vrot.slane %v1391, 4
      %v1393 = vrot.slane %v250, 5
      %v1394 = vsel %vm1327, %v1392, %v1393
      %v1395 = vrot.slane %v1393, 4
      %v1396 = vrot.slane %v288, 5
      %v1397 = vsel %vm1327, %v1395, %v1396
      %v1398 = vrot.slane %v1287, 5
      %v1399 = vrot.slane %v1398, 4
      %v1400 = vrot.slane %v252, 5
      %v1401 = vsel %vm1327, %v1399, %v1400
      %v1402 = vrot.slane %v1400, 4
      %v1403 = vrot.slane %v289, 5
      %v1404 = vsel %vm1327, %v1402, %v1403
      %v1405 = vrot.slane %v1288, 5
      %v1406 = vrot.slane %v1405, 4
      %v1407 = vrot.slane %v254, 5
      %v1408 = vsel %vm1327, %v1406, %v1407
      %v1409 = vrot.slane %v1407, 4
      %v1410 = vrot.slane %v290, 5
      %v1411 = vsel %vm1327, %v1409, %v1410
      %v1412 = vrot.slane %v1289, 5
      %v1413 = vrot.slane %v1412, 4
      %v1414 = vrot.slane %v256, 5
      %v1415 = vsel %vm1327, %v1413, %v1414
      %v1416 = vrot.slane %v1414, 4
      %v1417 = vrot.slane %v291, 5
      %v1418 = vsel %vm1327, %v1416, %v1417
      %v1419 = vrot.slane %v1290, 5
      %v1420 = vrot.slane %v1419, 4
      %v1421 = vrot.slane %v258, 5
      %v1422 = vsel %vm1327, %v1420, %v1421
      %v1423 = vrot.slane %v1421, 4
      %v1424 = vrot.slane %v292, 5
      %v1425 = vsel %vm1327, %v1423, %v1424
      %v1426 = vrot.slane %v1291, 5
      %v1427 = vrot.slane %v1426, 4
      %v1428 = vrot.slane %v260, 5
      %v1429 = vsel %vm1327, %v1427, %v1428
      %v1430 = vrot.slane %v1428, 4
      %v1431 = vrot.slane %v293, 5
      %v1432 = vsel %vm1327, %v1430, %v1431
      %v1433 = vrot.slane %v1292, 5
      %v1434 = vrot.slane %v1433, 4
      %v1435 = vrot.slane %v262, 5
      %v1436 = vsel %vm1327, %v1434, %v1435
      %v1437 = vrot.slane %v1435, 4
      %v1438 = vrot.slane %v294, 5
      %v1439 = vsel %vm1327, %v1437, %v1438
      %s1440 = scalar_lea.vmem %s1, 128
      %v1441 = vld [vmem:[%s1440] sm:$0xf]
      %v1442 = vld [vmem:[%s1440 + $0x4] sm:$0xf]
      %v1443 = vld [vmem:[%s1440 + $0x8] sm:$0xf]
      %v1444 = vld [vmem:[%s1440 + $0xc] sm:$0xf]
      %v1445 = vld [vmem:[%s1440 + $0x10] sm:$0xf]
      %v1446 = vld [vmem:[%s1440 + $0x14] sm:$0xf]
      %v1447 = vld [vmem:[%s1440 + $0x18] sm:$0xf]
      %v1448 = vld [vmem:[%s1440 + $0x1c] sm:$0xf]
      %v1449 = vld [vmem:[%s1440 + $0x20] sm:$0xf]
      %v1450 = vld [vmem:[%s1440 + $0x24] sm:$0xf]
      %v1451 = vld [vmem:[%s1440 + $0x28] sm:$0xf]
      %v1452 = vld [vmem:[%s1440 + $0x2c] sm:$0xf]
      %v1453 = vld [vmem:[%s1440 + $0x30] sm:$0xf]
      %v1454 = vld [vmem:[%s1440 + $0x34] sm:$0xf]
      %v1455 = vld [vmem:[%s1440 + $0x38] sm:$0xf]
      %v1456 = vld [vmem:[%s1440 + $0x3c] sm:$0xf]
      %v1457 = vunpack.c.l.b16 %v1331
      %v1458 = vunpack.c.l.b16 %v1334
      %v1459 = vunpack.c.l.b16 %v1338
      %v1460 = vunpack.c.l.b16 %v1341
      %v1461 = vunpack.c.l.b16 %v1345
      %v1462 = vunpack.c.l.b16 %v1348
      %v1463 = vunpack.c.l.b16 %v1352
      %v1464 = vunpack.c.l.b16 %v1355
      %v1465 = vunpack.c.l.b16 %v1359
      %v1466 = vunpack.c.l.b16 %v1362
      %v1467 = vunpack.c.l.b16 %v1366
      %v1468 = vunpack.c.l.b16 %v1369
      %v1469 = vunpack.c.l.b16 %v1373
      %v1470 = vunpack.c.l.b16 %v1376
      %v1471 = vunpack.c.l.b16 %v1380
      %v1472 = vunpack.c.l.b16 %v1383
      %v1473 = vunpack.c.l.b16 %v1387
      %v1474 = vunpack.c.l.b16 %v1390
      %v1475 = vunpack.c.l.b16 %v1394
      %v1476 = vunpack.c.l.b16 %v1397
      %v1477 = vunpack.c.l.b16 %v1401
      %v1478 = vunpack.c.l.b16 %v1404
      %v1479 = vunpack.c.l.b16 %v1408
      %v1480 = vunpack.c.l.b16 %v1411
      %v1481 = vunpack.c.l.b16 %v1415
      %v1482 = vunpack.c.l.b16 %v1418
      %v1483 = vunpack.c.l.b16 %v1422
      %v1484 = vunpack.c.l.b16 %v1425
      %v1485 = vunpack.c.l.b16 %v1429
      %v1486 = vunpack.c.l.b16 %v1432
      %v1487 = vunpack.c.l.b16 %v1436
      %v1488 = vunpack.c.l.b16 %v1439
      %v1489 = vpack.c.b16 %v1458, %v1457
      %v1490 = vpack.c.b16 %v1460, %v1459
      %v1491 = vpack.c.b16 %v1462, %v1461
      %v1492 = vpack.c.b16 %v1464, %v1463
      %v1493 = vpack.c.b16 %v1466, %v1465
      %v1494 = vpack.c.b16 %v1468, %v1467
      %v1495 = vpack.c.b16 %v1470, %v1469
      %v1496 = vpack.c.b16 %v1472, %v1471
      %v1497 = vpack.c.b16 %v1474, %v1473
      %v1498 = vpack.c.b16 %v1476, %v1475
      %v1499 = vpack.c.b16 %v1478, %v1477
      %v1500 = vpack.c.b16 %v1480, %v1479
      %v1501 = vpack.c.b16 %v1482, %v1481
      %v1502 = vpack.c.b16 %v1484, %v1483
      %v1503 = vpack.c.b16 %v1486, %v1485
      %v1504 = vpack.c.b16 %v1488, %v1487
      %v1537 = vunpack.c.l.b16 %v1441
      %v1538 = vunpack.c.l.b16 %v1442
      %v1539 = vunpack.c.l.b16 %v1443
      %v1540 = vunpack.c.l.b16 %v1444
      %v1541 = vunpack.c.l.b16 %v1445
      %v1542 = vunpack.c.l.b16 %v1446
      %v1543 = vunpack.c.l.b16 %v1447
      %v1544 = vunpack.c.l.b16 %v1448
      %v1545 = vunpack.c.l.b16 %v1449
      %v1546 = vunpack.c.l.b16 %v1450
      %v1547 = vunpack.c.l.b16 %v1451
      %v1548 = vunpack.c.l.b16 %v1452
      %v1549 = vunpack.c.l.b16 %v1453
      %v1550 = vunpack.c.l.b16 %v1454
      %v1551 = vunpack.c.l.b16 %v1455
      %v1552 = vunpack.c.l.b16 %v1456
      %v1553 = vpack.c.b16 %v1538, %v1537
      %v1554 = vpack.c.b16 %v1540, %v1539
      %v1555 = vpack.c.b16 %v1542, %v1541
      %v1556 = vpack.c.b16 %v1544, %v1543
      %v1557 = vpack.c.b16 %v1546, %v1545
      %v1558 = vpack.c.b16 %v1548, %v1547
      %v1559 = vpack.c.b16 %v1550, %v1549
      %v1560 = vpack.c.b16 %v1552, %v1551
      %1569 = vmatprep.subr.bf16.mxu0 0
      %1570 = vmatpush1.bf16.msra.mxu0 %v1560
      %1571 = vmatprep.subr.bf16.mxu0 0
      %1572 = vmatpush1.bf16.msra.mxu0 %v1559
      %1573 = vmatprep.subr.bf16.mxu0 0
      %1574 = vmatpush1.bf16.msra.mxu0 %v1558
      %1575 = vmatprep.subr.bf16.mxu0 0
      %1576 = vmatpush1.bf16.msra.mxu0 %v1557
      %1577 = vmatprep.subr.bf16.mxu0 0
      %1578 = vmatpush1.bf16.msra.mxu0 %v1556
      %1579 = vmatprep.subr.bf16.mxu0 0
      %1580 = vmatpush1.bf16.msra.mxu0 %v1555
      %1581 = vmatprep.subr.bf16.mxu0 0
      %1582 = vmatpush1.bf16.msra.mxu0 %v1554
      %1583 = vmatprep.subr.bf16.mxu0 0
      %1584 = vmatpush1.bf16.msra.mxu0 %v1553
      %1585 = vmatprep.subr.bf16.mxu0 0
      %1586 = vmatpush2.bf16.msra.mxu0 0
      %1587 = vmatprep.subr.bf16.mxu0 0
      %1588 = vmatpush2.bf16.msra.mxu0 0
      %1589 = vmatprep.subr.bf16.mxu0 0
      %1590 = vmatpush2.bf16.msra.mxu0 0
      %1591 = vmatprep.subr.bf16.mxu0 0
      %1592 = vmatpush2.bf16.msra.mxu0 0
      %1593 = vmatprep.subr.bf16.mxu0 0
      %1594 = vmatpush2.bf16.msra.mxu0 0
      %1595 = vmatprep.subr.bf16.mxu0 0
      %1596 = vmatpush2.bf16.msra.mxu0 0
      %1597 = vmatprep.subr.bf16.mxu0 0
      %1598 = vmatpush2.bf16.msra.mxu0 0
      %1599 = vmatprep.subr.bf16.mxu0 0
      %1600 = vmatpush2.bf16.msra.mxu0 0
      %1601 = vmatprep.mubr.bf16.mxu0 0
      %1602 = vmatmul.mubr.bf16.gmra.mxu0 %v1489
      %v1603 = vpop.f32.mrf.mxu0
      %v1604 = vadd.f32 0.0, %v1603
      %v1605 = vpop.f32.mrf.mxu0
      %v1606 = vpop.f32.mrf.mxu0
      %v1607 = vadd.f32 0.0, %v1606
      %v1608 = vpop.f32.mrf.mxu0
      %1609 = vmatprep.mubr.bf16.mxu0 0
      %1610 = vmatmul.mubr.bf16.gmra.mxu0 %v1490
      %v1611 = vpop.f32.mrf.mxu0
      %v1612 = vadd.f32 0.0, %v1611
      %v1613 = vpop.f32.mrf.mxu0
      %v1614 = vpop.f32.mrf.mxu0
      %v1615 = vadd.f32 0.0, %v1614
      %v1616 = vpop.f32.mrf.mxu0
      %1617 = vmatprep.mubr.bf16.mxu0 0
      %1618 = vmatmul.mubr.bf16.gmra.mxu0 %v1491
      %v1619 = vpop.f32.mrf.mxu0
      %v1620 = vadd.f32 0.0, %v1619
      %v1621 = vpop.f32.mrf.mxu0
      %v1622 = vpop.f32.mrf.mxu0
      %v1623 = vadd.f32 0.0, %v1622
      %v1624 = vpop.f32.mrf.mxu0
      %1625 = vmatprep.mubr.bf16.mxu0 0
      %1626 = vmatmul.mubr.bf16.gmra.mxu0 %v1492
      %v1627 = vpop.f32.mrf.mxu0
      %v1628 = vadd.f32 0.0, %v1627
      %v1629 = vpop.f32.mrf.mxu0
      %v1630 = vpop.f32.mrf.mxu0
      %v1631 = vadd.f32 0.0, %v1630
      %v1632 = vpop.f32.mrf.mxu0
      %1633 = vmatprep.mubr.bf16.mxu0 0
      %1634 = vmatmul.mubr.bf16.gmra.mxu0 %v1493
      %v1635 = vpop.f32.mrf.mxu0
      %v1636 = vadd.f32 0.0, %v1635
      %v1637 = vpop.f32.mrf.mxu0
      %v1638 = vpop.f32.mrf.mxu0
      %v1639 = vadd.f32 0.0, %v1638
      %v1640 = vpop.f32.mrf.mxu0
      %1641 = vmatprep.mubr.bf16.mxu0 0
      %1642 = vmatmul.mubr.bf16.gmra.mxu0 %v1494
      %v1643 = vpop.f32.mrf.mxu0
      %v1644 = vadd.f32 0.0, %v1643
      %v1645 = vpop.f32.mrf.mxu0
      %v1646 = vpop.f32.mrf.mxu0
      %v1647 = vadd.f32 0.0, %v1646
      %v1648 = vpop.f32.mrf.mxu0
      %1649 = vmatprep.mubr.bf16.mxu0 0
      %1650 = vmatmul.mubr.bf16.gmra.mxu0 %v1495
      %v1651 = vpop.f32.mrf.mxu0
      %v1652 = vadd.f32 0.0, %v1651
      %v1653 = vpop.f32.mrf.mxu0
      %v1654 = vpop.f32.mrf.mxu0
      %v1655 = vadd.f32 0.0, %v1654
      %v1656 = vpop.f32.mrf.mxu0
      %1657 = vmatprep.mubr.bf16.mxu0 0
      %1658 = vmatmul.mubr.bf16.gmra.mxu0 %v1496
      %v1659 = vpop.f32.mrf.mxu0
      %v1660 = vadd.f32 0.0, %v1659
      %v1661 = vpop.f32.mrf.mxu0
      %v1662 = vpop.f32.mrf.mxu0
      %v1663 = vadd.f32 0.0, %v1662
      %v1664 = vpop.f32.mrf.mxu0
      %1665 = vmatprep.mubr.bf16.mxu0 0
      %1666 = vmatmul.mubr.bf16.gmra.mxu0 %v1497
      %v1667 = vpop.f32.mrf.mxu0
      %v1668 = vadd.f32 0.0, %v1667
      %v1669 = vpop.f32.mrf.mxu0
      %v1670 = vpop.f32.mrf.mxu0
      %v1671 = vadd.f32 0.0, %v1670
      %v1672 = vpop.f32.mrf.mxu0
      %1673 = vmatprep.mubr.bf16.mxu0 0
      %1674 = vmatmul.mubr.bf16.gmra.mxu0 %v1498
      %v1675 = vpop.f32.mrf.mxu0
      %v1676 = vadd.f32 0.0, %v1675
      %v1677 = vpop.f32.mrf.mxu0
      %v1678 = vpop.f32.mrf.mxu0
      %v1679 = vadd.f32 0.0, %v1678
      %v1680 = vpop.f32.mrf.mxu0
      %1681 = vmatprep.mubr.bf16.mxu0 0
      %1682 = vmatmul.mubr.bf16.gmra.mxu0 %v1499
      %v1683 = vpop.f32.mrf.mxu0
      %v1684 = vadd.f32 0.0, %v1683
      %v1685 = vpop.f32.mrf.mxu0
      %v1686 = vpop.f32.mrf.mxu0
      %v1687 = vadd.f32 0.0, %v1686
      %v1688 = vpop.f32.mrf.mxu0
      %1689 = vmatprep.mubr.bf16.mxu0 0
      %1690 = vmatmul.mubr.bf16.gmra.mxu0 %v1500
      %v1691 = vpop.f32.mrf.mxu0
      %v1692 = vadd.f32 0.0, %v1691
      %v1693 = vpop.f32.mrf.mxu0
      %v1694 = vpop.f32.mrf.mxu0
      %v1695 = vadd.f32 0.0, %v1694
      %v1696 = vpop.f32.mrf.mxu0
      %1697 = vmatprep.mubr.bf16.mxu0 0
      %1698 = vmatmul.mubr.bf16.gmra.mxu0 %v1501
      %v1699 = vpop.f32.mrf.mxu0
      %v1700 = vadd.f32 0.0, %v1699
      %v1701 = vpop.f32.mrf.mxu0
      %v1702 = vpop.f32.mrf.mxu0
      %v1703 = vadd.f32 0.0, %v1702
      %v1704 = vpop.f32.mrf.mxu0
      %1705 = vmatprep.mubr.bf16.mxu0 0
      %1706 = vmatmul.mubr.bf16.gmra.mxu0 %v1502
      %v1707 = vpop.f32.mrf.mxu0
      %v1708 = vadd.f32 0.0, %v1707
      %v1709 = vpop.f32.mrf.mxu0
      %v1710 = vpop.f32.mrf.mxu0
      %v1711 = vadd.f32 0.0, %v1710
      %v1712 = vpop.f32.mrf.mxu0
      %1713 = vmatprep.mubr.bf16.mxu0 0
      %1714 = vmatmul.mubr.bf16.gmra.mxu0 %v1503
      %v1715 = vpop.f32.mrf.mxu0
      %v1716 = vadd.f32 0.0, %v1715
      %v1717 = vpop.f32.mrf.mxu0
      %v1718 = vpop.f32.mrf.mxu0
      %v1719 = vadd.f32 0.0, %v1718
      %v1720 = vpop.f32.mrf.mxu0
      %1721 = vmatprep.mubr.bf16.mxu0 0
      %1722 = vmatmul.mubr.bf16.gmra.mxu0 %v1504
      %v1723 = vpop.f32.mrf.mxu0
      %v1724 = vadd.f32 0.0, %v1723
      %v1725 = vpop.f32.mrf.mxu0
      %v1726 = vpop.f32.mrf.mxu0
      %v1727 = vadd.f32 0.0, %v1726
      %v1728 = vpop.f32.mrf.mxu0
      %1729 = vdwg.mxu0
      %v1730 = vadd.f32 %v1151, %v1604
      %v1731 = vadd.f32 %v1154, %v1607
      %v1732 = vadd.f32 %v1159, %v1612
      %v1733 = vadd.f32 %v1162, %v1615
      %v1734 = vadd.f32 %v1167, %v1620
      %v1735 = vadd.f32 %v1170, %v1623
      %v1736 = vadd.f32 %v1175, %v1628
      %v1737 = vadd.f32 %v1178, %v1631
      %v1738 = vadd.f32 %v1183, %v1636
      %v1739 = vadd.f32 %v1186, %v1639
      %v1740 = vadd.f32 %v1191, %v1644
      %v1741 = vadd.f32 %v1194, %v1647
      %v1742 = vadd.f32 %v1199, %v1652
      %v1743 = vadd.f32 %v1202, %v1655
      %v1744 = vadd.f32 %v1207, %v1660
      %v1745 = vadd.f32 %v1210, %v1663
      %v1746 = vadd.f32 %v1215, %v1668
      %v1747 = vadd.f32 %v1218, %v1671
      %v1748 = vadd.f32 %v1223, %v1676
      %v1749 = vadd.f32 %v1226, %v1679
      %v1750 = vadd.f32 %v1231, %v1684
      %v1751 = vadd.f32 %v1234, %v1687
      %v1752 = vadd.f32 %v1239, %v1692
      %v1753 = vadd.f32 %v1242, %v1695
      %v1754 = vadd.f32 %v1247, %v1700
      %v1755 = vadd.f32 %v1250, %v1703
      %v1756 = vadd.f32 %v1255, %v1708
      %v1757 = vadd.f32 %v1258, %v1711
      %v1758 = vadd.f32 %v1263, %v1716
      %v1759 = vadd.f32 %v1266, %v1719
      %v1760 = vadd.f32 %v1271, %v1724
      %v1761 = vadd.f32 %v1274, %v1727
      %s1762 = sadd.s32 %s227, 1
      %s1763 = smul.u32 %s1762, 3
      %s1764 = smul.addr %s1763, 4
      %s1765 = scalar_lea.vmem %s206, %s1764
      %v1766 = vld [vmem:[%s1765] sm:$0xf]
      %v1767 = vld [vmem:[%s1765 + $0x4] sm:$0xf]
      %v1768 = vld [vmem:[%s1765 + $0xc] sm:$0xf]
      %v1769 = vld [vmem:[%s1765 + $0x10] sm:$0xf]
      %v1770 = vld [vmem:[%s1765 + $0x18] sm:$0xf]
      %v1771 = vld [vmem:[%s1765 + $0x1c] sm:$0xf]
      %v1772 = vld [vmem:[%s1765 + $0x24] sm:$0xf]
      %v1773 = vld [vmem:[%s1765 + $0x28] sm:$0xf]
      %v1774 = vld [vmem:[%s1765 + $0x30] sm:$0xf]
      %v1775 = vld [vmem:[%s1765 + $0x34] sm:$0xf]
      %v1776 = vld [vmem:[%s1765 + $0x3c] sm:$0xf]
      %v1777 = vld [vmem:[%s1765 + $0x40] sm:$0xf]
      %v1778 = vld [vmem:[%s1765 + $0x48] sm:$0xf]
      %v1779 = vld [vmem:[%s1765 + $0x4c] sm:$0xf]
      %v1780 = vld [vmem:[%s1765 + $0x54] sm:$0xf]
      %v1781 = vld [vmem:[%s1765 + $0x58] sm:$0xf]
      %v1782 = vld [vmem:[%s1765 + $0x60] sm:$0xf]
      %v1783 = vld [vmem:[%s1765 + $0x64] sm:$0xf]
      %v1784 = vld [vmem:[%s1765 + $0x6c] sm:$0xf]
      %v1785 = vld [vmem:[%s1765 + $0x70] sm:$0xf]
      %v1786 = vld [vmem:[%s1765 + $0x78] sm:$0xf]
      %v1787 = vld [vmem:[%s1765 + $0x7c] sm:$0xf]
      %v1788 = vld [vmem:[%s1765 + $0x84] sm:$0xf]
      %v1789 = vld [vmem:[%s1765 + $0x88] sm:$0xf]
      %v1790 = vld [vmem:[%s1765 + $0x90] sm:$0xf]
      %v1791 = vld [vmem:[%s1765 + $0x94] sm:$0xf]
      %v1792 = vld [vmem:[%s1765 + $0x9c] sm:$0xf]
      %v1793 = vld [vmem:[%s1765 + $0xa0] sm:$0xf]
      %v1794 = vld [vmem:[%s1765 + $0xa8] sm:$0xf]
      %v1795 = vld [vmem:[%s1765 + $0xac] sm:$0xf]
      %v1796 = vld [vmem:[%s1765 + $0xb4] sm:$0xf]
      %v1797 = vld [vmem:[%s1765 + $0xb8] sm:$0xf]
      %s1798 = scalar_lea.vmem %s1, 192
      %v1799 = vld [vmem:[%s1798] sm:$0xf]
      %v1800 = vld [vmem:[%s1798 + $0x4] sm:$0xf]
      %v1801 = vld [vmem:[%s1798 + $0x8] sm:$0xf]
      %v1802 = vld [vmem:[%s1798 + $0xc] sm:$0xf]
      %v1803 = vld [vmem:[%s1798 + $0x10] sm:$0xf]
      %v1804 = vld [vmem:[%s1798 + $0x14] sm:$0xf]
      %v1805 = vld [vmem:[%s1798 + $0x18] sm:$0xf]
      %v1806 = vld [vmem:[%s1798 + $0x1c] sm:$0xf]
      %v1807 = vld [vmem:[%s1798 + $0x20] sm:$0xf]
      %v1808 = vld [vmem:[%s1798 + $0x24] sm:$0xf]
      %v1809 = vld [vmem:[%s1798 + $0x28] sm:$0xf]
      %v1810 = vld [vmem:[%s1798 + $0x2c] sm:$0xf]
      %v1811 = vld [vmem:[%s1798 + $0x30] sm:$0xf]
      %v1812 = vld [vmem:[%s1798 + $0x34] sm:$0xf]
      %v1813 = vld [vmem:[%s1798 + $0x38] sm:$0xf]
      %v1814 = vld [vmem:[%s1798 + $0x3c] sm:$0xf]
      %v1847 = vunpack.c.l.b16 %v1766
      %v1848 = vunpack.c.l.b16 %v1767
      %v1849 = vunpack.c.l.b16 %v1768
      %v1850 = vunpack.c.l.b16 %v1769
      %v1851 = vunpack.c.l.b16 %v1770
      %v1852 = vunpack.c.l.b16 %v1771
      %v1853 = vunpack.c.l.b16 %v1772
      %v1854 = vunpack.c.l.b16 %v1773
      %v1855 = vunpack.c.l.b16 %v1774
      %v1856 = vunpack.c.l.b16 %v1775
      %v1857 = vunpack.c.l.b16 %v1776
      %v1858 = vunpack.c.l.b16 %v1777
      %v1859 = vunpack.c.l.b16 %v1778
      %v1860 = vunpack.c.l.b16 %v1779
      %v1861 = vunpack.c.l.b16 %v1780
      %v1862 = vunpack.c.l.b16 %v1781
      %v1863 = vunpack.c.l.b16 %v1782
      %v1864 = vunpack.c.l.b16 %v1783
      %v1865 = vunpack.c.l.b16 %v1784
      %v1866 = vunpack.c.l.b16 %v1785
      %v1867 = vunpack.c.l.b16 %v1786
      %v1868 = vunpack.c.l.b16 %v1787
      %v1869 = vunpack.c.l.b16 %v1788
      %v1870 = vunpack.c.l.b16 %v1789
      %v1871 = vunpack.c.l.b16 %v1790
      %v1872 = vunpack.c.l.b16 %v1791
      %v1873 = vunpack.c.l.b16 %v1792
      %v1874 = vunpack.c.l.b16 %v1793
      %v1875 = vunpack.c.l.b16 %v1794
      %v1876 = vunpack.c.l.b16 %v1795
      %v1877 = vunpack.c.l.b16 %v1796
      %v1878 = vunpack.c.l.b16 %v1797
      %v1879 = vpack.c.b16 %v1848, %v1847
      %v1880 = vpack.c.b16 %v1850, %v1849
      %v1881 = vpack.c.b16 %v1852, %v1851
      %v1882 = vpack.c.b16 %v1854, %v1853
      %v1883 = vpack.c.b16 %v1856, %v1855
      %v1884 = vpack.c.b16 %v1858, %v1857
      %v1885 = vpack.c.b16 %v1860, %v1859
      %v1886 = vpack.c.b16 %v1862, %v1861
      %v1887 = vpack.c.b16 %v1864, %v1863
      %v1888 = vpack.c.b16 %v1866, %v1865
      %v1889 = vpack.c.b16 %v1868, %v1867
      %v1890 = vpack.c.b16 %v1870, %v1869
      %v1891 = vpack.c.b16 %v1872, %v1871
      %v1892 = vpack.c.b16 %v1874, %v1873
      %v1893 = vpack.c.b16 %v1876, %v1875
      %v1894 = vpack.c.b16 %v1878, %v1877
      %v1927 = vunpack.c.l.b16 %v1799
      %v1928 = vunpack.c.l.b16 %v1800
      %v1929 = vunpack.c.l.b16 %v1801
      %v1930 = vunpack.c.l.b16 %v1802
      %v1931 = vunpack.c.l.b16 %v1803
      %v1932 = vunpack.c.l.b16 %v1804
      %v1933 = vunpack.c.l.b16 %v1805
      %v1934 = vunpack.c.l.b16 %v1806
      %v1935 = vunpack.c.l.b16 %v1807
      %v1936 = vunpack.c.l.b16 %v1808
      %v1937 = vunpack.c.l.b16 %v1809
      %v1938 = vunpack.c.l.b16 %v1810
      %v1939 = vunpack.c.l.b16 %v1811
      %v1940 = vunpack.c.l.b16 %v1812
      %v1941 = vunpack.c.l.b16 %v1813
      %v1942 = vunpack.c.l.b16 %v1814
      %v1943 = vpack.c.b16 %v1928, %v1927
      %v1944 = vpack.c.b16 %v1930, %v1929
      %v1945 = vpack.c.b16 %v1932, %v1931
      %v1946 = vpack.c.b16 %v1934, %v1933
      %v1947 = vpack.c.b16 %v1936, %v1935
      %v1948 = vpack.c.b16 %v1938, %v1937
      %v1949 = vpack.c.b16 %v1940, %v1939
      %v1950 = vpack.c.b16 %v1942, %v1941
      %1959 = vmatprep.subr.bf16.mxu0 0
      %1960 = vmatpush1.bf16.msra.mxu0 %v1950
      %1961 = vmatprep.subr.bf16.mxu0 0
      %1962 = vmatpush1.bf16.msra.mxu0 %v1949
      %1963 = vmatprep.subr.bf16.mxu0 0
      %1964 = vmatpush1.bf16.msra.mxu0 %v1948
      %1965 = vmatprep.subr.bf16.mxu0 0
      %1966 = vmatpush1.bf16.msra.mxu0 %v1947
      %1967 = vmatprep.subr.bf16.mxu0 0
      %1968 = vmatpush1.bf16.msra.mxu0 %v1946
      %1969 = vmatprep.subr.bf16.mxu0 0
      %1970 = vmatpush1.bf16.msra.mxu0 %v1945
      %1971 = vmatprep.subr.bf16.mxu0 0
      %1972 = vmatpush1.bf16.msra.mxu0 %v1944
      %1973 = vmatprep.subr.bf16.mxu0 0
      %1974 = vmatpush1.bf16.msra.mxu0 %v1943
      %1975 = vmatprep.subr.bf16.mxu0 0
      %1976 = vmatpush2.bf16.msra.mxu0 0
      %1977 = vmatprep.subr.bf16.mxu0 0
      %1978 = vmatpush2.bf16.msra.mxu0 0
      %1979 = vmatprep.subr.bf16.mxu0 0
      %1980 = vmatpush2.bf16.msra.mxu0 0
      %1981 = vmatprep.subr.bf16.mxu0 0
      %1982 = vmatpush2.bf16.msra.mxu0 0
      %1983 = vmatprep.subr.bf16.mxu0 0
      %1984 = vmatpush2.bf16.msra.mxu0 0
      %1985 = vmatprep.subr.bf16.mxu0 0
      %1986 = vmatpush2.bf16.msra.mxu0 0
      %1987 = vmatprep.subr.bf16.mxu0 0
      %1988 = vmatpush2.bf16.msra.mxu0 0
      %1989 = vmatprep.subr.bf16.mxu0 0
      %1990 = vmatpush2.bf16.msra.mxu0 0
      %1991 = vmatprep.mubr.bf16.mxu0 0
      %1992 = vmatmul.mubr.bf16.gmra.mxu0 %v1879
      %v1993 = vpop.f32.mrf.mxu0
      %v1994 = vadd.f32 0.0, %v1993
      %v1995 = vpop.f32.mrf.mxu0
      %v1996 = vpop.f32.mrf.mxu0
      %v1997 = vadd.f32 0.0, %v1996
      %v1998 = vpop.f32.mrf.mxu0
      %1999 = vmatprep.mubr.bf16.mxu0 0
      %2000 = vmatmul.mubr.bf16.gmra.mxu0 %v1880
      %v2001 = vpop.f32.mrf.mxu0
      %v2002 = vadd.f32 0.0, %v2001
      %v2003 = vpop.f32.mrf.mxu0
      %v2004 = vpop.f32.mrf.mxu0
      %v2005 = vadd.f32 0.0, %v2004
      %v2006 = vpop.f32.mrf.mxu0
      %2007 = vmatprep.mubr.bf16.mxu0 0
      %2008 = vmatmul.mubr.bf16.gmra.mxu0 %v1881
      %v2009 = vpop.f32.mrf.mxu0
      %v2010 = vadd.f32 0.0, %v2009
      %v2011 = vpop.f32.mrf.mxu0
      %v2012 = vpop.f32.mrf.mxu0
      %v2013 = vadd.f32 0.0, %v2012
      %v2014 = vpop.f32.mrf.mxu0
      %2015 = vmatprep.mubr.bf16.mxu0 0
      %2016 = vmatmul.mubr.bf16.gmra.mxu0 %v1882
      %v2017 = vpop.f32.mrf.mxu0
      %v2018 = vadd.f32 0.0, %v2017
      %v2019 = vpop.f32.mrf.mxu0
      %v2020 = vpop.f32.mrf.mxu0
      %v2021 = vadd.f32 0.0, %v2020
      %v2022 = vpop.f32.mrf.mxu0
      %2023 = vmatprep.mubr.bf16.mxu0 0
      %2024 = vmatmul.mubr.bf16.gmra.mxu0 %v1883
      %v2025 = vpop.f32.mrf.mxu0
      %v2026 = vadd.f32 0.0, %v2025
      %v2027 = vpop.f32.mrf.mxu0
      %v2028 = vpop.f32.mrf.mxu0
      %v2029 = vadd.f32 0.0, %v2028
      %v2030 = vpop.f32.mrf.mxu0
      %2031 = vmatprep.mubr.bf16.mxu0 0
      %2032 = vmatmul.mubr.bf16.gmra.mxu0 %v1884
      %v2033 = vpop.f32.mrf.mxu0
      %v2034 = vadd.f32 0.0, %v2033
      %v2035 = vpop.f32.mrf.mxu0
      %v2036 = vpop.f32.mrf.mxu0
      %v2037 = vadd.f32 0.0, %v2036
      %v2038 = vpop.f32.mrf.mxu0
      %2039 = vmatprep.mubr.bf16.mxu0 0
      %2040 = vmatmul.mubr.bf16.gmra.mxu0 %v1885
      %v2041 = vpop.f32.mrf.mxu0
      %v2042 = vadd.f32 0.0, %v2041
      %v2043 = vpop.f32.mrf.mxu0
      %v2044 = vpop.f32.mrf.mxu0
      %v2045 = vadd.f32 0.0, %v2044
      %v2046 = vpop.f32.mrf.mxu0
      %2047 = vmatprep.mubr.bf16.mxu0 0
      %2048 = vmatmul.mubr.bf16.gmra.mxu0 %v1886
      %v2049 = vpop.f32.mrf.mxu0
      %v2050 = vadd.f32 0.0, %v2049
      %v2051 = vpop.f32.mrf.mxu0
      %v2052 = vpop.f32.mrf.mxu0
      %v2053 = vadd.f32 0.0, %v2052
      %v2054 = vpop.f32.mrf.mxu0
      %2055 = vmatprep.mubr.bf16.mxu0 0
      %2056 = vmatmul.mubr.bf16.gmra.mxu0 %v1887
      %v2057 = vpop.f32.mrf.mxu0
      %v2058 = vadd.f32 0.0, %v2057
      %v2059 = vpop.f32.mrf.mxu0
      %v2060 = vpop.f32.mrf.mxu0
      %v2061 = vadd.f32 0.0, %v2060
      %v2062 = vpop.f32.mrf.mxu0
      %2063 = vmatprep.mubr.bf16.mxu0 0
      %2064 = vmatmul.mubr.bf16.gmra.mxu0 %v1888
      %v2065 = vpop.f32.mrf.mxu0
      %v2066 = vadd.f32 0.0, %v2065
      %v2067 = vpop.f32.mrf.mxu0
      %v2068 = vpop.f32.mrf.mxu0
      %v2069 = vadd.f32 0.0, %v2068
      %v2070 = vpop.f32.mrf.mxu0
      %2071 = vmatprep.mubr.bf16.mxu0 0
      %2072 = vmatmul.mubr.bf16.gmra.mxu0 %v1889
      %v2073 = vpop.f32.mrf.mxu0
      %v2074 = vadd.f32 0.0, %v2073
      %v2075 = vpop.f32.mrf.mxu0
      %v2076 = vpop.f32.mrf.mxu0
      %v2077 = vadd.f32 0.0, %v2076
      %v2078 = vpop.f32.mrf.mxu0
      %2079 = vmatprep.mubr.bf16.mxu0 0
      %2080 = vmatmul.mubr.bf16.gmra.mxu0 %v1890
      %v2081 = vpop.f32.mrf.mxu0
      %v2082 = vadd.f32 0.0, %v2081
      %v2083 = vpop.f32.mrf.mxu0
      %v2084 = vpop.f32.mrf.mxu0
      %v2085 = vadd.f32 0.0, %v2084
      %v2086 = vpop.f32.mrf.mxu0
      %2087 = vmatprep.mubr.bf16.mxu0 0
      %2088 = vmatmul.mubr.bf16.gmra.mxu0 %v1891
      %v2089 = vpop.f32.mrf.mxu0
      %v2090 = vadd.f32 0.0, %v2089
      %v2091 = vpop.f32.mrf.mxu0
      %v2092 = vpop.f32.mrf.mxu0
      %v2093 = vadd.f32 0.0, %v2092
      %v2094 = vpop.f32.mrf.mxu0
      %2095 = vmatprep.mubr.bf16.mxu0 0
      %2096 = vmatmul.mubr.bf16.gmra.mxu0 %v1892
      %v2097 = vpop.f32.mrf.mxu0
      %v2098 = vadd.f32 0.0, %v2097
      %v2099 = vpop.f32.mrf.mxu0
      %v2100 = vpop.f32.mrf.mxu0
      %v2101 = vadd.f32 0.0, %v2100
      %v2102 = vpop.f32.mrf.mxu0
      %2103 = vmatprep.mubr.bf16.mxu0 0
      %2104 = vmatmul.mubr.bf16.gmra.mxu0 %v1893
      %v2105 = vpop.f32.mrf.mxu0
      %v2106 = vadd.f32 0.0, %v2105
      %v2107 = vpop.f32.mrf.mxu0
      %v2108 = vpop.f32.mrf.mxu0
      %v2109 = vadd.f32 0.0, %v2108
      %v2110 = vpop.f32.mrf.mxu0
      %2111 = vmatprep.mubr.bf16.mxu0 0
      %2112 = vmatmul.mubr.bf16.gmra.mxu0 %v1894
      %v2113 = vpop.f32.mrf.mxu0
      %v2114 = vadd.f32 0.0, %v2113
      %v2115 = vpop.f32.mrf.mxu0
      %v2116 = vpop.f32.mrf.mxu0
      %v2117 = vadd.f32 0.0, %v2116
      %v2118 = vpop.f32.mrf.mxu0
      %2119 = vdwg.mxu0
      %v2120 = vadd.f32 %v1730, %v1994
      %v2121 = vadd.f32 %v1731, %v1997
      %v2122 = vadd.f32 %v1732, %v2002
      %v2123 = vadd.f32 %v1733, %v2005
      %v2124 = vadd.f32 %v1734, %v2010
      %v2125 = vadd.f32 %v1735, %v2013
      %v2126 = vadd.f32 %v1736, %v2018
      %v2127 = vadd.f32 %v1737, %v2021
      %v2128 = vadd.f32 %v1738, %v2026
      %v2129 = vadd.f32 %v1739, %v2029
      %v2130 = vadd.f32 %v1740, %v2034
      %v2131 = vadd.f32 %v1741, %v2037
      %v2132 = vadd.f32 %v1742, %v2042
      %v2133 = vadd.f32 %v1743, %v2045
      %v2134 = vadd.f32 %v1744, %v2050
      %v2135 = vadd.f32 %v1745, %v2053
      %v2136 = vadd.f32 %v1746, %v2058
      %v2137 = vadd.f32 %v1747, %v2061
      %v2138 = vadd.f32 %v1748, %v2066
      %v2139 = vadd.f32 %v1749, %v2069
      %v2140 = vadd.f32 %v1750, %v2074
      %v2141 = vadd.f32 %v1751, %v2077
      %v2142 = vadd.f32 %v1752, %v2082
      %v2143 = vadd.f32 %v1753, %v2085
      %v2144 = vadd.f32 %v1754, %v2090
      %v2145 = vadd.f32 %v1755, %v2093
      %v2146 = vadd.f32 %v1756, %v2098
      %v2147 = vadd.f32 %v1757, %v2101
      %v2148 = vadd.f32 %v1758, %v2106
      %v2149 = vadd.f32 %v1759, %v2109
      %v2150 = vadd.f32 %v1760, %v2114
      %v2151 = vadd.f32 %v1761, %v2117
      %v2152 = vld [vmem:[%s1765] sm:$0xf]
      %v2153 = vld [vmem:[%s1765 + $0x4] sm:$0xf]
      %v2154 = vld [vmem:[%s1765 + $0x8] sm:$0x1]
      %v2155 = vld [vmem:[%s1765 + $0xc] sm:$0xf]
      %v2156 = vld [vmem:[%s1765 + $0x10] sm:$0xf]
      %v2157 = vld [vmem:[%s1765 + $0x14] sm:$0x1]
      %v2158 = vld [vmem:[%s1765 + $0x18] sm:$0xf]
      %v2159 = vld [vmem:[%s1765 + $0x1c] sm:$0xf]
      %v2160 = vld [vmem:[%s1765 + $0x20] sm:$0x1]
      %v2161 = vld [vmem:[%s1765 + $0x24] sm:$0xf]
      %v2162 = vld [vmem:[%s1765 + $0x28] sm:$0xf]
      %v2163 = vld [vmem:[%s1765 + $0x2c] sm:$0x1]
      %v2164 = vld [vmem:[%s1765 + $0x30] sm:$0xf]
      %v2165 = vld [vmem:[%s1765 + $0x34] sm:$0xf]
      %v2166 = vld [vmem:[%s1765 + $0x38] sm:$0x1]
      %v2167 = vld [vmem:[%s1765 + $0x3c] sm:$0xf]
      %v2168 = vld [vmem:[%s1765 + $0x40] sm:$0xf]
      %v2169 = vld [vmem:[%s1765 + $0x44] sm:$0x1]
      %v2170 = vld [vmem:[%s1765 + $0x48] sm:$0xf]
      %v2171 = vld [vmem:[%s1765 + $0x4c] sm:$0xf]
      %v2172 = vld [vmem:[%s1765 + $0x50] sm:$0x1]
      %v2173 = vld [vmem:[%s1765 + $0x54] sm:$0xf]
      %v2174 = vld [vmem:[%s1765 + $0x58] sm:$0xf]
      %v2175 = vld [vmem:[%s1765 + $0x5c] sm:$0x1]
      %v2176 = vld [vmem:[%s1765 + $0x60] sm:$0xf]
      %v2177 = vld [vmem:[%s1765 + $0x64] sm:$0xf]
      %v2178 = vld [vmem:[%s1765 + $0x68] sm:$0x1]
      %v2179 = vld [vmem:[%s1765 + $0x6c] sm:$0xf]
      %v2180 = vld [vmem:[%s1765 + $0x70] sm:$0xf]
      %v2181 = vld [vmem:[%s1765 + $0x74] sm:$0x1]
      %v2182 = vld [vmem:[%s1765 + $0x78] sm:$0xf]
      %v2183 = vld [vmem:[%s1765 + $0x7c] sm:$0xf]
      %v2184 = vld [vmem:[%s1765 + $0x80] sm:$0x1]
      %v2185 = vld [vmem:[%s1765 + $0x84] sm:$0xf]
      %v2186 = vld [vmem:[%s1765 + $0x88] sm:$0xf]
      %v2187 = vld [vmem:[%s1765 + $0x8c] sm:$0x1]
      %v2188 = vld [vmem:[%s1765 + $0x90] sm:$0xf]
      %v2189 = vld [vmem:[%s1765 + $0x94] sm:$0xf]
      %v2190 = vld [vmem:[%s1765 + $0x98] sm:$0x1]
      %v2191 = vld [vmem:[%s1765 + $0x9c] sm:$0xf]
      %v2192 = vld [vmem:[%s1765 + $0xa0] sm:$0xf]
      %v2193 = vld [vmem:[%s1765 + $0xa4] sm:$0x1]
      %v2194 = vld [vmem:[%s1765 + $0xa8] sm:$0xf]
      %v2195 = vld [vmem:[%s1765 + $0xac] sm:$0xf]
      %v2196 = vld [vmem:[%s1765 + $0xb0] sm:$0x1]
      %v2197 = vld [vmem:[%s1765 + $0xb4] sm:$0xf]
      %v2198 = vld [vmem:[%s1765 + $0xb8] sm:$0xf]
      %v2199 = vld [vmem:[%s1765 + $0xbc] sm:$0x1]
      %v2201 = vshrl.u32 %v2152, 16
      %v2203 = vrot.slane %v2201, 4
      %v2204 = vshll.u32 %v2152, 16
      %v2206 = vrot.slane %v2204, 5
      %v2207 = vor.u32 %v2203, %v2206
      %v2208 = vrot.slane %v2207, 4
      %v2210 = vshll.u32 %v2153, 16
      %v2212 = vrot.slane %v2210, 5
      %v2213 = vsel %vm297, %v2208, %v2212
      %v2214 = vshrl.u32 %v2153, 16
      %v2216 = vrot.slane %v2214, 4
      %v2217 = vor.u32 %v2216, %v2212
      %v2218 = vrot.slane %v2217, 4
      %v2220 = vshll.u32 %v2154, 16
      %v2222 = vrot.slane %v2220, 5
      %v2223 = vsel %vm297, %v2218, %v2222
      %v2225 = vshrl.u32 %v2155, 16
      %v2227 = vrot.slane %v2225, 4
      %v2228 = vshll.u32 %v2155, 16
      %v2230 = vrot.slane %v2228, 5
      %v2231 = vor.u32 %v2227, %v2230
      %v2232 = vrot.slane %v2231, 4
      %v2234 = vshll.u32 %v2156, 16
      %v2236 = vrot.slane %v2234, 5
      %v2237 = vsel %vm297, %v2232, %v2236
      %v2238 = vshrl.u32 %v2156, 16
      %v2240 = vrot.slane %v2238, 4
      %v2241 = vor.u32 %v2240, %v2236
      %v2242 = vrot.slane %v2241, 4
      %v2244 = vshll.u32 %v2157, 16
      %v2246 = vrot.slane %v2244, 5
      %v2247 = vsel %vm297, %v2242, %v2246
      %v2249 = vshrl.u32 %v2158, 16
      %v2251 = vrot.slane %v2249, 4
      %v2252 = vshll.u32 %v2158, 16
      %v2254 = vrot.slane %v2252, 5
      %v2255 = vor.u32 %v2251, %v2254
      %v2256 = vrot.slane %v2255, 4
      %v2258 = vshll.u32 %v2159, 16
      %v2260 = vrot.slane %v2258, 5
      %v2261 = vsel %vm297, %v2256, %v2260
      %v2262 = vshrl.u32 %v2159, 16
      %v2264 = vrot.slane %v2262, 4
      %v2265 = vor.u32 %v2264, %v2260
      %v2266 = vrot.slane %v2265, 4
      %v2268 = vshll.u32 %v2160, 16
      %v2270 = vrot.slane %v2268, 5
      %v2271 = vsel %vm297, %v2266, %v2270
      %v2273 = vshrl.u32 %v2161, 16
      %v2275 = vrot.slane %v2273, 4
      %v2276 = vshll.u32 %v2161, 16
      %v2278 = vrot.slane %v2276, 5
      %v2279 = vor.u32 %v2275, %v2278
      %v2280 = vrot.slane %v2279, 4
      %v2282 = vshll.u32 %v2162, 16
      %v2284 = vrot.slane %v2282, 5
      %v2285 = vsel %vm297, %v2280, %v2284
      %v2286 = vshrl.u32 %v2162, 16
      %v2288 = vrot.slane %v2286, 4
      %v2289 = vor.u32 %v2288, %v2284
      %v2290 = vrot.slane %v2289, 4
      %v2292 = vshll.u32 %v2163, 16
      %v2294 = vrot.slane %v2292, 5
      %v2295 = vsel %vm297, %v2290, %v2294
      %v2297 = vshrl.u32 %v2164, 16
      %v2299 = vrot.slane %v2297, 4
      %v2300 = vshll.u32 %v2164, 16
      %v2302 = vrot.slane %v2300, 5
      %v2303 = vor.u32 %v2299, %v2302
      %v2304 = vrot.slane %v2303, 4
      %v2306 = vshll.u32 %v2165, 16
      %v2308 = vrot.slane %v2306, 5
      %v2309 = vsel %vm297, %v2304, %v2308
      %v2310 = vshrl.u32 %v2165, 16
      %v2312 = vrot.slane %v2310, 4
      %v2313 = vor.u32 %v2312, %v2308
      %v2314 = vrot.slane %v2313, 4
      %v2316 = vshll.u32 %v2166, 16
      %v2318 = vrot.slane %v2316, 5
      %v2319 = vsel %vm297, %v2314, %v2318
      %v2321 = vshrl.u32 %v2167, 16
      %v2323 = vrot.slane %v2321, 4
      %v2324 = vshll.u32 %v2167, 16
      %v2326 = vrot.slane %v2324, 5
      %v2327 = vor.u32 %v2323, %v2326
      %v2328 = vrot.slane %v2327, 4
      %v2330 = vshll.u32 %v2168, 16
      %v2332 = vrot.slane %v2330, 5
      %v2333 = vsel %vm297, %v2328, %v2332
      %v2334 = vshrl.u32 %v2168, 16
      %v2336 = vrot.slane %v2334, 4
      %v2337 = vor.u32 %v2336, %v2332
      %v2338 = vrot.slane %v2337, 4
      %v2340 = vshll.u32 %v2169, 16
      %v2342 = vrot.slane %v2340, 5
      %v2343 = vsel %vm297, %v2338, %v2342
      %v2345 = vshrl.u32 %v2170, 16
      %v2347 = vrot.slane %v2345, 4
      %v2348 = vshll.u32 %v2170, 16
      %v2350 = vrot.slane %v2348, 5
      %v2351 = vor.u32 %v2347, %v2350
      %v2352 = vrot.slane %v2351, 4
      %v2354 = vshll.u32 %v2171, 16
      %v2356 = vrot.slane %v2354, 5
      %v2357 = vsel %vm297, %v2352, %v2356
      %v2358 = vshrl.u32 %v2171, 16
      %v2360 = vrot.slane %v2358, 4
      %v2361 = vor.u32 %v2360, %v2356
      %v2362 = vrot.slane %v2361, 4
      %v2364 = vshll.u32 %v2172, 16
      %v2366 = vrot.slane %v2364, 5
      %v2367 = vsel %vm297, %v2362, %v2366
      %v2369 = vshrl.u32 %v2173, 16
      %v2371 = vrot.slane %v2369, 4
      %v2372 = vshll.u32 %v2173, 16
      %v2374 = vrot.slane %v2372, 5
      %v2375 = vor.u32 %v2371, %v2374
      %v2376 = vrot.slane %v2375, 4
      %v2378 = vshll.u32 %v2174, 16
      %v2380 = vrot.slane %v2378, 5
      %v2381 = vsel %vm297, %v2376, %v2380
      %v2382 = vshrl.u32 %v2174, 16
      %v2384 = vrot.slane %v2382, 4
      %v2385 = vor.u32 %v2384, %v2380
      %v2386 = vrot.slane %v2385, 4
      %v2388 = vshll.u32 %v2175, 16
      %v2390 = vrot.slane %v2388, 5
      %v2391 = vsel %vm297, %v2386, %v2390
      %v2393 = vshrl.u32 %v2176, 16
      %v2395 = vrot.slane %v2393, 4
      %v2396 = vshll.u32 %v2176, 16
      %v2398 = vrot.slane %v2396, 5
      %v2399 = vor.u32 %v2395, %v2398
      %v2400 = vrot.slane %v2399, 4
      %v2402 = vshll.u32 %v2177, 16
      %v2404 = vrot.slane %v2402, 5
      %v2405 = vsel %vm297, %v2400, %v2404
      %v2406 = vshrl.u32 %v2177, 16
      %v2408 = vrot.slane %v2406, 4
      %v2409 = vor.u32 %v2408, %v2404
      %v2410 = vrot.slane %v2409, 4
      %v2412 = vshll.u32 %v2178, 16
      %v2414 = vrot.slane %v2412, 5
      %v2415 = vsel %vm297, %v2410, %v2414
      %v2417 = vshrl.u32 %v2179, 16
      %v2419 = vrot.slane %v2417, 4
      %v2420 = vshll.u32 %v2179, 16
      %v2422 = vrot.slane %v2420, 5
      %v2423 = vor.u32 %v2419, %v2422
      %v2424 = vrot.slane %v2423, 4
      %v2426 = vshll.u32 %v2180, 16
      %v2428 = vrot.slane %v2426, 5
      %v2429 = vsel %vm297, %v2424, %v2428
      %v2430 = vshrl.u32 %v2180, 16
      %v2432 = vrot.slane %v2430, 4
      %v2433 = vor.u32 %v2432, %v2428
      %v2434 = vrot.slane %v2433, 4
      %v2436 = vshll.u32 %v2181, 16
      %v2438 = vrot.slane %v2436, 5
      %v2439 = vsel %vm297, %v2434, %v2438
      %v2441 = vshrl.u32 %v2182, 16
      %v2443 = vrot.slane %v2441, 4
      %v2444 = vshll.u32 %v2182, 16
      %v2446 = vrot.slane %v2444, 5
      %v2447 = vor.u32 %v2443, %v2446
      %v2448 = vrot.slane %v2447, 4
      %v2450 = vshll.u32 %v2183, 16
      %v2452 = vrot.slane %v2450, 5
      %v2453 = vsel %vm297, %v2448, %v2452
      %v2454 = vshrl.u32 %v2183, 16
      %v2456 = vrot.slane %v2454, 4
      %v2457 = vor.u32 %v2456, %v2452
      %v2458 = vrot.slane %v2457, 4
      %v2460 = vshll.u32 %v2184, 16
      %v2462 = vrot.slane %v2460, 5
      %v2463 = vsel %vm297, %v2458, %v2462
      %v2465 = vshrl.u32 %v2185, 16
      %v2467 = vrot.slane %v2465, 4
      %v2468 = vshll.u32 %v2185, 16
      %v2470 = vrot.slane %v2468, 5
      %v2471 = vor.u32 %v2467, %v2470
      %v2472 = vrot.slane %v2471, 4
      %v2474 = vshll.u32 %v2186, 16
      %v2476 = vrot.slane %v2474, 5
      %v2477 = vsel %vm297, %v2472, %v2476
      %v2478 = vshrl.u32 %v2186, 16
      %v2480 = vrot.slane %v2478, 4
      %v2481 = vor.u32 %v2480, %v2476
      %v2482 = vrot.slane %v2481, 4
      %v2484 = vshll.u32 %v2187, 16
      %v2486 = vrot.slane %v2484, 5
      %v2487 = vsel %vm297, %v2482, %v2486
      %v2489 = vshrl.u32 %v2188, 16
      %v2491 = vrot.slane %v2489, 4
      %v2492 = vshll.u32 %v2188, 16
      %v2494 = vrot.slane %v2492, 5
      %v2495 = vor.u32 %v2491, %v2494
      %v2496 = vrot.slane %v2495, 4
      %v2498 = vshll.u32 %v2189, 16
      %v2500 = vrot.slane %v2498, 5
      %v2501 = vsel %vm297, %v2496, %v2500
      %v2502 = vshrl.u32 %v2189, 16
      %v2504 = vrot.slane %v2502, 4
      %v2505 = vor.u32 %v2504, %v2500
      %v2506 = vrot.slane %v2505, 4
      %v2508 = vshll.u32 %v2190, 16
      %v2510 = vrot.slane %v2508, 5
      %v2511 = vsel %vm297, %v2506, %v2510
      %v2513 = vshrl.u32 %v2191, 16
      %v2515 = vrot.slane %v2513, 4
      %v2516 = vshll.u32 %v2191, 16
      %v2518 = vrot.slane %v2516, 5
      %v2519 = vor.u32 %v2515, %v2518
      %v2520 = vrot.slane %v2519, 4
      %v2522 = vshll.u32 %v2192, 16
      %v2524 = vrot.slane %v2522, 5
      %v2525 = vsel %vm297, %v2520, %v2524
      %v2526 = vshrl.u32 %v2192, 16
      %v2528 = vrot.slane %v2526, 4
      %v2529 = vor.u32 %v2528, %v2524
      %v2530 = vrot.slane %v2529, 4
      %v2532 = vshll.u32 %v2193, 16
      %v2534 = vrot.slane %v2532, 5
      %v2535 = vsel %vm297, %v2530, %v2534
      %v2537 = vshrl.u32 %v2194, 16
      %v2539 = vrot.slane %v2537, 4
      %v2540 = vshll.u32 %v2194, 16
      %v2542 = vrot.slane %v2540, 5
      %v2543 = vor.u32 %v2539, %v2542
      %v2544 = vrot.slane %v2543, 4
      %v2546 = vshll.u32 %v2195, 16
      %v2548 = vrot.slane %v2546, 5
      %v2549 = vsel %vm297, %v2544, %v2548
      %v2550 = vshrl.u32 %v2195, 16
      %v2552 = vrot.slane %v2550, 4
      %v2553 = vor.u32 %v2552, %v2548
      %v2554 = vrot.slane %v2553, 4
      %v2556 = vshll.u32 %v2196, 16
      %v2558 = vrot.slane %v2556, 5
      %v2559 = vsel %vm297, %v2554, %v2558
      %v2561 = vshrl.u32 %v2197, 16
      %v2563 = vrot.slane %v2561, 4
      %v2564 = vshll.u32 %v2197, 16
      %v2566 = vrot.slane %v2564, 5
      %v2567 = vor.u32 %v2563, %v2566
      %v2568 = vrot.slane %v2567, 4
      %v2570 = vshll.u32 %v2198, 16
      %v2572 = vrot.slane %v2570, 5
      %v2573 = vsel %vm297, %v2568, %v2572
      %v2574 = vshrl.u32 %v2198, 16
      %v2576 = vrot.slane %v2574, 4
      %v2577 = vor.u32 %v2576, %v2572
      %v2578 = vrot.slane %v2577, 4
      %v2580 = vshll.u32 %v2199, 16
      %v2582 = vrot.slane %v2580, 5
      %v2583 = vsel %vm297, %v2578, %v2582
      %s2584 = scalar_lea.vmem %s1, 256
      %v2585 = vld [vmem:[%s2584] sm:$0xf]
      %v2586 = vld [vmem:[%s2584 + $0x4] sm:$0xf]
      %v2587 = vld [vmem:[%s2584 + $0x8] sm:$0xf]
      %v2588 = vld [vmem:[%s2584 + $0xc] sm:$0xf]
      %v2589 = vld [vmem:[%s2584 + $0x10] sm:$0xf]
      %v2590 = vld [vmem:[%s2584 + $0x14] sm:$0xf]
      %v2591 = vld [vmem:[%s2584 + $0x18] sm:$0xf]
      %v2592 = vld [vmem:[%s2584 + $0x1c] sm:$0xf]
      %v2593 = vld [vmem:[%s2584 + $0x20] sm:$0xf]
      %v2594 = vld [vmem:[%s2584 + $0x24] sm:$0xf]
      %v2595 = vld [vmem:[%s2584 + $0x28] sm:$0xf]
      %v2596 = vld [vmem:[%s2584 + $0x2c] sm:$0xf]
      %v2597 = vld [vmem:[%s2584 + $0x30] sm:$0xf]
      %v2598 = vld [vmem:[%s2584 + $0x34] sm:$0xf]
      %v2599 = vld [vmem:[%s2584 + $0x38] sm:$0xf]
      %v2600 = vld [vmem:[%s2584 + $0x3c] sm:$0xf]
      %v2601 = vunpack.c.l.b16 %v2213
      %v2602 = vunpack.c.l.b16 %v2223
      %v2603 = vunpack.c.l.b16 %v2237
      %v2604 = vunpack.c.l.b16 %v2247
      %v2605 = vunpack.c.l.b16 %v2261
      %v2606 = vunpack.c.l.b16 %v2271
      %v2607 = vunpack.c.l.b16 %v2285
      %v2608 = vunpack.c.l.b16 %v2295
      %v2609 = vunpack.c.l.b16 %v2309
      %v2610 = vunpack.c.l.b16 %v2319
      %v2611 = vunpack.c.l.b16 %v2333
      %v2612 = vunpack.c.l.b16 %v2343
      %v2613 = vunpack.c.l.b16 %v2357
      %v2614 = vunpack.c.l.b16 %v2367
      %v2615 = vunpack.c.l.b16 %v2381
      %v2616 = vunpack.c.l.b16 %v2391
      %v2617 = vunpack.c.l.b16 %v2405
      %v2618 = vunpack.c.l.b16 %v2415
      %v2619 = vunpack.c.l.b16 %v2429
      %v2620 = vunpack.c.l.b16 %v2439
      %v2621 = vunpack.c.l.b16 %v2453
      %v2622 = vunpack.c.l.b16 %v2463
      %v2623 = vunpack.c.l.b16 %v2477
      %v2624 = vunpack.c.l.b16 %v2487
      %v2625 = vunpack.c.l.b16 %v2501
      %v2626 = vunpack.c.l.b16 %v2511
      %v2627 = vunpack.c.l.b16 %v2525
      %v2628 = vunpack.c.l.b16 %v2535
      %v2629 = vunpack.c.l.b16 %v2549
      %v2630 = vunpack.c.l.b16 %v2559
      %v2631 = vunpack.c.l.b16 %v2573
      %v2632 = vunpack.c.l.b16 %v2583
      %v2633 = vpack.c.b16 %v2602, %v2601
      %v2634 = vpack.c.b16 %v2604, %v2603
      %v2635 = vpack.c.b16 %v2606, %v2605
      %v2636 = vpack.c.b16 %v2608, %v2607
      %v2637 = vpack.c.b16 %v2610, %v2609
      %v2638 = vpack.c.b16 %v2612, %v2611
      %v2639 = vpack.c.b16 %v2614, %v2613
      %v2640 = vpack.c.b16 %v2616, %v2615
      %v2641 = vpack.c.b16 %v2618, %v2617
      %v2642 = vpack.c.b16 %v2620, %v2619
      %v2643 = vpack.c.b16 %v2622, %v2621
      %v2644 = vpack.c.b16 %v2624, %v2623
      %v2645 = vpack.c.b16 %v2626, %v2625
      %v2646 = vpack.c.b16 %v2628, %v2627
      %v2647 = vpack.c.b16 %v2630, %v2629
      %v2648 = vpack.c.b16 %v2632, %v2631
      %v2681 = vunpack.c.l.b16 %v2585
      %v2682 = vunpack.c.l.b16 %v2586
      %v2683 = vunpack.c.l.b16 %v2587
      %v2684 = vunpack.c.l.b16 %v2588
      %v2685 = vunpack.c.l.b16 %v2589
      %v2686 = vunpack.c.l.b16 %v2590
      %v2687 = vunpack.c.l.b16 %v2591
      %v2688 = vunpack.c.l.b16 %v2592
      %v2689 = vunpack.c.l.b16 %v2593
      %v2690 = vunpack.c.l.b16 %v2594
      %v2691 = vunpack.c.l.b16 %v2595
      %v2692 = vunpack.c.l.b16 %v2596
      %v2693 = vunpack.c.l.b16 %v2597
      %v2694 = vunpack.c.l.b16 %v2598
      %v2695 = vunpack.c.l.b16 %v2599
      %v2696 = vunpack.c.l.b16 %v2600
      %v2697 = vpack.c.b16 %v2682, %v2681
      %v2698 = vpack.c.b16 %v2684, %v2683
      %v2699 = vpack.c.b16 %v2686, %v2685
      %v2700 = vpack.c.b16 %v2688, %v2687
      %v2701 = vpack.c.b16 %v2690, %v2689
      %v2702 = vpack.c.b16 %v2692, %v2691
      %v2703 = vpack.c.b16 %v2694, %v2693
      %v2704 = vpack.c.b16 %v2696, %v2695
      %2713 = vmatprep.subr.bf16.mxu0 0
      %2714 = vmatpush1.bf16.msra.mxu0 %v2704
      %2715 = vmatprep.subr.bf16.mxu0 0
      %2716 = vmatpush1.bf16.msra.mxu0 %v2703
      %2717 = vmatprep.subr.bf16.mxu0 0
      %2718 = vmatpush1.bf16.msra.mxu0 %v2702
      %2719 = vmatprep.subr.bf16.mxu0 0
      %2720 = vmatpush1.bf16.msra.mxu0 %v2701
      %2721 = vmatprep.subr.bf16.mxu0 0
      %2722 = vmatpush1.bf16.msra.mxu0 %v2700
      %2723 = vmatprep.subr.bf16.mxu0 0
      %2724 = vmatpush1.bf16.msra.mxu0 %v2699
      %2725 = vmatprep.subr.bf16.mxu0 0
      %2726 = vmatpush1.bf16.msra.mxu0 %v2698
      %2727 = vmatprep.subr.bf16.mxu0 0
      %2728 = vmatpush1.bf16.msra.mxu0 %v2697
      %2729 = vmatprep.subr.bf16.mxu0 0
      %2730 = vmatpush2.bf16.msra.mxu0 0
      %2731 = vmatprep.subr.bf16.mxu0 0
      %2732 = vmatpush2.bf16.msra.mxu0 0
      %2733 = vmatprep.subr.bf16.mxu0 0
      %2734 = vmatpush2.bf16.msra.mxu0 0
      %2735 = vmatprep.subr.bf16.mxu0 0
      %2736 = vmatpush2.bf16.msra.mxu0 0
      %2737 = vmatprep.subr.bf16.mxu0 0
      %2738 = vmatpush2.bf16.msra.mxu0 0
      %2739 = vmatprep.subr.bf16.mxu0 0
      %2740 = vmatpush2.bf16.msra.mxu0 0
      %2741 = vmatprep.subr.bf16.mxu0 0
      %2742 = vmatpush2.bf16.msra.mxu0 0
      %2743 = vmatprep.subr.bf16.mxu0 0
      %2744 = vmatpush2.bf16.msra.mxu0 0
      %2745 = vmatprep.mubr.bf16.mxu0 0
      %2746 = vmatmul.mubr.bf16.gmra.mxu0 %v2633
      %v2747 = vpop.f32.mrf.mxu0
      %v2748 = vadd.f32 0.0, %v2747
      %v2749 = vpop.f32.mrf.mxu0
      %v2750 = vpop.f32.mrf.mxu0
      %v2751 = vadd.f32 0.0, %v2750
      %v2752 = vpop.f32.mrf.mxu0
      %2753 = vmatprep.mubr.bf16.mxu0 0
      %2754 = vmatmul.mubr.bf16.gmra.mxu0 %v2634
      %v2755 = vpop.f32.mrf.mxu0
      %v2756 = vadd.f32 0.0, %v2755
      %v2757 = vpop.f32.mrf.mxu0
      %v2758 = vpop.f32.mrf.mxu0
      %v2759 = vadd.f32 0.0, %v2758
      %v2760 = vpop.f32.mrf.mxu0
      %2761 = vmatprep.mubr.bf16.mxu0 0
      %2762 = vmatmul.mubr.bf16.gmra.mxu0 %v2635
      %v2763 = vpop.f32.mrf.mxu0
      %v2764 = vadd.f32 0.0, %v2763
      %v2765 = vpop.f32.mrf.mxu0
      %v2766 = vpop.f32.mrf.mxu0
      %v2767 = vadd.f32 0.0, %v2766
      %v2768 = vpop.f32.mrf.mxu0
      %2769 = vmatprep.mubr.bf16.mxu0 0
      %2770 = vmatmul.mubr.bf16.gmra.mxu0 %v2636
      %v2771 = vpop.f32.mrf.mxu0
      %v2772 = vadd.f32 0.0, %v2771
      %v2773 = vpop.f32.mrf.mxu0
      %v2774 = vpop.f32.mrf.mxu0
      %v2775 = vadd.f32 0.0, %v2774
      %v2776 = vpop.f32.mrf.mxu0
      %2777 = vmatprep.mubr.bf16.mxu0 0
      %2778 = vmatmul.mubr.bf16.gmra.mxu0 %v2637
      %v2779 = vpop.f32.mrf.mxu0
      %v2780 = vadd.f32 0.0, %v2779
      %v2781 = vpop.f32.mrf.mxu0
      %v2782 = vpop.f32.mrf.mxu0
      %v2783 = vadd.f32 0.0, %v2782
      %v2784 = vpop.f32.mrf.mxu0
      %2785 = vmatprep.mubr.bf16.mxu0 0
      %2786 = vmatmul.mubr.bf16.gmra.mxu0 %v2638
      %v2787 = vpop.f32.mrf.mxu0
      %v2788 = vadd.f32 0.0, %v2787
      %v2789 = vpop.f32.mrf.mxu0
      %v2790 = vpop.f32.mrf.mxu0
      %v2791 = vadd.f32 0.0, %v2790
      %v2792 = vpop.f32.mrf.mxu0
      %2793 = vmatprep.mubr.bf16.mxu0 0
      %2794 = vmatmul.mubr.bf16.gmra.mxu0 %v2639
      %v2795 = vpop.f32.mrf.mxu0
      %v2796 = vadd.f32 0.0, %v2795
      %v2797 = vpop.f32.mrf.mxu0
      %v2798 = vpop.f32.mrf.mxu0
      %v2799 = vadd.f32 0.0, %v2798
      %v2800 = vpop.f32.mrf.mxu0
      %2801 = vmatprep.mubr.bf16.mxu0 0
      %2802 = vmatmul.mubr.bf16.gmra.mxu0 %v2640
      %v2803 = vpop.f32.mrf.mxu0
      %v2804 = vadd.f32 0.0, %v2803
      %v2805 = vpop.f32.mrf.mxu0
      %v2806 = vpop.f32.mrf.mxu0
      %v2807 = vadd.f32 0.0, %v2806
      %v2808 = vpop.f32.mrf.mxu0
      %2809 = vmatprep.mubr.bf16.mxu0 0
      %2810 = vmatmul.mubr.bf16.gmra.mxu0 %v2641
      %v2811 = vpop.f32.mrf.mxu0
      %v2812 = vadd.f32 0.0, %v2811
      %v2813 = vpop.f32.mrf.mxu0
      %v2814 = vpop.f32.mrf.mxu0
      %v2815 = vadd.f32 0.0, %v2814
      %v2816 = vpop.f32.mrf.mxu0
      %2817 = vmatprep.mubr.bf16.mxu0 0
      %2818 = vmatmul.mubr.bf16.gmra.mxu0 %v2642
      %v2819 = vpop.f32.mrf.mxu0
      %v2820 = vadd.f32 0.0, %v2819
      %v2821 = vpop.f32.mrf.mxu0
      %v2822 = vpop.f32.mrf.mxu0
      %v2823 = vadd.f32 0.0, %v2822
      %v2824 = vpop.f32.mrf.mxu0
      %2825 = vmatprep.mubr.bf16.mxu0 0
      %2826 = vmatmul.mubr.bf16.gmra.mxu0 %v2643
      %v2827 = vpop.f32.mrf.mxu0
      %v2828 = vadd.f32 0.0, %v2827
      %v2829 = vpop.f32.mrf.mxu0
      %v2830 = vpop.f32.mrf.mxu0
      %v2831 = vadd.f32 0.0, %v2830
      %v2832 = vpop.f32.mrf.mxu0
      %2833 = vmatprep.mubr.bf16.mxu0 0
      %2834 = vmatmul.mubr.bf16.gmra.mxu0 %v2644
      %v2835 = vpop.f32.mrf.mxu0
      %v2836 = vadd.f32 0.0, %v2835
      %v2837 = vpop.f32.mrf.mxu0
      %v2838 = vpop.f32.mrf.mxu0
      %v2839 = vadd.f32 0.0, %v2838
      %v2840 = vpop.f32.mrf.mxu0
      %2841 = vmatprep.mubr.bf16.mxu0 0
      %2842 = vmatmul.mubr.bf16.gmra.mxu0 %v2645
      %v2843 = vpop.f32.mrf.mxu0
      %v2844 = vadd.f32 0.0, %v2843
      %v2845 = vpop.f32.mrf.mxu0
      %v2846 = vpop.f32.mrf.mxu0
      %v2847 = vadd.f32 0.0, %v2846
      %v2848 = vpop.f32.mrf.mxu0
      %2849 = vmatprep.mubr.bf16.mxu0 0
      %2850 = vmatmul.mubr.bf16.gmra.mxu0 %v2646
      %v2851 = vpop.f32.mrf.mxu0
      %v2852 = vadd.f32 0.0, %v2851
      %v2853 = vpop.f32.mrf.mxu0
      %v2854 = vpop.f32.mrf.mxu0
      %v2855 = vadd.f32 0.0, %v2854
      %v2856 = vpop.f32.mrf.mxu0
      %2857 = vmatprep.mubr.bf16.mxu0 0
      %2858 = vmatmul.mubr.bf16.gmra.mxu0 %v2647
      %v2859 = vpop.f32.mrf.mxu0
      %v2860 = vadd.f32 0.0, %v2859
      %v2861 = vpop.f32.mrf.mxu0
      %v2862 = vpop.f32.mrf.mxu0
      %v2863 = vadd.f32 0.0, %v2862
      %v2864 = vpop.f32.mrf.mxu0
      %2865 = vmatprep.mubr.bf16.mxu0 0
      %2866 = vmatmul.mubr.bf16.gmra.mxu0 %v2648
      %v2867 = vpop.f32.mrf.mxu0
      %v2868 = vadd.f32 0.0, %v2867
      %v2869 = vpop.f32.mrf.mxu0
      %v2870 = vpop.f32.mrf.mxu0
      %v2871 = vadd.f32 0.0, %v2870
      %v2872 = vpop.f32.mrf.mxu0
      %2873 = vdwg.mxu0
      %v2874 = vadd.f32 %v2120, %v2748
      %v2875 = vadd.f32 %v2121, %v2751
      %v2876 = vadd.f32 %v2122, %v2756
      %v2877 = vadd.f32 %v2123, %v2759
      %v2878 = vadd.f32 %v2124, %v2764
      %v2879 = vadd.f32 %v2125, %v2767
      %v2880 = vadd.f32 %v2126, %v2772
      %v2881 = vadd.f32 %v2127, %v2775
      %v2882 = vadd.f32 %v2128, %v2780
      %v2883 = vadd.f32 %v2129, %v2783
      %v2884 = vadd.f32 %v2130, %v2788
      %v2885 = vadd.f32 %v2131, %v2791
      %v2886 = vadd.f32 %v2132, %v2796
      %v2887 = vadd.f32 %v2133, %v2799
      %v2888 = vadd.f32 %v2134, %v2804
      %v2889 = vadd.f32 %v2135, %v2807
      %v2890 = vadd.f32 %v2136, %v2812
      %v2891 = vadd.f32 %v2137, %v2815
      %v2892 = vadd.f32 %v2138, %v2820
      %v2893 = vadd.f32 %v2139, %v2823
      %v2894 = vadd.f32 %v2140, %v2828
      %v2895 = vadd.f32 %v2141, %v2831
      %v2896 = vadd.f32 %v2142, %v2836
      %v2897 = vadd.f32 %v2143, %v2839
      %v2898 = vadd.f32 %v2144, %v2844
      %v2899 = vadd.f32 %v2145, %v2847
      %v2900 = vadd.f32 %v2146, %v2852
      %v2901 = vadd.f32 %v2147, %v2855
      %v2902 = vadd.f32 %v2148, %v2860
      %v2903 = vadd.f32 %v2149, %v2863
      %v2904 = vadd.f32 %v2150, %v2868
      %v2905 = vadd.f32 %v2151, %v2871
      %v2906 = vld [vmem:[%s1765] sm:$0xe]
      %v2907 = vld [vmem:[%s1765 + $0xc] sm:$0xe]
      %v2908 = vld [vmem:[%s1765 + $0x18] sm:$0xe]
      %v2909 = vld [vmem:[%s1765 + $0x24] sm:$0xe]
      %v2910 = vld [vmem:[%s1765 + $0x30] sm:$0xe]
      %v2911 = vld [vmem:[%s1765 + $0x3c] sm:$0xe]
      %v2912 = vld [vmem:[%s1765 + $0x48] sm:$0xe]
      %v2913 = vld [vmem:[%s1765 + $0x54] sm:$0xe]
      %v2914 = vld [vmem:[%s1765 + $0x60] sm:$0xe]
      %v2915 = vld [vmem:[%s1765 + $0x6c] sm:$0xe]
      %v2916 = vld [vmem:[%s1765 + $0x78] sm:$0xe]
      %v2917 = vld [vmem:[%s1765 + $0x84] sm:$0xe]
      %v2918 = vld [vmem:[%s1765 + $0x90] sm:$0xe]
      %v2919 = vld [vmem:[%s1765 + $0x9c] sm:$0xe]
      %v2920 = vld [vmem:[%s1765 + $0xa8] sm:$0xe]
      %v2921 = vld [vmem:[%s1765 + $0xb4] sm:$0xe]
      %v2970 = vrot.slane %v2906, 5
      %v2971 = vrot.slane %v2970, 4
      %v2972 = vrot.slane %v2153, 5
      %v2973 = vsel %vm1327, %v2971, %v2972
      %v2974 = vrot.slane %v2972, 4
      %v2975 = vrot.slane %v2154, 5
      %v2976 = vsel %vm1327, %v2974, %v2975
      %v2977 = vrot.slane %v2907, 5
      %v2978 = vrot.slane %v2977, 4
      %v2979 = vrot.slane %v2156, 5
      %v2980 = vsel %vm1327, %v2978, %v2979
      %v2981 = vrot.slane %v2979, 4
      %v2982 = vrot.slane %v2157, 5
      %v2983 = vsel %vm1327, %v2981, %v2982
      %v2984 = vrot.slane %v2908, 5
      %v2985 = vrot.slane %v2984, 4
      %v2986 = vrot.slane %v2159, 5
      %v2987 = vsel %vm1327, %v2985, %v2986
      %v2988 = vrot.slane %v2986, 4
      %v2989 = vrot.slane %v2160, 5
      %v2990 = vsel %vm1327, %v2988, %v2989
      %v2991 = vrot.slane %v2909, 5
      %v2992 = vrot.slane %v2991, 4
      %v2993 = vrot.slane %v2162, 5
      %v2994 = vsel %vm1327, %v2992, %v2993
      %v2995 = vrot.slane %v2993, 4
      %v2996 = vrot.slane %v2163, 5
      %v2997 = vsel %vm1327, %v2995, %v2996
      %v2998 = vrot.slane %v2910, 5
      %v2999 = vrot.slane %v2998, 4
      %v3000 = vrot.slane %v2165, 5
      %v3001 = vsel %vm1327, %v2999, %v3000
      %v3002 = vrot.slane %v3000, 4
      %v3003 = vrot.slane %v2166, 5
      %v3004 = vsel %vm1327, %v3002, %v3003
      %v3005 = vrot.slane %v2911, 5
      %v3006 = vrot.slane %v3005, 4
      %v3007 = vrot.slane %v2168, 5
      %v3008 = vsel %vm1327, %v3006, %v3007
      %v3009 = vrot.slane %v3007, 4
      %v3010 = vrot.slane %v2169, 5
      %v3011 = vsel %vm1327, %v3009, %v3010
      %v3012 = vrot.slane %v2912, 5
      %v3013 = vrot.slane %v3012, 4
      %v3014 = vrot.slane %v2171, 5
      %v3015 = vsel %vm1327, %v3013, %v3014
      %v3016 = vrot.slane %v3014, 4
      %v3017 = vrot.slane %v2172, 5
      %v3018 = vsel %vm1327, %v3016, %v3017
      %v3019 = vrot.slane %v2913, 5
      %v3020 = vrot.slane %v3019, 4
      %v3021 = vrot.slane %v2174, 5
      %v3022 = vsel %vm1327, %v3020, %v3021
      %v3023 = vrot.slane %v3021, 4
      %v3024 = vrot.slane %v2175, 5
      %v3025 = vsel %vm1327, %v3023, %v3024
      %v3026 = vrot.slane %v2914, 5
      %v3027 = vrot.slane %v3026, 4
      %v3028 = vrot.slane %v2177, 5
      %v3029 = vsel %vm1327, %v3027, %v3028
      %v3030 = vrot.slane %v3028, 4
      %v3031 = vrot.slane %v2178, 5
      %v3032 = vsel %vm1327, %v3030, %v3031
      %v3033 = vrot.slane %v2915, 5
      %v3034 = vrot.slane %v3033, 4
      %v3035 = vrot.slane %v2180, 5
      %v3036 = vsel %vm1327, %v3034, %v3035
      %v3037 = vrot.slane %v3035, 4
      %v3038 = vrot.slane %v2181, 5
      %v3039 = vsel %vm1327, %v3037, %v3038
      %v3040 = vrot.slane %v2916, 5
      %v3041 = vrot.slane %v3040, 4
      %v3042 = vrot.slane %v2183, 5
      %v3043 = vsel %vm1327, %v3041, %v3042
      %v3044 = vrot.slane %v3042, 4
      %v3045 = vrot.slane %v2184, 5
      %v3046 = vsel %vm1327, %v3044, %v3045
      %v3047 = vrot.slane %v2917, 5
      %v3048 = vrot.slane %v3047, 4
      %v3049 = vrot.slane %v2186, 5
      %v3050 = vsel %vm1327, %v3048, %v3049
      %v3051 = vrot.slane %v3049, 4
      %v3052 = vrot.slane %v2187, 5
      %v3053 = vsel %vm1327, %v3051, %v3052
      %v3054 = vrot.slane %v2918, 5
      %v3055 = vrot.slane %v3054, 4
      %v3056 = vrot.slane %v2189, 5
      %v3057 = vsel %vm1327, %v3055, %v3056
      %v3058 = vrot.slane %v3056, 4
      %v3059 = vrot.slane %v2190, 5
      %v3060 = vsel %vm1327, %v3058, %v3059
      %v3061 = vrot.slane %v2919, 5
      %v3062 = vrot.slane %v3061, 4
      %v3063 = vrot.slane %v2192, 5
      %v3064 = vsel %vm1327, %v3062, %v3063
      %v3065 = vrot.slane %v3063, 4
      %v3066 = vrot.slane %v2193, 5
      %v3067 = vsel %vm1327, %v3065, %v3066
      %v3068 = vrot.slane %v2920, 5
      %v3069 = vrot.slane %v3068, 4
      %v3070 = vrot.slane %v2195, 5
      %v3071 = vsel %vm1327, %v3069, %v3070
      %v3072 = vrot.slane %v3070, 4
      %v3073 = vrot.slane %v2196, 5
      %v3074 = vsel %vm1327, %v3072, %v3073
      %v3075 = vrot.slane %v2921, 5
      %v3076 = vrot.slane %v3075, 4
      %v3077 = vrot.slane %v2198, 5
      %v3078 = vsel %vm1327, %v3076, %v3077
      %v3079 = vrot.slane %v3077, 4
      %v3080 = vrot.slane %v2199, 5
      %v3081 = vsel %vm1327, %v3079, %v3080
      %s3082 = scalar_lea.vmem %s1, 320
      %v3083 = vld [vmem:[%s3082] sm:$0xf]
      %v3084 = vld [vmem:[%s3082 + $0x4] sm:$0xf]
      %v3085 = vld [vmem:[%s3082 + $0x8] sm:$0xf]
      %v3086 = vld [vmem:[%s3082 + $0xc] sm:$0xf]
      %v3087 = vld [vmem:[%s3082 + $0x10] sm:$0xf]
      %v3088 = vld [vmem:[%s3082 + $0x14] sm:$0xf]
      %v3089 = vld [vmem:[%s3082 + $0x18] sm:$0xf]
      %v3090 = vld [vmem:[%s3082 + $0x1c] sm:$0xf]
      %v3091 = vld [vmem:[%s3082 + $0x20] sm:$0xf]
      %v3092 = vld [vmem:[%s3082 + $0x24] sm:$0xf]
      %v3093 = vld [vmem:[%s3082 + $0x28] sm:$0xf]
      %v3094 = vld [vmem:[%s3082 + $0x2c] sm:$0xf]
      %v3095 = vld [vmem:[%s3082 + $0x30] sm:$0xf]
      %v3096 = vld [vmem:[%s3082 + $0x34] sm:$0xf]
      %v3097 = vld [vmem:[%s3082 + $0x38] sm:$0xf]
      %v3098 = vld [vmem:[%s3082 + $0x3c] sm:$0xf]
      %v3099 = vunpack.c.l.b16 %v2973
      %v3100 = vunpack.c.l.b16 %v2976
      %v3101 = vunpack.c.l.b16 %v2980
      %v3102 = vunpack.c.l.b16 %v2983
      %v3103 = vunpack.c.l.b16 %v2987
      %v3104 = vunpack.c.l.b16 %v2990
      %v3105 = vunpack.c.l.b16 %v2994
      %v3106 = vunpack.c.l.b16 %v2997
      %v3107 = vunpack.c.l.b16 %v3001
      %v3108 = vunpack.c.l.b16 %v3004
      %v3109 = vunpack.c.l.b16 %v3008
      %v3110 = vunpack.c.l.b16 %v3011
      %v3111 = vunpack.c.l.b16 %v3015
      %v3112 = vunpack.c.l.b16 %v3018
      %v3113 = vunpack.c.l.b16 %v3022
      %v3114 = vunpack.c.l.b16 %v3025
      %v3115 = vunpack.c.l.b16 %v3029
      %v3116 = vunpack.c.l.b16 %v3032
      %v3117 = vunpack.c.l.b16 %v3036
      %v3118 = vunpack.c.l.b16 %v3039
      %v3119 = vunpack.c.l.b16 %v3043
      %v3120 = vunpack.c.l.b16 %v3046
      %v3121 = vunpack.c.l.b16 %v3050
      %v3122 = vunpack.c.l.b16 %v3053
      %v3123 = vunpack.c.l.b16 %v3057
      %v3124 = vunpack.c.l.b16 %v3060
      %v3125 = vunpack.c.l.b16 %v3064
      %v3126 = vunpack.c.l.b16 %v3067
      %v3127 = vunpack.c.l.b16 %v3071
      %v3128 = vunpack.c.l.b16 %v3074
      %v3129 = vunpack.c.l.b16 %v3078
      %v3130 = vunpack.c.l.b16 %v3081
      %v3131 = vpack.c.b16 %v3100, %v3099
      %v3132 = vpack.c.b16 %v3102, %v3101
      %v3133 = vpack.c.b16 %v3104, %v3103
      %v3134 = vpack.c.b16 %v3106, %v3105
      %v3135 = vpack.c.b16 %v3108, %v3107
      %v3136 = vpack.c.b16 %v3110, %v3109
      %v3137 = vpack.c.b16 %v3112, %v3111
      %v3138 = vpack.c.b16 %v3114, %v3113
      %v3139 = vpack.c.b16 %v3116, %v3115
      %v3140 = vpack.c.b16 %v3118, %v3117
      %v3141 = vpack.c.b16 %v3120, %v3119
      %v3142 = vpack.c.b16 %v3122, %v3121
      %v3143 = vpack.c.b16 %v3124, %v3123
      %v3144 = vpack.c.b16 %v3126, %v3125
      %v3145 = vpack.c.b16 %v3128, %v3127
      %v3146 = vpack.c.b16 %v3130, %v3129
      %v3179 = vunpack.c.l.b16 %v3083
      %v3180 = vunpack.c.l.b16 %v3084
      %v3181 = vunpack.c.l.b16 %v3085
      %v3182 = vunpack.c.l.b16 %v3086
      %v3183 = vunpack.c.l.b16 %v3087
      %v3184 = vunpack.c.l.b16 %v3088
      %v3185 = vunpack.c.l.b16 %v3089
      %v3186 = vunpack.c.l.b16 %v3090
      %v3187 = vunpack.c.l.b16 %v3091
      %v3188 = vunpack.c.l.b16 %v3092
      %v3189 = vunpack.c.l.b16 %v3093
      %v3190 = vunpack.c.l.b16 %v3094
      %v3191 = vunpack.c.l.b16 %v3095
      %v3192 = vunpack.c.l.b16 %v3096
      %v3193 = vunpack.c.l.b16 %v3097
      %v3194 = vunpack.c.l.b16 %v3098
      %v3195 = vpack.c.b16 %v3180, %v3179
      %v3196 = vpack.c.b16 %v3182, %v3181
      %v3197 = vpack.c.b16 %v3184, %v3183
      %v3198 = vpack.c.b16 %v3186, %v3185
      %v3199 = vpack.c.b16 %v3188, %v3187
      %v3200 = vpack.c.b16 %v3190, %v3189
      %v3201 = vpack.c.b16 %v3192, %v3191
      %v3202 = vpack.c.b16 %v3194, %v3193
      %3211 = vmatprep.subr.bf16.mxu0 0
      %3212 = vmatpush1.bf16.msra.mxu0 %v3202
      %3213 = vmatprep.subr.bf16.mxu0 0
      %3214 = vmatpush1.bf16.msra.mxu0 %v3201
      %3215 = vmatprep.subr.bf16.mxu0 0
      %3216 = vmatpush1.bf16.msra.mxu0 %v3200
      %3217 = vmatprep.subr.bf16.mxu0 0
      %3218 = vmatpush1.bf16.msra.mxu0 %v3199
      %3219 = vmatprep.subr.bf16.mxu0 0
      %3220 = vmatpush1.bf16.msra.mxu0 %v3198
      %3221 = vmatprep.subr.bf16.mxu0 0
      %3222 = vmatpush1.bf16.msra.mxu0 %v3197
      %3223 = vmatprep.subr.bf16.mxu0 0
      %3224 = vmatpush1.bf16.msra.mxu0 %v3196
      %3225 = vmatprep.subr.bf16.mxu0 0
      %3226 = vmatpush1.bf16.msra.mxu0 %v3195
      %3227 = vmatprep.subr.bf16.mxu0 0
      %3228 = vmatpush2.bf16.msra.mxu0 0
      %3229 = vmatprep.subr.bf16.mxu0 0
      %3230 = vmatpush2.bf16.msra.mxu0 0
      %3231 = vmatprep.subr.bf16.mxu0 0
      %3232 = vmatpush2.bf16.msra.mxu0 0
      %3233 = vmatprep.subr.bf16.mxu0 0
      %3234 = vmatpush2.bf16.msra.mxu0 0
      %3235 = vmatprep.subr.bf16.mxu0 0
      %3236 = vmatpush2.bf16.msra.mxu0 0
      %3237 = vmatprep.subr.bf16.mxu0 0
      %3238 = vmatpush2.bf16.msra.mxu0 0
      %3239 = vmatprep.subr.bf16.mxu0 0
      %3240 = vmatpush2.bf16.msra.mxu0 0
      %3241 = vmatprep.subr.bf16.mxu0 0
      %3242 = vmatpush2.bf16.msra.mxu0 0
      %3243 = vmatprep.mubr.bf16.mxu0 0
      %3244 = vmatmul.mubr.bf16.gmra.mxu0 %v3131
      %v3245 = vpop.f32.mrf.mxu0
      %v3246 = vadd.f32 0.0, %v3245
      %v3247 = vpop.f32.mrf.mxu0
      %v3248 = vpop.f32.mrf.mxu0
      %v3249 = vadd.f32 0.0, %v3248
      %v3250 = vpop.f32.mrf.mxu0
      %3251 = vmatprep.mubr.bf16.mxu0 0
      %3252 = vmatmul.mubr.bf16.gmra.mxu0 %v3132
      %v3253 = vpop.f32.mrf.mxu0
      %v3254 = vadd.f32 0.0, %v3253
      %v3255 = vpop.f32.mrf.mxu0
      %v3256 = vpop.f32.mrf.mxu0
      %v3257 = vadd.f32 0.0, %v3256
      %v3258 = vpop.f32.mrf.mxu0
      %3259 = vmatprep.mubr.bf16.mxu0 0
      %3260 = vmatmul.mubr.bf16.gmra.mxu0 %v3133
      %v3261 = vpop.f32.mrf.mxu0
      %v3262 = vadd.f32 0.0, %v3261
      %v3263 = vpop.f32.mrf.mxu0
      %v3264 = vpop.f32.mrf.mxu0
      %v3265 = vadd.f32 0.0, %v3264
      %v3266 = vpop.f32.mrf.mxu0
      %3267 = vmatprep.mubr.bf16.mxu0 0
      %3268 = vmatmul.mubr.bf16.gmra.mxu0 %v3134
      %v3269 = vpop.f32.mrf.mxu0
      %v3270 = vadd.f32 0.0, %v3269
      %v3271 = vpop.f32.mrf.mxu0
      %v3272 = vpop.f32.mrf.mxu0
      %v3273 = vadd.f32 0.0, %v3272
      %v3274 = vpop.f32.mrf.mxu0
      %3275 = vmatprep.mubr.bf16.mxu0 0
      %3276 = vmatmul.mubr.bf16.gmra.mxu0 %v3135
      %v3277 = vpop.f32.mrf.mxu0
      %v3278 = vadd.f32 0.0, %v3277
      %v3279 = vpop.f32.mrf.mxu0
      %v3280 = vpop.f32.mrf.mxu0
      %v3281 = vadd.f32 0.0, %v3280
      %v3282 = vpop.f32.mrf.mxu0
      %3283 = vmatprep.mubr.bf16.mxu0 0
      %3284 = vmatmul.mubr.bf16.gmra.mxu0 %v3136
      %v3285 = vpop.f32.mrf.mxu0
      %v3286 = vadd.f32 0.0, %v3285
      %v3287 = vpop.f32.mrf.mxu0
      %v3288 = vpop.f32.mrf.mxu0
      %v3289 = vadd.f32 0.0, %v3288
      %v3290 = vpop.f32.mrf.mxu0
      %3291 = vmatprep.mubr.bf16.mxu0 0
      %3292 = vmatmul.mubr.bf16.gmra.mxu0 %v3137
      %v3293 = vpop.f32.mrf.mxu0
      %v3294 = vadd.f32 0.0, %v3293
      %v3295 = vpop.f32.mrf.mxu0
      %v3296 = vpop.f32.mrf.mxu0
      %v3297 = vadd.f32 0.0, %v3296
      %v3298 = vpop.f32.mrf.mxu0
      %3299 = vmatprep.mubr.bf16.mxu0 0
      %3300 = vmatmul.mubr.bf16.gmra.mxu0 %v3138
      %v3301 = vpop.f32.mrf.mxu0
      %v3302 = vadd.f32 0.0, %v3301
      %v3303 = vpop.f32.mrf.mxu0
      %v3304 = vpop.f32.mrf.mxu0
      %v3305 = vadd.f32 0.0, %v3304
      %v3306 = vpop.f32.mrf.mxu0
      %3307 = vmatprep.mubr.bf16.mxu0 0
      %3308 = vmatmul.mubr.bf16.gmra.mxu0 %v3139
      %v3309 = vpop.f32.mrf.mxu0
      %v3310 = vadd.f32 0.0, %v3309
      %v3311 = vpop.f32.mrf.mxu0
      %v3312 = vpop.f32.mrf.mxu0
      %v3313 = vadd.f32 0.0, %v3312
      %v3314 = vpop.f32.mrf.mxu0
      %3315 = vmatprep.mubr.bf16.mxu0 0
      %3316 = vmatmul.mubr.bf16.gmra.mxu0 %v3140
      %v3317 = vpop.f32.mrf.mxu0
      %v3318 = vadd.f32 0.0, %v3317
      %v3319 = vpop.f32.mrf.mxu0
      %v3320 = vpop.f32.mrf.mxu0
      %v3321 = vadd.f32 0.0, %v3320
      %v3322 = vpop.f32.mrf.mxu0
      %3323 = vmatprep.mubr.bf16.mxu0 0
      %3324 = vmatmul.mubr.bf16.gmra.mxu0 %v3141
      %v3325 = vpop.f32.mrf.mxu0
      %v3326 = vadd.f32 0.0, %v3325
      %v3327 = vpop.f32.mrf.mxu0
      %v3328 = vpop.f32.mrf.mxu0
      %v3329 = vadd.f32 0.0, %v3328
      %v3330 = vpop.f32.mrf.mxu0
      %3331 = vmatprep.mubr.bf16.mxu0 0
      %3332 = vmatmul.mubr.bf16.gmra.mxu0 %v3142
      %v3333 = vpop.f32.mrf.mxu0
      %v3334 = vadd.f32 0.0, %v3333
      %v3335 = vpop.f32.mrf.mxu0
      %v3336 = vpop.f32.mrf.mxu0
      %v3337 = vadd.f32 0.0, %v3336
      %v3338 = vpop.f32.mrf.mxu0
      %3339 = vmatprep.mubr.bf16.mxu0 0
      %3340 = vmatmul.mubr.bf16.gmra.mxu0 %v3143
      %v3341 = vpop.f32.mrf.mxu0
      %v3342 = vadd.f32 0.0, %v3341
      %v3343 = vpop.f32.mrf.mxu0
      %v3344 = vpop.f32.mrf.mxu0
      %v3345 = vadd.f32 0.0, %v3344
      %v3346 = vpop.f32.mrf.mxu0
      %3347 = vmatprep.mubr.bf16.mxu0 0
      %3348 = vmatmul.mubr.bf16.gmra.mxu0 %v3144
      %v3349 = vpop.f32.mrf.mxu0
      %v3350 = vadd.f32 0.0, %v3349
      %v3351 = vpop.f32.mrf.mxu0
      %v3352 = vpop.f32.mrf.mxu0
      %v3353 = vadd.f32 0.0, %v3352
      %v3354 = vpop.f32.mrf.mxu0
      %3355 = vmatprep.mubr.bf16.mxu0 0
      %3356 = vmatmul.mubr.bf16.gmra.mxu0 %v3145
      %v3357 = vpop.f32.mrf.mxu0
      %v3358 = vadd.f32 0.0, %v3357
      %v3359 = vpop.f32.mrf.mxu0
      %v3360 = vpop.f32.mrf.mxu0
      %v3361 = vadd.f32 0.0, %v3360
      %v3362 = vpop.f32.mrf.mxu0
      %3363 = vmatprep.mubr.bf16.mxu0 0
      %3364 = vmatmul.mubr.bf16.gmra.mxu0 %v3146
      %v3365 = vpop.f32.mrf.mxu0
      %v3366 = vadd.f32 0.0, %v3365
      %v3367 = vpop.f32.mrf.mxu0
      %v3368 = vpop.f32.mrf.mxu0
      %v3369 = vadd.f32 0.0, %v3368
      %v3370 = vpop.f32.mrf.mxu0
      %3371 = vdwg.mxu0
      %v3372 = vadd.f32 %v2874, %v3246
      %v3373 = vadd.f32 %v2875, %v3249
      %v3374 = vadd.f32 %v2876, %v3254
      %v3375 = vadd.f32 %v2877, %v3257
      %v3376 = vadd.f32 %v2878, %v3262
      %v3377 = vadd.f32 %v2879, %v3265
      %v3378 = vadd.f32 %v2880, %v3270
      %v3379 = vadd.f32 %v2881, %v3273
      %v3380 = vadd.f32 %v2882, %v3278
      %v3381 = vadd.f32 %v2883, %v3281
      %v3382 = vadd.f32 %v2884, %v3286
      %v3383 = vadd.f32 %v2885, %v3289
      %v3384 = vadd.f32 %v2886, %v3294
      %v3385 = vadd.f32 %v2887, %v3297
      %v3386 = vadd.f32 %v2888, %v3302
      %v3387 = vadd.f32 %v2889, %v3305
      %v3388 = vadd.f32 %v2890, %v3310
      %v3389 = vadd.f32 %v2891, %v3313
      %v3390 = vadd.f32 %v2892, %v3318
      %v3391 = vadd.f32 %v2893, %v3321
      %v3392 = vadd.f32 %v2894, %v3326
      %v3393 = vadd.f32 %v2895, %v3329
      %v3394 = vadd.f32 %v2896, %v3334
      %v3395 = vadd.f32 %v2897, %v3337
      %v3396 = vadd.f32 %v2898, %v3342
      %v3397 = vadd.f32 %v2899, %v3345
      %v3398 = vadd.f32 %v2900, %v3350
      %v3399 = vadd.f32 %v2901, %v3353
      %v3400 = vadd.f32 %v2902, %v3358
      %v3401 = vadd.f32 %v2903, %v3361
      %v3402 = vadd.f32 %v2904, %v3366
      %v3403 = vadd.f32 %v2905, %v3369
      %s3404 = sadd.s32 %s227, 2
      %s3405 = smul.u32 %s3404, 3
      %s3406 = smul.addr %s3405, 4
      %s3407 = scalar_lea.vmem %s206, %s3406
      %v3408 = vld [vmem:[%s3407] sm:$0xf]
      %v3409 = vld [vmem:[%s3407 + $0x4] sm:$0xf]
      %v3410 = vld [vmem:[%s3407 + $0xc] sm:$0xf]
      %v3411 = vld [vmem:[%s3407 + $0x10] sm:$0xf]
      %v3412 = vld [vmem:[%s3407 + $0x18] sm:$0xf]
      %v3413 = vld [vmem:[%s3407 + $0x1c] sm:$0xf]
      %v3414 = vld [vmem:[%s3407 + $0x24] sm:$0xf]
      %v3415 = vld [vmem:[%s3407 + $0x28] sm:$0xf]
      %v3416 = vld [vmem:[%s3407 + $0x30] sm:$0xf]
      %v3417 = vld [vmem:[%s3407 + $0x34] sm:$0xf]
      %v3418 = vld [vmem:[%s3407 + $0x3c] sm:$0xf]
      %v3419 = vld [vmem:[%s3407 + $0x40] sm:$0xf]
      %v3420 = vld [vmem:[%s3407 + $0x48] sm:$0xf]
      %v3421 = vld [vmem:[%s3407 + $0x4c] sm:$0xf]
      %v3422 = vld [vmem:[%s3407 + $0x54] sm:$0xf]
      %v3423 = vld [vmem:[%s3407 + $0x58] sm:$0xf]
      %v3424 = vld [vmem:[%s3407 + $0x60] sm:$0xf]
      %v3425 = vld [vmem:[%s3407 + $0x64] sm:$0xf]
      %v3426 = vld [vmem:[%s3407 + $0x6c] sm:$0xf]
      %v3427 = vld [vmem:[%s3407 + $0x70] sm:$0xf]
      %v3428 = vld [vmem:[%s3407 + $0x78] sm:$0xf]
      %v3429 = vld [vmem:[%s3407 + $0x7c] sm:$0xf]
      %v3430 = vld [vmem:[%s3407 + $0x84] sm:$0xf]
      %v3431 = vld [vmem:[%s3407 + $0x88] sm:$0xf]
      %v3432 = vld [vmem:[%s3407 + $0x90] sm:$0xf]
      %v3433 = vld [vmem:[%s3407 + $0x94] sm:$0xf]
      %v3434 = vld [vmem:[%s3407 + $0x9c] sm:$0xf]
      %v3435 = vld [vmem:[%s3407 + $0xa0] sm:$0xf]
      %v3436 = vld [vmem:[%s3407 + $0xa8] sm:$0xf]
      %v3437 = vld [vmem:[%s3407 + $0xac] sm:$0xf]
      %v3438 = vld [vmem:[%s3407 + $0xb4] sm:$0xf]
      %v3439 = vld [vmem:[%s3407 + $0xb8] sm:$0xf]
      %s3440 = scalar_lea.vmem %s1, 384
      %v3441 = vld [vmem:[%s3440] sm:$0xf]
      %v3442 = vld [vmem:[%s3440 + $0x4] sm:$0xf]
      %v3443 = vld [vmem:[%s3440 + $0x8] sm:$0xf]
      %v3444 = vld [vmem:[%s3440 + $0xc] sm:$0xf]
      %v3445 = vld [vmem:[%s3440 + $0x10] sm:$0xf]
      %v3446 = vld [vmem:[%s3440 + $0x14] sm:$0xf]
      %v3447 = vld [vmem:[%s3440 + $0x18] sm:$0xf]
      %v3448 = vld [vmem:[%s3440 + $0x1c] sm:$0xf]
      %v3449 = vld [vmem:[%s3440 + $0x20] sm:$0xf]
      %v3450 = vld [vmem:[%s3440 + $0x24] sm:$0xf]
      %v3451 = vld [vmem:[%s3440 + $0x28] sm:$0xf]
      %v3452 = vld [vmem:[%s3440 + $0x2c] sm:$0xf]
      %v3453 = vld [vmem:[%s3440 + $0x30] sm:$0xf]
      %v3454 = vld [vmem:[%s3440 + $0x34] sm:$0xf]
      %v3455 = vld [vmem:[%s3440 + $0x38] sm:$0xf]
      %v3456 = vld [vmem:[%s3440 + $0x3c] sm:$0xf]
      %v3489 = vunpack.c.l.b16 %v3408
      %v3490 = vunpack.c.l.b16 %v3409
      %v3491 = vunpack.c.l.b16 %v3410
      %v3492 = vunpack.c.l.b16 %v3411
      %v3493 = vunpack.c.l.b16 %v3412
      %v3494 = vunpack.c.l.b16 %v3413
      %v3495 = vunpack.c.l.b16 %v3414
      %v3496 = vunpack.c.l.b16 %v3415
      %v3497 = vunpack.c.l.b16 %v3416
      %v3498 = vunpack.c.l.b16 %v3417
      %v3499 = vunpack.c.l.b16 %v3418
      %v3500 = vunpack.c.l.b16 %v3419
      %v3501 = vunpack.c.l.b16 %v3420
      %v3502 = vunpack.c.l.b16 %v3421
      %v3503 = vunpack.c.l.b16 %v3422
      %v3504 = vunpack.c.l.b16 %v3423
      %v3505 = vunpack.c.l.b16 %v3424
      %v3506 = vunpack.c.l.b16 %v3425
      %v3507 = vunpack.c.l.b16 %v3426
      %v3508 = vunpack.c.l.b16 %v3427
      %v3509 = vunpack.c.l.b16 %v3428
      %v3510 = vunpack.c.l.b16 %v3429
      %v3511 = vunpack.c.l.b16 %v3430
      %v3512 = vunpack.c.l.b16 %v3431
      %v3513 = vunpack.c.l.b16 %v3432
      %v3514 = vunpack.c.l.b16 %v3433
      %v3515 = vunpack.c.l.b16 %v3434
      %v3516 = vunpack.c.l.b16 %v3435
      %v3517 = vunpack.c.l.b16 %v3436
      %v3518 = vunpack.c.l.b16 %v3437
      %v3519 = vunpack.c.l.b16 %v3438
      %v3520 = vunpack.c.l.b16 %v3439
      %v3521 = vpack.c.b16 %v3490, %v3489
      %v3522 = vpack.c.b16 %v3492, %v3491
      %v3523 = vpack.c.b16 %v3494, %v3493
      %v3524 = vpack.c.b16 %v3496, %v3495
      %v3525 = vpack.c.b16 %v3498, %v3497
      %v3526 = vpack.c.b16 %v3500, %v3499
      %v3527 = vpack.c.b16 %v3502, %v3501
      %v3528 = vpack.c.b16 %v3504, %v3503
      %v3529 = vpack.c.b16 %v3506, %v3505
      %v3530 = vpack.c.b16 %v3508, %v3507
      %v3531 = vpack.c.b16 %v3510, %v3509
      %v3532 = vpack.c.b16 %v3512, %v3511
      %v3533 = vpack.c.b16 %v3514, %v3513
      %v3534 = vpack.c.b16 %v3516, %v3515
      %v3535 = vpack.c.b16 %v3518, %v3517
      %v3536 = vpack.c.b16 %v3520, %v3519
      %v3569 = vunpack.c.l.b16 %v3441
      %v3570 = vunpack.c.l.b16 %v3442
      %v3571 = vunpack.c.l.b16 %v3443
      %v3572 = vunpack.c.l.b16 %v3444
      %v3573 = vunpack.c.l.b16 %v3445
      %v3574 = vunpack.c.l.b16 %v3446
      %v3575 = vunpack.c.l.b16 %v3447
      %v3576 = vunpack.c.l.b16 %v3448
      %v3577 = vunpack.c.l.b16 %v3449
      %v3578 = vunpack.c.l.b16 %v3450
      %v3579 = vunpack.c.l.b16 %v3451
      %v3580 = vunpack.c.l.b16 %v3452
      %v3581 = vunpack.c.l.b16 %v3453
      %v3582 = vunpack.c.l.b16 %v3454
      %v3583 = vunpack.c.l.b16 %v3455
      %v3584 = vunpack.c.l.b16 %v3456
      %v3585 = vpack.c.b16 %v3570, %v3569
      %v3586 = vpack.c.b16 %v3572, %v3571
      %v3587 = vpack.c.b16 %v3574, %v3573
      %v3588 = vpack.c.b16 %v3576, %v3575
      %v3589 = vpack.c.b16 %v3578, %v3577
      %v3590 = vpack.c.b16 %v3580, %v3579
      %v3591 = vpack.c.b16 %v3582, %v3581
      %v3592 = vpack.c.b16 %v3584, %v3583
      %3601 = vmatprep.subr.bf16.mxu0 0
      %3602 = vmatpush1.bf16.msra.mxu0 %v3592
      %3603 = vmatprep.subr.bf16.mxu0 0
      %3604 = vmatpush1.bf16.msra.mxu0 %v3591
      %3605 = vmatprep.subr.bf16.mxu0 0
      %3606 = vmatpush1.bf16.msra.mxu0 %v3590
      %3607 = vmatprep.subr.bf16.mxu0 0
      %3608 = vmatpush1.bf16.msra.mxu0 %v3589
      %3609 = vmatprep.subr.bf16.mxu0 0
      %3610 = vmatpush1.bf16.msra.mxu0 %v3588
      %3611 = vmatprep.subr.bf16.mxu0 0
      %3612 = vmatpush1.bf16.msra.mxu0 %v3587
      %3613 = vmatprep.subr.bf16.mxu0 0
      %3614 = vmatpush1.bf16.msra.mxu0 %v3586
      %3615 = vmatprep.subr.bf16.mxu0 0
      %3616 = vmatpush1.bf16.msra.mxu0 %v3585
      %3617 = vmatprep.subr.bf16.mxu0 0
      %3618 = vmatpush2.bf16.msra.mxu0 0
      %3619 = vmatprep.subr.bf16.mxu0 0
      %3620 = vmatpush2.bf16.msra.mxu0 0
      %3621 = vmatprep.subr.bf16.mxu0 0
      %3622 = vmatpush2.bf16.msra.mxu0 0
      %3623 = vmatprep.subr.bf16.mxu0 0
      %3624 = vmatpush2.bf16.msra.mxu0 0
      %3625 = vmatprep.subr.bf16.mxu0 0
      %3626 = vmatpush2.bf16.msra.mxu0 0
      %3627 = vmatprep.subr.bf16.mxu0 0
      %3628 = vmatpush2.bf16.msra.mxu0 0
      %3629 = vmatprep.subr.bf16.mxu0 0
      %3630 = vmatpush2.bf16.msra.mxu0 0
      %3631 = vmatprep.subr.bf16.mxu0 0
      %3632 = vmatpush2.bf16.msra.mxu0 0
      %3633 = vmatprep.mubr.bf16.mxu0 0
      %3634 = vmatmul.mubr.bf16.gmra.mxu0 %v3521
      %v3635 = vpop.f32.mrf.mxu0
      %v3636 = vadd.f32 0.0, %v3635
      %v3637 = vpop.f32.mrf.mxu0
      %v3638 = vpop.f32.mrf.mxu0
      %v3639 = vadd.f32 0.0, %v3638
      %v3640 = vpop.f32.mrf.mxu0
      %3641 = vmatprep.mubr.bf16.mxu0 0
      %3642 = vmatmul.mubr.bf16.gmra.mxu0 %v3522
      %v3643 = vpop.f32.mrf.mxu0
      %v3644 = vadd.f32 0.0, %v3643
      %v3645 = vpop.f32.mrf.mxu0
      %v3646 = vpop.f32.mrf.mxu0
      %v3647 = vadd.f32 0.0, %v3646
      %v3648 = vpop.f32.mrf.mxu0
      %3649 = vmatprep.mubr.bf16.mxu0 0
      %3650 = vmatmul.mubr.bf16.gmra.mxu0 %v3523
      %v3651 = vpop.f32.mrf.mxu0
      %v3652 = vadd.f32 0.0, %v3651
      %v3653 = vpop.f32.mrf.mxu0
      %v3654 = vpop.f32.mrf.mxu0
      %v3655 = vadd.f32 0.0, %v3654
      %v3656 = vpop.f32.mrf.mxu0
      %3657 = vmatprep.mubr.bf16.mxu0 0
      %3658 = vmatmul.mubr.bf16.gmra.mxu0 %v3524
      %v3659 = vpop.f32.mrf.mxu0
      %v3660 = vadd.f32 0.0, %v3659
      %v3661 = vpop.f32.mrf.mxu0
      %v3662 = vpop.f32.mrf.mxu0
      %v3663 = vadd.f32 0.0, %v3662
      %v3664 = vpop.f32.mrf.mxu0
      %3665 = vmatprep.mubr.bf16.mxu0 0
      %3666 = vmatmul.mubr.bf16.gmra.mxu0 %v3525
      %v3667 = vpop.f32.mrf.mxu0
      %v3668 = vadd.f32 0.0, %v3667
      %v3669 = vpop.f32.mrf.mxu0
      %v3670 = vpop.f32.mrf.mxu0
      %v3671 = vadd.f32 0.0, %v3670
      %v3672 = vpop.f32.mrf.mxu0
      %3673 = vmatprep.mubr.bf16.mxu0 0
      %3674 = vmatmul.mubr.bf16.gmra.mxu0 %v3526
      %v3675 = vpop.f32.mrf.mxu0
      %v3676 = vadd.f32 0.0, %v3675
      %v3677 = vpop.f32.mrf.mxu0
      %v3678 = vpop.f32.mrf.mxu0
      %v3679 = vadd.f32 0.0, %v3678
      %v3680 = vpop.f32.mrf.mxu0
      %3681 = vmatprep.mubr.bf16.mxu0 0
      %3682 = vmatmul.mubr.bf16.gmra.mxu0 %v3527
      %v3683 = vpop.f32.mrf.mxu0
      %v3684 = vadd.f32 0.0, %v3683
      %v3685 = vpop.f32.mrf.mxu0
      %v3686 = vpop.f32.mrf.mxu0
      %v3687 = vadd.f32 0.0, %v3686
      %v3688 = vpop.f32.mrf.mxu0
      %3689 = vmatprep.mubr.bf16.mxu0 0
      %3690 = vmatmul.mubr.bf16.gmra.mxu0 %v3528
      %v3691 = vpop.f32.mrf.mxu0
      %v3692 = vadd.f32 0.0, %v3691
      %v3693 = vpop.f32.mrf.mxu0
      %v3694 = vpop.f32.mrf.mxu0
      %v3695 = vadd.f32 0.0, %v3694
      %v3696 = vpop.f32.mrf.mxu0
      %3697 = vmatprep.mubr.bf16.mxu0 0
      %3698 = vmatmul.mubr.bf16.gmra.mxu0 %v3529
      %v3699 = vpop.f32.mrf.mxu0
      %v3700 = vadd.f32 0.0, %v3699
      %v3701 = vpop.f32.mrf.mxu0
      %v3702 = vpop.f32.mrf.mxu0
      %v3703 = vadd.f32 0.0, %v3702
      %v3704 = vpop.f32.mrf.mxu0
      %3705 = vmatprep.mubr.bf16.mxu0 0
      %3706 = vmatmul.mubr.bf16.gmra.mxu0 %v3530
      %v3707 = vpop.f32.mrf.mxu0
      %v3708 = vadd.f32 0.0, %v3707
      %v3709 = vpop.f32.mrf.mxu0
      %v3710 = vpop.f32.mrf.mxu0
      %v3711 = vadd.f32 0.0, %v3710
      %v3712 = vpop.f32.mrf.mxu0
      %3713 = vmatprep.mubr.bf16.mxu0 0
      %3714 = vmatmul.mubr.bf16.gmra.mxu0 %v3531
      %v3715 = vpop.f32.mrf.mxu0
      %v3716 = vadd.f32 0.0, %v3715
      %v3717 = vpop.f32.mrf.mxu0
      %v3718 = vpop.f32.mrf.mxu0
      %v3719 = vadd.f32 0.0, %v3718
      %v3720 = vpop.f32.mrf.mxu0
      %3721 = vmatprep.mubr.bf16.mxu0 0
      %3722 = vmatmul.mubr.bf16.gmra.mxu0 %v3532
      %v3723 = vpop.f32.mrf.mxu0
      %v3724 = vadd.f32 0.0, %v3723
      %v3725 = vpop.f32.mrf.mxu0
      %v3726 = vpop.f32.mrf.mxu0
      %v3727 = vadd.f32 0.0, %v3726
      %v3728 = vpop.f32.mrf.mxu0
      %3729 = vmatprep.mubr.bf16.mxu0 0
      %3730 = vmatmul.mubr.bf16.gmra.mxu0 %v3533
      %v3731 = vpop.f32.mrf.mxu0
      %v3732 = vadd.f32 0.0, %v3731
      %v3733 = vpop.f32.mrf.mxu0
      %v3734 = vpop.f32.mrf.mxu0
      %v3735 = vadd.f32 0.0, %v3734
      %v3736 = vpop.f32.mrf.mxu0
      %3737 = vmatprep.mubr.bf16.mxu0 0
      %3738 = vmatmul.mubr.bf16.gmra.mxu0 %v3534
      %v3739 = vpop.f32.mrf.mxu0
      %v3740 = vadd.f32 0.0, %v3739
      %v3741 = vpop.f32.mrf.mxu0
      %v3742 = vpop.f32.mrf.mxu0
      %v3743 = vadd.f32 0.0, %v3742
      %v3744 = vpop.f32.mrf.mxu0
      %3745 = vmatprep.mubr.bf16.mxu0 0
      %3746 = vmatmul.mubr.bf16.gmra.mxu0 %v3535
      %v3747 = vpop.f32.mrf.mxu0
      %v3748 = vadd.f32 0.0, %v3747
      %v3749 = vpop.f32.mrf.mxu0
      %v3750 = vpop.f32.mrf.mxu0
      %v3751 = vadd.f32 0.0, %v3750
      %v3752 = vpop.f32.mrf.mxu0
      %3753 = vmatprep.mubr.bf16.mxu0 0
      %3754 = vmatmul.mubr.bf16.gmra.mxu0 %v3536
      %v3755 = vpop.f32.mrf.mxu0
      %v3756 = vadd.f32 0.0, %v3755
      %v3757 = vpop.f32.mrf.mxu0
      %v3758 = vpop.f32.mrf.mxu0
      %v3759 = vadd.f32 0.0, %v3758
      %v3760 = vpop.f32.mrf.mxu0
      %3761 = vdwg.mxu0
      %v3762 = vadd.f32 %v3372, %v3636
      %v3763 = vadd.f32 %v3373, %v3639
      %v3764 = vadd.f32 %v3374, %v3644
      %v3765 = vadd.f32 %v3375, %v3647
      %v3766 = vadd.f32 %v3376, %v3652
      %v3767 = vadd.f32 %v3377, %v3655
      %v3768 = vadd.f32 %v3378, %v3660
      %v3769 = vadd.f32 %v3379, %v3663
      %v3770 = vadd.f32 %v3380, %v3668
      %v3771 = vadd.f32 %v3381, %v3671
      %v3772 = vadd.f32 %v3382, %v3676
      %v3773 = vadd.f32 %v3383, %v3679
      %v3774 = vadd.f32 %v3384, %v3684
      %v3775 = vadd.f32 %v3385, %v3687
      %v3776 = vadd.f32 %v3386, %v3692
      %v3777 = vadd.f32 %v3387, %v3695
      %v3778 = vadd.f32 %v3388, %v3700
      %v3779 = vadd.f32 %v3389, %v3703
      %v3780 = vadd.f32 %v3390, %v3708
      %v3781 = vadd.f32 %v3391, %v3711
      %v3782 = vadd.f32 %v3392, %v3716
      %v3783 = vadd.f32 %v3393, %v3719
      %v3784 = vadd.f32 %v3394, %v3724
      %v3785 = vadd.f32 %v3395, %v3727
      %v3786 = vadd.f32 %v3396, %v3732
      %v3787 = vadd.f32 %v3397, %v3735
      %v3788 = vadd.f32 %v3398, %v3740
      %v3789 = vadd.f32 %v3399, %v3743
      %v3790 = vadd.f32 %v3400, %v3748
      %v3791 = vadd.f32 %v3401, %v3751
      %v3792 = vadd.f32 %v3402, %v3756
      %v3793 = vadd.f32 %v3403, %v3759
      %v3794 = vld [vmem:[%s3407] sm:$0xf]
      %v3795 = vld [vmem:[%s3407 + $0x4] sm:$0xf]
      %v3796 = vld [vmem:[%s3407 + $0x8] sm:$0x1]
      %v3797 = vld [vmem:[%s3407 + $0xc] sm:$0xf]
      %v3798 = vld [vmem:[%s3407 + $0x10] sm:$0xf]
      %v3799 = vld [vmem:[%s3407 + $0x14] sm:$0x1]
      %v3800 = vld [vmem:[%s3407 + $0x18] sm:$0xf]
      %v3801 = vld [vmem:[%s3407 + $0x1c] sm:$0xf]
      %v3802 = vld [vmem:[%s3407 + $0x20] sm:$0x1]
      %v3803 = vld [vmem:[%s3407 + $0x24] sm:$0xf]
      %v3804 = vld [vmem:[%s3407 + $0x28] sm:$0xf]
      %v3805 = vld [vmem:[%s3407 + $0x2c] sm:$0x1]
      %v3806 = vld [vmem:[%s3407 + $0x30] sm:$0xf]
      %v3807 = vld [vmem:[%s3407 + $0x34] sm:$0xf]
      %v3808 = vld [vmem:[%s3407 + $0x38] sm:$0x1]
      %v3809 = vld [vmem:[%s3407 + $0x3c] sm:$0xf]
      %v3810 = vld [vmem:[%s3407 + $0x40] sm:$0xf]
      %v3811 = vld [vmem:[%s3407 + $0x44] sm:$0x1]
      %v3812 = vld [vmem:[%s3407 + $0x48] sm:$0xf]
      %v3813 = vld [vmem:[%s3407 + $0x4c] sm:$0xf]
      %v3814 = vld [vmem:[%s3407 + $0x50] sm:$0x1]
      %v3815 = vld [vmem:[%s3407 + $0x54] sm:$0xf]
      %v3816 = vld [vmem:[%s3407 + $0x58] sm:$0xf]
      %v3817 = vld [vmem:[%s3407 + $0x5c] sm:$0x1]
      %v3818 = vld [vmem:[%s3407 + $0x60] sm:$0xf]
      %v3819 = vld [vmem:[%s3407 + $0x64] sm:$0xf]
      %v3820 = vld [vmem:[%s3407 + $0x68] sm:$0x1]
      %v3821 = vld [vmem:[%s3407 + $0x6c] sm:$0xf]
      %v3822 = vld [vmem:[%s3407 + $0x70] sm:$0xf]
      %v3823 = vld [vmem:[%s3407 + $0x74] sm:$0x1]
      %v3824 = vld [vmem:[%s3407 + $0x78] sm:$0xf]
      %v3825 = vld [vmem:[%s3407 + $0x7c] sm:$0xf]
      %v3826 = vld [vmem:[%s3407 + $0x80] sm:$0x1]
      %v3827 = vld [vmem:[%s3407 + $0x84] sm:$0xf]
      %v3828 = vld [vmem:[%s3407 + $0x88] sm:$0xf]
      %v3829 = vld [vmem:[%s3407 + $0x8c] sm:$0x1]
      %v3830 = vld [vmem:[%s3407 + $0x90] sm:$0xf]
      %v3831 = vld [vmem:[%s3407 + $0x94] sm:$0xf]
      %v3832 = vld [vmem:[%s3407 + $0x98] sm:$0x1]
      %v3833 = vld [vmem:[%s3407 + $0x9c] sm:$0xf]
      %v3834 = vld [vmem:[%s3407 + $0xa0] sm:$0xf]
      %v3835 = vld [vmem:[%s3407 + $0xa4] sm:$0x1]
      %v3836 = vld [vmem:[%s3407 + $0xa8] sm:$0xf]
      %v3837 = vld [vmem:[%s3407 + $0xac] sm:$0xf]
      %v3838 = vld [vmem:[%s3407 + $0xb0] sm:$0x1]
      %v3839 = vld [vmem:[%s3407 + $0xb4] sm:$0xf]
      %v3840 = vld [vmem:[%s3407 + $0xb8] sm:$0xf]
      %v3841 = vld [vmem:[%s3407 + $0xbc] sm:$0x1]
      %v3843 = vshrl.u32 %v3794, 16
      %v3845 = vrot.slane %v3843, 4
      %v3846 = vshll.u32 %v3794, 16
      %v3848 = vrot.slane %v3846, 5
      %v3849 = vor.u32 %v3845, %v3848
      %v3850 = vrot.slane %v3849, 4
      %v3852 = vshll.u32 %v3795, 16
      %v3854 = vrot.slane %v3852, 5
      %v3855 = vsel %vm297, %v3850, %v3854
      %v3856 = vshrl.u32 %v3795, 16
      %v3858 = vrot.slane %v3856, 4
      %v3859 = vor.u32 %v3858, %v3854
      %v3860 = vrot.slane %v3859, 4
      %v3862 = vshll.u32 %v3796, 16
      %v3864 = vrot.slane %v3862, 5
      %v3865 = vsel %vm297, %v3860, %v3864
      %v3867 = vshrl.u32 %v3797, 16
      %v3869 = vrot.slane %v3867, 4
      %v3870 = vshll.u32 %v3797, 16
      %v3872 = vrot.slane %v3870, 5
      %v3873 = vor.u32 %v3869, %v3872
      %v3874 = vrot.slane %v3873, 4
      %v3876 = vshll.u32 %v3798, 16
      %v3878 = vrot.slane %v3876, 5
      %v3879 = vsel %vm297, %v3874, %v3878
      %v3880 = vshrl.u32 %v3798, 16
      %v3882 = vrot.slane %v3880, 4
      %v3883 = vor.u32 %v3882, %v3878
      %v3884 = vrot.slane %v3883, 4
      %v3886 = vshll.u32 %v3799, 16
      %v3888 = vrot.slane %v3886, 5
      %v3889 = vsel %vm297, %v3884, %v3888
      %v3891 = vshrl.u32 %v3800, 16
      %v3893 = vrot.slane %v3891, 4
      %v3894 = vshll.u32 %v3800, 16
      %v3896 = vrot.slane %v3894, 5
      %v3897 = vor.u32 %v3893, %v3896
      %v3898 = vrot.slane %v3897, 4
      %v3900 = vshll.u32 %v3801, 16
      %v3902 = vrot.slane %v3900, 5
      %v3903 = vsel %vm297, %v3898, %v3902
      %v3904 = vshrl.u32 %v3801, 16
      %v3906 = vrot.slane %v3904, 4
      %v3907 = vor.u32 %v3906, %v3902
      %v3908 = vrot.slane %v3907, 4
      %v3910 = vshll.u32 %v3802, 16
      %v3912 = vrot.slane %v3910, 5
      %v3913 = vsel %vm297, %v3908, %v3912
      %v3915 = vshrl.u32 %v3803, 16
      %v3917 = vrot.slane %v3915, 4
      %v3918 = vshll.u32 %v3803, 16
      %v3920 = vrot.slane %v3918, 5
      %v3921 = vor.u32 %v3917, %v3920
      %v3922 = vrot.slane %v3921, 4
      %v3924 = vshll.u32 %v3804, 16
      %v3926 = vrot.slane %v3924, 5
      %v3927 = vsel %vm297, %v3922, %v3926
      %v3928 = vshrl.u32 %v3804, 16
      %v3930 = vrot.slane %v3928, 4
      %v3931 = vor.u32 %v3930, %v3926
      %v3932 = vrot.slane %v3931, 4
      %v3934 = vshll.u32 %v3805, 16
      %v3936 = vrot.slane %v3934, 5
      %v3937 = vsel %vm297, %v3932, %v3936
      %v3939 = vshrl.u32 %v3806, 16
      %v3941 = vrot.slane %v3939, 4
      %v3942 = vshll.u32 %v3806, 16
      %v3944 = vrot.slane %v3942, 5
      %v3945 = vor.u32 %v3941, %v3944
      %v3946 = vrot.slane %v3945, 4
      %v3948 = vshll.u32 %v3807, 16
      %v3950 = vrot.slane %v3948, 5
      %v3951 = vsel %vm297, %v3946, %v3950
      %v3952 = vshrl.u32 %v3807, 16
      %v3954 = vrot.slane %v3952, 4
      %v3955 = vor.u32 %v3954, %v3950
      %v3956 = vrot.slane %v3955, 4
      %v3958 = vshll.u32 %v3808, 16
      %v3960 = vrot.slane %v3958, 5
      %v3961 = vsel %vm297, %v3956, %v3960
      %v3963 = vshrl.u32 %v3809, 16
      %v3965 = vrot.slane %v3963, 4
      %v3966 = vshll.u32 %v3809, 16
      %v3968 = vrot.slane %v3966, 5
      %v3969 = vor.u32 %v3965, %v3968
      %v3970 = vrot.slane %v3969, 4
      %v3972 = vshll.u32 %v3810, 16
      %v3974 = vrot.slane %v3972, 5
      %v3975 = vsel %vm297, %v3970, %v3974
      %v3976 = vshrl.u32 %v3810, 16
      %v3978 = vrot.slane %v3976, 4
      %v3979 = vor.u32 %v3978, %v3974
      %v3980 = vrot.slane %v3979, 4
      %v3982 = vshll.u32 %v3811, 16
      %v3984 = vrot.slane %v3982, 5
      %v3985 = vsel %vm297, %v3980, %v3984
      %v3987 = vshrl.u32 %v3812, 16
      %v3989 = vrot.slane %v3987, 4
      %v3990 = vshll.u32 %v3812, 16
      %v3992 = vrot.slane %v3990, 5
      %v3993 = vor.u32 %v3989, %v3992
      %v3994 = vrot.slane %v3993, 4
      %v3996 = vshll.u32 %v3813, 16
      %v3998 = vrot.slane %v3996, 5
      %v3999 = vsel %vm297, %v3994, %v3998
      %v4000 = vshrl.u32 %v3813, 16
      %v4002 = vrot.slane %v4000, 4
      %v4003 = vor.u32 %v4002, %v3998
      %v4004 = vrot.slane %v4003, 4
      %v4006 = vshll.u32 %v3814, 16
      %v4008 = vrot.slane %v4006, 5
      %v4009 = vsel %vm297, %v4004, %v4008
      %v4011 = vshrl.u32 %v3815, 16
      %v4013 = vrot.slane %v4011, 4
      %v4014 = vshll.u32 %v3815, 16
      %v4016 = vrot.slane %v4014, 5
      %v4017 = vor.u32 %v4013, %v4016
      %v4018 = vrot.slane %v4017, 4
      %v4020 = vshll.u32 %v3816, 16
      %v4022 = vrot.slane %v4020, 5
      %v4023 = vsel %vm297, %v4018, %v4022
      %v4024 = vshrl.u32 %v3816, 16
      %v4026 = vrot.slane %v4024, 4
      %v4027 = vor.u32 %v4026, %v4022
      %v4028 = vrot.slane %v4027, 4
      %v4030 = vshll.u32 %v3817, 16
      %v4032 = vrot.slane %v4030, 5
      %v4033 = vsel %vm297, %v4028, %v4032
      %v4035 = vshrl.u32 %v3818, 16
      %v4037 = vrot.slane %v4035, 4
      %v4038 = vshll.u32 %v3818, 16
      %v4040 = vrot.slane %v4038, 5
      %v4041 = vor.u32 %v4037, %v4040
      %v4042 = vrot.slane %v4041, 4
      %v4044 = vshll.u32 %v3819, 16
      %v4046 = vrot.slane %v4044, 5
      %v4047 = vsel %vm297, %v4042, %v4046
      %v4048 = vshrl.u32 %v3819, 16
      %v4050 = vrot.slane %v4048, 4
      %v4051 = vor.u32 %v4050, %v4046
      %v4052 = vrot.slane %v4051, 4
      %v4054 = vshll.u32 %v3820, 16
      %v4056 = vrot.slane %v4054, 5
      %v4057 = vsel %vm297, %v4052, %v4056
      %v4059 = vshrl.u32 %v3821, 16
      %v4061 = vrot.slane %v4059, 4
      %v4062 = vshll.u32 %v3821, 16
      %v4064 = vrot.slane %v4062, 5
      %v4065 = vor.u32 %v4061, %v4064
      %v4066 = vrot.slane %v4065, 4
      %v4068 = vshll.u32 %v3822, 16
      %v4070 = vrot.slane %v4068, 5
      %v4071 = vsel %vm297, %v4066, %v4070
      %v4072 = vshrl.u32 %v3822, 16
      %v4074 = vrot.slane %v4072, 4
      %v4075 = vor.u32 %v4074, %v4070
      %v4076 = vrot.slane %v4075, 4
      %v4078 = vshll.u32 %v3823, 16
      %v4080 = vrot.slane %v4078, 5
      %v4081 = vsel %vm297, %v4076, %v4080
      %v4083 = vshrl.u32 %v3824, 16
      %v4085 = vrot.slane %v4083, 4
      %v4086 = vshll.u32 %v3824, 16
      %v4088 = vrot.slane %v4086, 5
      %v4089 = vor.u32 %v4085, %v4088
      %v4090 = vrot.slane %v4089, 4
      %v4092 = vshll.u32 %v3825, 16
      %v4094 = vrot.slane %v4092, 5
      %v4095 = vsel %vm297, %v4090, %v4094
      %v4096 = vshrl.u32 %v3825, 16
      %v4098 = vrot.slane %v4096, 4
      %v4099 = vor.u32 %v4098, %v4094
      %v4100 = vrot.slane %v4099, 4
      %v4102 = vshll.u32 %v3826, 16
      %v4104 = vrot.slane %v4102, 5
      %v4105 = vsel %vm297, %v4100, %v4104
      %v4107 = vshrl.u32 %v3827, 16
      %v4109 = vrot.slane %v4107, 4
      %v4110 = vshll.u32 %v3827, 16
      %v4112 = vrot.slane %v4110, 5
      %v4113 = vor.u32 %v4109, %v4112
      %v4114 = vrot.slane %v4113, 4
      %v4116 = vshll.u32 %v3828, 16
      %v4118 = vrot.slane %v4116, 5
      %v4119 = vsel %vm297, %v4114, %v4118
      %v4120 = vshrl.u32 %v3828, 16
      %v4122 = vrot.slane %v4120, 4
      %v4123 = vor.u32 %v4122, %v4118
      %v4124 = vrot.slane %v4123, 4
      %v4126 = vshll.u32 %v3829, 16
      %v4128 = vrot.slane %v4126, 5
      %v4129 = vsel %vm297, %v4124, %v4128
      %v4131 = vshrl.u32 %v3830, 16
      %v4133 = vrot.slane %v4131, 4
      %v4134 = vshll.u32 %v3830, 16
      %v4136 = vrot.slane %v4134, 5
      %v4137 = vor.u32 %v4133, %v4136
      %v4138 = vrot.slane %v4137, 4
      %v4140 = vshll.u32 %v3831, 16
      %v4142 = vrot.slane %v4140, 5
      %v4143 = vsel %vm297, %v4138, %v4142
      %v4144 = vshrl.u32 %v3831, 16
      %v4146 = vrot.slane %v4144, 4
      %v4147 = vor.u32 %v4146, %v4142
      %v4148 = vrot.slane %v4147, 4
      %v4150 = vshll.u32 %v3832, 16
      %v4152 = vrot.slane %v4150, 5
      %v4153 = vsel %vm297, %v4148, %v4152
      %v4155 = vshrl.u32 %v3833, 16
      %v4157 = vrot.slane %v4155, 4
      %v4158 = vshll.u32 %v3833, 16
      %v4160 = vrot.slane %v4158, 5
      %v4161 = vor.u32 %v4157, %v4160
      %v4162 = vrot.slane %v4161, 4
      %v4164 = vshll.u32 %v3834, 16
      %v4166 = vrot.slane %v4164, 5
      %v4167 = vsel %vm297, %v4162, %v4166
      %v4168 = vshrl.u32 %v3834, 16
      %v4170 = vrot.slane %v4168, 4
      %v4171 = vor.u32 %v4170, %v4166
      %v4172 = vrot.slane %v4171, 4
      %v4174 = vshll.u32 %v3835, 16
      %v4176 = vrot.slane %v4174, 5
      %v4177 = vsel %vm297, %v4172, %v4176
      %v4179 = vshrl.u32 %v3836, 16
      %v4181 = vrot.slane %v4179, 4
      %v4182 = vshll.u32 %v3836, 16
      %v4184 = vrot.slane %v4182, 5
      %v4185 = vor.u32 %v4181, %v4184
      %v4186 = vrot.slane %v4185, 4
      %v4188 = vshll.u32 %v3837, 16
      %v4190 = vrot.slane %v4188, 5
      %v4191 = vsel %vm297, %v4186, %v4190
      %v4192 = vshrl.u32 %v3837, 16
      %v4194 = vrot.slane %v4192, 4
      %v4195 = vor.u32 %v4194, %v4190
      %v4196 = vrot.slane %v4195, 4
      %v4198 = vshll.u32 %v3838, 16
      %v4200 = vrot.slane %v4198, 5
      %v4201 = vsel %vm297, %v4196, %v4200
      %v4203 = vshrl.u32 %v3839, 16
      %v4205 = vrot.slane %v4203, 4
      %v4206 = vshll.u32 %v3839, 16
      %v4208 = vrot.slane %v4206, 5
      %v4209 = vor.u32 %v4205, %v4208
      %v4210 = vrot.slane %v4209, 4
      %v4212 = vshll.u32 %v3840, 16
      %v4214 = vrot.slane %v4212, 5
      %v4215 = vsel %vm297, %v4210, %v4214
      %v4216 = vshrl.u32 %v3840, 16
      %v4218 = vrot.slane %v4216, 4
      %v4219 = vor.u32 %v4218, %v4214
      %v4220 = vrot.slane %v4219, 4
      %v4222 = vshll.u32 %v3841, 16
      %v4224 = vrot.slane %v4222, 5
      %v4225 = vsel %vm297, %v4220, %v4224
      %s4226 = scalar_lea.vmem %s1, 448
      %v4227 = vld [vmem:[%s4226] sm:$0xf]
      %v4228 = vld [vmem:[%s4226 + $0x4] sm:$0xf]
      %v4229 = vld [vmem:[%s4226 + $0x8] sm:$0xf]
      %v4230 = vld [vmem:[%s4226 + $0xc] sm:$0xf]
      %v4231 = vld [vmem:[%s4226 + $0x10] sm:$0xf]
      %v4232 = vld [vmem:[%s4226 + $0x14] sm:$0xf]
      %v4233 = vld [vmem:[%s4226 + $0x18] sm:$0xf]
      %v4234 = vld [vmem:[%s4226 + $0x1c] sm:$0xf]
      %v4235 = vld [vmem:[%s4226 + $0x20] sm:$0xf]
      %v4236 = vld [vmem:[%s4226 + $0x24] sm:$0xf]
      %v4237 = vld [vmem:[%s4226 + $0x28] sm:$0xf]
      %v4238 = vld [vmem:[%s4226 + $0x2c] sm:$0xf]
      %v4239 = vld [vmem:[%s4226 + $0x30] sm:$0xf]
      %v4240 = vld [vmem:[%s4226 + $0x34] sm:$0xf]
      %v4241 = vld [vmem:[%s4226 + $0x38] sm:$0xf]
      %v4242 = vld [vmem:[%s4226 + $0x3c] sm:$0xf]
      %v4243 = vunpack.c.l.b16 %v3855
      %v4244 = vunpack.c.l.b16 %v3865
      %v4245 = vunpack.c.l.b16 %v3879
      %v4246 = vunpack.c.l.b16 %v3889
      %v4247 = vunpack.c.l.b16 %v3903
      %v4248 = vunpack.c.l.b16 %v3913
      %v4249 = vunpack.c.l.b16 %v3927
      %v4250 = vunpack.c.l.b16 %v3937
      %v4251 = vunpack.c.l.b16 %v3951
      %v4252 = vunpack.c.l.b16 %v3961
      %v4253 = vunpack.c.l.b16 %v3975
      %v4254 = vunpack.c.l.b16 %v3985
      %v4255 = vunpack.c.l.b16 %v3999
      %v4256 = vunpack.c.l.b16 %v4009
      %v4257 = vunpack.c.l.b16 %v4023
      %v4258 = vunpack.c.l.b16 %v4033
      %v4259 = vunpack.c.l.b16 %v4047
      %v4260 = vunpack.c.l.b16 %v4057
      %v4261 = vunpack.c.l.b16 %v4071
      %v4262 = vunpack.c.l.b16 %v4081
      %v4263 = vunpack.c.l.b16 %v4095
      %v4264 = vunpack.c.l.b16 %v4105
      %v4265 = vunpack.c.l.b16 %v4119
      %v4266 = vunpack.c.l.b16 %v4129
      %v4267 = vunpack.c.l.b16 %v4143
      %v4268 = vunpack.c.l.b16 %v4153
      %v4269 = vunpack.c.l.b16 %v4167
      %v4270 = vunpack.c.l.b16 %v4177
      %v4271 = vunpack.c.l.b16 %v4191
      %v4272 = vunpack.c.l.b16 %v4201
      %v4273 = vunpack.c.l.b16 %v4215
      %v4274 = vunpack.c.l.b16 %v4225
      %v4275 = vpack.c.b16 %v4244, %v4243
      %v4276 = vpack.c.b16 %v4246, %v4245
      %v4277 = vpack.c.b16 %v4248, %v4247
      %v4278 = vpack.c.b16 %v4250, %v4249
      %v4279 = vpack.c.b16 %v4252, %v4251
      %v4280 = vpack.c.b16 %v4254, %v4253
      %v4281 = vpack.c.b16 %v4256, %v4255
      %v4282 = vpack.c.b16 %v4258, %v4257
      %v4283 = vpack.c.b16 %v4260, %v4259
      %v4284 = vpack.c.b16 %v4262, %v4261
      %v4285 = vpack.c.b16 %v4264, %v4263
      %v4286 = vpack.c.b16 %v4266, %v4265
      %v4287 = vpack.c.b16 %v4268, %v4267
      %v4288 = vpack.c.b16 %v4270, %v4269
      %v4289 = vpack.c.b16 %v4272, %v4271
      %v4290 = vpack.c.b16 %v4274, %v4273
      %v4323 = vunpack.c.l.b16 %v4227
      %v4324 = vunpack.c.l.b16 %v4228
      %v4325 = vunpack.c.l.b16 %v4229
      %v4326 = vunpack.c.l.b16 %v4230
      %v4327 = vunpack.c.l.b16 %v4231
      %v4328 = vunpack.c.l.b16 %v4232
      %v4329 = vunpack.c.l.b16 %v4233
      %v4330 = vunpack.c.l.b16 %v4234
      %v4331 = vunpack.c.l.b16 %v4235
      %v4332 = vunpack.c.l.b16 %v4236
      %v4333 = vunpack.c.l.b16 %v4237
      %v4334 = vunpack.c.l.b16 %v4238
      %v4335 = vunpack.c.l.b16 %v4239
      %v4336 = vunpack.c.l.b16 %v4240
      %v4337 = vunpack.c.l.b16 %v4241
      %v4338 = vunpack.c.l.b16 %v4242
      %v4339 = vpack.c.b16 %v4324, %v4323
      %v4340 = vpack.c.b16 %v4326, %v4325
      %v4341 = vpack.c.b16 %v4328, %v4327
      %v4342 = vpack.c.b16 %v4330, %v4329
      %v4343 = vpack.c.b16 %v4332, %v4331
      %v4344 = vpack.c.b16 %v4334, %v4333
      %v4345 = vpack.c.b16 %v4336, %v4335
      %v4346 = vpack.c.b16 %v4338, %v4337
      %4355 = vmatprep.subr.bf16.mxu0 0
      %4356 = vmatpush1.bf16.msra.mxu0 %v4346
      %4357 = vmatprep.subr.bf16.mxu0 0
      %4358 = vmatpush1.bf16.msra.mxu0 %v4345
      %4359 = vmatprep.subr.bf16.mxu0 0
      %4360 = vmatpush1.bf16.msra.mxu0 %v4344
      %4361 = vmatprep.subr.bf16.mxu0 0
      %4362 = vmatpush1.bf16.msra.mxu0 %v4343
      %4363 = vmatprep.subr.bf16.mxu0 0
      %4364 = vmatpush1.bf16.msra.mxu0 %v4342
      %4365 = vmatprep.subr.bf16.mxu0 0
      %4366 = vmatpush1.bf16.msra.mxu0 %v4341
      %4367 = vmatprep.subr.bf16.mxu0 0
      %4368 = vmatpush1.bf16.msra.mxu0 %v4340
      %4369 = vmatprep.subr.bf16.mxu0 0
      %4370 = vmatpush1.bf16.msra.mxu0 %v4339
      %4371 = vmatprep.subr.bf16.mxu0 0
      %4372 = vmatpush2.bf16.msra.mxu0 0
      %4373 = vmatprep.subr.bf16.mxu0 0
      %4374 = vmatpush2.bf16.msra.mxu0 0
      %4375 = vmatprep.subr.bf16.mxu0 0
      %4376 = vmatpush2.bf16.msra.mxu0 0
      %4377 = vmatprep.subr.bf16.mxu0 0
      %4378 = vmatpush2.bf16.msra.mxu0 0
      %4379 = vmatprep.subr.bf16.mxu0 0
      %4380 = vmatpush2.bf16.msra.mxu0 0
      %4381 = vmatprep.subr.bf16.mxu0 0
      %4382 = vmatpush2.bf16.msra.mxu0 0
      %4383 = vmatprep.subr.bf16.mxu0 0
      %4384 = vmatpush2.bf16.msra.mxu0 0
      %4385 = vmatprep.subr.bf16.mxu0 0
      %4386 = vmatpush2.bf16.msra.mxu0 0
      %4387 = vmatprep.mubr.bf16.mxu0 0
      %4388 = vmatmul.mubr.bf16.gmra.mxu0 %v4275
      %v4389 = vpop.f32.mrf.mxu0
      %v4390 = vadd.f32 0.0, %v4389
      %v4391 = vpop.f32.mrf.mxu0
      %v4392 = vpop.f32.mrf.mxu0
      %v4393 = vadd.f32 0.0, %v4392
      %v4394 = vpop.f32.mrf.mxu0
      %4395 = vmatprep.mubr.bf16.mxu0 0
      %4396 = vmatmul.mubr.bf16.gmra.mxu0 %v4276
      %v4397 = vpop.f32.mrf.mxu0
      %v4398 = vadd.f32 0.0, %v4397
      %v4399 = vpop.f32.mrf.mxu0
      %v4400 = vpop.f32.mrf.mxu0
      %v4401 = vadd.f32 0.0, %v4400
      %v4402 = vpop.f32.mrf.mxu0
      %4403 = vmatprep.mubr.bf16.mxu0 0
      %4404 = vmatmul.mubr.bf16.gmra.mxu0 %v4277
      %v4405 = vpop.f32.mrf.mxu0
      %v4406 = vadd.f32 0.0, %v4405
      %v4407 = vpop.f32.mrf.mxu0
      %v4408 = vpop.f32.mrf.mxu0
      %v4409 = vadd.f32 0.0, %v4408
      %v4410 = vpop.f32.mrf.mxu0
      %4411 = vmatprep.mubr.bf16.mxu0 0
      %4412 = vmatmul.mubr.bf16.gmra.mxu0 %v4278
      %v4413 = vpop.f32.mrf.mxu0
      %v4414 = vadd.f32 0.0, %v4413
      %v4415 = vpop.f32.mrf.mxu0
      %v4416 = vpop.f32.mrf.mxu0
      %v4417 = vadd.f32 0.0, %v4416
      %v4418 = vpop.f32.mrf.mxu0
      %4419 = vmatprep.mubr.bf16.mxu0 0
      %4420 = vmatmul.mubr.bf16.gmra.mxu0 %v4279
      %v4421 = vpop.f32.mrf.mxu0
      %v4422 = vadd.f32 0.0, %v4421
      %v4423 = vpop.f32.mrf.mxu0
      %v4424 = vpop.f32.mrf.mxu0
      %v4425 = vadd.f32 0.0, %v4424
      %v4426 = vpop.f32.mrf.mxu0
      %4427 = vmatprep.mubr.bf16.mxu0 0
      %4428 = vmatmul.mubr.bf16.gmra.mxu0 %v4280
      %v4429 = vpop.f32.mrf.mxu0
      %v4430 = vadd.f32 0.0, %v4429
      %v4431 = vpop.f32.mrf.mxu0
      %v4432 = vpop.f32.mrf.mxu0
      %v4433 = vadd.f32 0.0, %v4432
      %v4434 = vpop.f32.mrf.mxu0
      %4435 = vmatprep.mubr.bf16.mxu0 0
      %4436 = vmatmul.mubr.bf16.gmra.mxu0 %v4281
      %v4437 = vpop.f32.mrf.mxu0
      %v4438 = vadd.f32 0.0, %v4437
      %v4439 = vpop.f32.mrf.mxu0
      %v4440 = vpop.f32.mrf.mxu0
      %v4441 = vadd.f32 0.0, %v4440
      %v4442 = vpop.f32.mrf.mxu0
      %4443 = vmatprep.mubr.bf16.mxu0 0
      %4444 = vmatmul.mubr.bf16.gmra.mxu0 %v4282
      %v4445 = vpop.f32.mrf.mxu0
      %v4446 = vadd.f32 0.0, %v4445
      %v4447 = vpop.f32.mrf.mxu0
      %v4448 = vpop.f32.mrf.mxu0
      %v4449 = vadd.f32 0.0, %v4448
      %v4450 = vpop.f32.mrf.mxu0
      %4451 = vmatprep.mubr.bf16.mxu0 0
      %4452 = vmatmul.mubr.bf16.gmra.mxu0 %v4283
      %v4453 = vpop.f32.mrf.mxu0
      %v4454 = vadd.f32 0.0, %v4453
      %v4455 = vpop.f32.mrf.mxu0
      %v4456 = vpop.f32.mrf.mxu0
      %v4457 = vadd.f32 0.0, %v4456
      %v4458 = vpop.f32.mrf.mxu0
      %4459 = vmatprep.mubr.bf16.mxu0 0
      %4460 = vmatmul.mubr.bf16.gmra.mxu0 %v4284
      %v4461 = vpop.f32.mrf.mxu0
      %v4462 = vadd.f32 0.0, %v4461
      %v4463 = vpop.f32.mrf.mxu0
      %v4464 = vpop.f32.mrf.mxu0
      %v4465 = vadd.f32 0.0, %v4464
      %v4466 = vpop.f32.mrf.mxu0
      %4467 = vmatprep.mubr.bf16.mxu0 0
      %4468 = vmatmul.mubr.bf16.gmra.mxu0 %v4285
      %v4469 = vpop.f32.mrf.mxu0
      %v4470 = vadd.f32 0.0, %v4469
      %v4471 = vpop.f32.mrf.mxu0
      %v4472 = vpop.f32.mrf.mxu0
      %v4473 = vadd.f32 0.0, %v4472
      %v4474 = vpop.f32.mrf.mxu0
      %4475 = vmatprep.mubr.bf16.mxu0 0
      %4476 = vmatmul.mubr.bf16.gmra.mxu0 %v4286
      %v4477 = vpop.f32.mrf.mxu0
      %v4478 = vadd.f32 0.0, %v4477
      %v4479 = vpop.f32.mrf.mxu0
      %v4480 = vpop.f32.mrf.mxu0
      %v4481 = vadd.f32 0.0, %v4480
      %v4482 = vpop.f32.mrf.mxu0
      %4483 = vmatprep.mubr.bf16.mxu0 0
      %4484 = vmatmul.mubr.bf16.gmra.mxu0 %v4287
      %v4485 = vpop.f32.mrf.mxu0
      %v4486 = vadd.f32 0.0, %v4485
      %v4487 = vpop.f32.mrf.mxu0
      %v4488 = vpop.f32.mrf.mxu0
      %v4489 = vadd.f32 0.0, %v4488
      %v4490 = vpop.f32.mrf.mxu0
      %4491 = vmatprep.mubr.bf16.mxu0 0
      %4492 = vmatmul.mubr.bf16.gmra.mxu0 %v4288
      %v4493 = vpop.f32.mrf.mxu0
      %v4494 = vadd.f32 0.0, %v4493
      %v4495 = vpop.f32.mrf.mxu0
      %v4496 = vpop.f32.mrf.mxu0
      %v4497 = vadd.f32 0.0, %v4496
      %v4498 = vpop.f32.mrf.mxu0
      %4499 = vmatprep.mubr.bf16.mxu0 0
      %4500 = vmatmul.mubr.bf16.gmra.mxu0 %v4289
      %v4501 = vpop.f32.mrf.mxu0
      %v4502 = vadd.f32 0.0, %v4501
      %v4503 = vpop.f32.mrf.mxu0
      %v4504 = vpop.f32.mrf.mxu0
      %v4505 = vadd.f32 0.0, %v4504
      %v4506 = vpop.f32.mrf.mxu0
      %4507 = vmatprep.mubr.bf16.mxu0 0
      %4508 = vmatmul.mubr.bf16.gmra.mxu0 %v4290
      %v4509 = vpop.f32.mrf.mxu0
      %v4510 = vadd.f32 0.0, %v4509
      %v4511 = vpop.f32.mrf.mxu0
      %v4512 = vpop.f32.mrf.mxu0
      %v4513 = vadd.f32 0.0, %v4512
      %v4514 = vpop.f32.mrf.mxu0
      %4515 = vdwg.mxu0
      %v4516 = vadd.f32 %v3762, %v4390
      %v4517 = vadd.f32 %v3763, %v4393
      %v4518 = vadd.f32 %v3764, %v4398
      %v4519 = vadd.f32 %v3765, %v4401
      %v4520 = vadd.f32 %v3766, %v4406
      %v4521 = vadd.f32 %v3767, %v4409
      %v4522 = vadd.f32 %v3768, %v4414
      %v4523 = vadd.f32 %v3769, %v4417
      %v4524 = vadd.f32 %v3770, %v4422
      %v4525 = vadd.f32 %v3771, %v4425
      %v4526 = vadd.f32 %v3772, %v4430
      %v4527 = vadd.f32 %v3773, %v4433
      %v4528 = vadd.f32 %v3774, %v4438
      %v4529 = vadd.f32 %v3775, %v4441
      %v4530 = vadd.f32 %v3776, %v4446
      %v4531 = vadd.f32 %v3777, %v4449
      %v4532 = vadd.f32 %v3778, %v4454
      %v4533 = vadd.f32 %v3779, %v4457
      %v4534 = vadd.f32 %v3780, %v4462
      %v4535 = vadd.f32 %v3781, %v4465
      %v4536 = vadd.f32 %v3782, %v4470
      %v4537 = vadd.f32 %v3783, %v4473
      %v4538 = vadd.f32 %v3784, %v4478
      %v4539 = vadd.f32 %v3785, %v4481
      %v4540 = vadd.f32 %v3786, %v4486
      %v4541 = vadd.f32 %v3787, %v4489
      %v4542 = vadd.f32 %v3788, %v4494
      %v4543 = vadd.f32 %v3789, %v4497
      %v4544 = vadd.f32 %v3790, %v4502
      %v4545 = vadd.f32 %v3791, %v4505
      %v4546 = vadd.f32 %v3792, %v4510
      %v4547 = vadd.f32 %v3793, %v4513
      %v4548 = vld [vmem:[%s3407] sm:$0xe]
      %v4549 = vld [vmem:[%s3407 + $0xc] sm:$0xe]
      %v4550 = vld [vmem:[%s3407 + $0x18] sm:$0xe]
      %v4551 = vld [vmem:[%s3407 + $0x24] sm:$0xe]
      %v4552 = vld [vmem:[%s3407 + $0x30] sm:$0xe]
      %v4553 = vld [vmem:[%s3407 + $0x3c] sm:$0xe]
      %v4554 = vld [vmem:[%s3407 + $0x48] sm:$0xe]
      %v4555 = vld [vmem:[%s3407 + $0x54] sm:$0xe]
      %v4556 = vld [vmem:[%s3407 + $0x60] sm:$0xe]
      %v4557 = vld [vmem:[%s3407 + $0x6c] sm:$0xe]
      %v4558 = vld [vmem:[%s3407 + $0x78] sm:$0xe]
      %v4559 = vld [vmem:[%s3407 + $0x84] sm:$0xe]
      %v4560 = vld [vmem:[%s3407 + $0x90] sm:$0xe]
      %v4561 = vld [vmem:[%s3407 + $0x9c] sm:$0xe]
      %v4562 = vld [vmem:[%s3407 + $0xa8] sm:$0xe]
      %v4563 = vld [vmem:[%s3407 + $0xb4] sm:$0xe]
      %v4612 = vrot.slane %v4548, 5
      %v4613 = vrot.slane %v4612, 4
      %v4614 = vrot.slane %v3795, 5
      %v4615 = vsel %vm1327, %v4613, %v4614
      %v4616 = vrot.slane %v4614, 4
      %v4617 = vrot.slane %v3796, 5
      %v4618 = vsel %vm1327, %v4616, %v4617
      %v4619 = vrot.slane %v4549, 5
      %v4620 = vrot.slane %v4619, 4
      %v4621 = vrot.slane %v3798, 5
      %v4622 = vsel %vm1327, %v4620, %v4621
      %v4623 = vrot.slane %v4621, 4
      %v4624 = vrot.slane %v3799, 5
      %v4625 = vsel %vm1327, %v4623, %v4624
      %v4626 = vrot.slane %v4550, 5
      %v4627 = vrot.slane %v4626, 4
      %v4628 = vrot.slane %v3801, 5
      %v4629 = vsel %vm1327, %v4627, %v4628
      %v4630 = vrot.slane %v4628, 4
      %v4631 = vrot.slane %v3802, 5
      %v4632 = vsel %vm1327, %v4630, %v4631
      %v4633 = vrot.slane %v4551, 5
      %v4634 = vrot.slane %v4633, 4
      %v4635 = vrot.slane %v3804, 5
      %v4636 = vsel %vm1327, %v4634, %v4635
      %v4637 = vrot.slane %v4635, 4
      %v4638 = vrot.slane %v3805, 5
      %v4639 = vsel %vm1327, %v4637, %v4638
      %v4640 = vrot.slane %v4552, 5
      %v4641 = vrot.slane %v4640, 4
      %v4642 = vrot.slane %v3807, 5
      %v4643 = vsel %vm1327, %v4641, %v4642
      %v4644 = vrot.slane %v4642, 4
      %v4645 = vrot.slane %v3808, 5
      %v4646 = vsel %vm1327, %v4644, %v4645
      %v4647 = vrot.slane %v4553, 5
      %v4648 = vrot.slane %v4647, 4
      %v4649 = vrot.slane %v3810, 5
      %v4650 = vsel %vm1327, %v4648, %v4649
      %v4651 = vrot.slane %v4649, 4
      %v4652 = vrot.slane %v3811, 5
      %v4653 = vsel %vm1327, %v4651, %v4652
      %v4654 = vrot.slane %v4554, 5
      %v4655 = vrot.slane %v4654, 4
      %v4656 = vrot.slane %v3813, 5
      %v4657 = vsel %vm1327, %v4655, %v4656
      %v4658 = vrot.slane %v4656, 4
      %v4659 = vrot.slane %v3814, 5
      %v4660 = vsel %vm1327, %v4658, %v4659
      %v4661 = vrot.slane %v4555, 5
      %v4662 = vrot.slane %v4661, 4
      %v4663 = vrot.slane %v3816, 5
      %v4664 = vsel %vm1327, %v4662, %v4663
      %v4665 = vrot.slane %v4663, 4
      %v4666 = vrot.slane %v3817, 5
      %v4667 = vsel %vm1327, %v4665, %v4666
      %v4668 = vrot.slane %v4556, 5
      %v4669 = vrot.slane %v4668, 4
      %v4670 = vrot.slane %v3819, 5
      %v4671 = vsel %vm1327, %v4669, %v4670
      %v4672 = vrot.slane %v4670, 4
      %v4673 = vrot.slane %v3820, 5
      %v4674 = vsel %vm1327, %v4672, %v4673
      %v4675 = vrot.slane %v4557, 5
      %v4676 = vrot.slane %v4675, 4
      %v4677 = vrot.slane %v3822, 5
      %v4678 = vsel %vm1327, %v4676, %v4677
      %v4679 = vrot.slane %v4677, 4
      %v4680 = vrot.slane %v3823, 5
      %v4681 = vsel %vm1327, %v4679, %v4680
      %v4682 = vrot.slane %v4558, 5
      %v4683 = vrot.slane %v4682, 4
      %v4684 = vrot.slane %v3825, 5
      %v4685 = vsel %vm1327, %v4683, %v4684
      %v4686 = vrot.slane %v4684, 4
      %v4687 = vrot.slane %v3826, 5
      %v4688 = vsel %vm1327, %v4686, %v4687
      %v4689 = vrot.slane %v4559, 5
      %v4690 = vrot.slane %v4689, 4
      %v4691 = vrot.slane %v3828, 5
      %v4692 = vsel %vm1327, %v4690, %v4691
      %v4693 = vrot.slane %v4691, 4
      %v4694 = vrot.slane %v3829, 5
      %v4695 = vsel %vm1327, %v4693, %v4694
      %v4696 = vrot.slane %v4560, 5
      %v4697 = vrot.slane %v4696, 4
      %v4698 = vrot.slane %v3831, 5
      %v4699 = vsel %vm1327, %v4697, %v4698
      %v4700 = vrot.slane %v4698, 4
      %v4701 = vrot.slane %v3832, 5
      %v4702 = vsel %vm1327, %v4700, %v4701
      %v4703 = vrot.slane %v4561, 5
      %v4704 = vrot.slane %v4703, 4
      %v4705 = vrot.slane %v3834, 5
      %v4706 = vsel %vm1327, %v4704, %v4705
      %v4707 = vrot.slane %v4705, 4
      %v4708 = vrot.slane %v3835, 5
      %v4709 = vsel %vm1327, %v4707, %v4708
      %v4710 = vrot.slane %v4562, 5
      %v4711 = vrot.slane %v4710, 4
      %v4712 = vrot.slane %v3837, 5
      %v4713 = vsel %vm1327, %v4711, %v4712
      %v4714 = vrot.slane %v4712, 4
      %v4715 = vrot.slane %v3838, 5
      %v4716 = vsel %vm1327, %v4714, %v4715
      %v4717 = vrot.slane %v4563, 5
      %v4718 = vrot.slane %v4717, 4
      %v4719 = vrot.slane %v3840, 5
      %v4720 = vsel %vm1327, %v4718, %v4719
      %v4721 = vrot.slane %v4719, 4
      %v4722 = vrot.slane %v3841, 5
      %v4723 = vsel %vm1327, %v4721, %v4722
      %s4724 = scalar_lea.vmem %s1, 512
      %v4725 = vld [vmem:[%s4724] sm:$0xf]
      %v4726 = vld [vmem:[%s4724 + $0x4] sm:$0xf]
      %v4727 = vld [vmem:[%s4724 + $0x8] sm:$0xf]
      %v4728 = vld [vmem:[%s4724 + $0xc] sm:$0xf]
      %v4729 = vld [vmem:[%s4724 + $0x10] sm:$0xf]
      %v4730 = vld [vmem:[%s4724 + $0x14] sm:$0xf]
      %v4731 = vld [vmem:[%s4724 + $0x18] sm:$0xf]
      %v4732 = vld [vmem:[%s4724 + $0x1c] sm:$0xf]
      %v4733 = vld [vmem:[%s4724 + $0x20] sm:$0xf]
      %v4734 = vld [vmem:[%s4724 + $0x24] sm:$0xf]
      %v4735 = vld [vmem:[%s4724 + $0x28] sm:$0xf]
      %v4736 = vld [vmem:[%s4724 + $0x2c] sm:$0xf]
      %v4737 = vld [vmem:[%s4724 + $0x30] sm:$0xf]
      %v4738 = vld [vmem:[%s4724 + $0x34] sm:$0xf]
      %v4739 = vld [vmem:[%s4724 + $0x38] sm:$0xf]
      %v4740 = vld [vmem:[%s4724 + $0x3c] sm:$0xf]
      %v4741 = vunpack.c.l.b16 %v4615
      %v4742 = vunpack.c.l.b16 %v4618
      %v4743 = vunpack.c.l.b16 %v4622
      %v4744 = vunpack.c.l.b16 %v4625
      %v4745 = vunpack.c.l.b16 %v4629
      %v4746 = vunpack.c.l.b16 %v4632
      %v4747 = vunpack.c.l.b16 %v4636
      %v4748 = vunpack.c.l.b16 %v4639
      %v4749 = vunpack.c.l.b16 %v4643
      %v4750 = vunpack.c.l.b16 %v4646
      %v4751 = vunpack.c.l.b16 %v4650
      %v4752 = vunpack.c.l.b16 %v4653
      %v4753 = vunpack.c.l.b16 %v4657
      %v4754 = vunpack.c.l.b16 %v4660
      %v4755 = vunpack.c.l.b16 %v4664
      %v4756 = vunpack.c.l.b16 %v4667
      %v4757 = vunpack.c.l.b16 %v4671
      %v4758 = vunpack.c.l.b16 %v4674
      %v4759 = vunpack.c.l.b16 %v4678
      %v4760 = vunpack.c.l.b16 %v4681
      %v4761 = vunpack.c.l.b16 %v4685
      %v4762 = vunpack.c.l.b16 %v4688
      %v4763 = vunpack.c.l.b16 %v4692
      %v4764 = vunpack.c.l.b16 %v4695
      %v4765 = vunpack.c.l.b16 %v4699
      %v4766 = vunpack.c.l.b16 %v4702
      %v4767 = vunpack.c.l.b16 %v4706
      %v4768 = vunpack.c.l.b16 %v4709
      %v4769 = vunpack.c.l.b16 %v4713
      %v4770 = vunpack.c.l.b16 %v4716
      %v4771 = vunpack.c.l.b16 %v4720
      %v4772 = vunpack.c.l.b16 %v4723
      %v4773 = vpack.c.b16 %v4742, %v4741
      %v4774 = vpack.c.b16 %v4744, %v4743
      %v4775 = vpack.c.b16 %v4746, %v4745
      %v4776 = vpack.c.b16 %v4748, %v4747
      %v4777 = vpack.c.b16 %v4750, %v4749
      %v4778 = vpack.c.b16 %v4752, %v4751
      %v4779 = vpack.c.b16 %v4754, %v4753
      %v4780 = vpack.c.b16 %v4756, %v4755
      %v4781 = vpack.c.b16 %v4758, %v4757
      %v4782 = vpack.c.b16 %v4760, %v4759
      %v4783 = vpack.c.b16 %v4762, %v4761
      %v4784 = vpack.c.b16 %v4764, %v4763
      %v4785 = vpack.c.b16 %v4766, %v4765
      %v4786 = vpack.c.b16 %v4768, %v4767
      %v4787 = vpack.c.b16 %v4770, %v4769
      %v4788 = vpack.c.b16 %v4772, %v4771
      %v4821 = vunpack.c.l.b16 %v4725
      %v4822 = vunpack.c.l.b16 %v4726
      %v4823 = vunpack.c.l.b16 %v4727
      %v4824 = vunpack.c.l.b16 %v4728
      %v4825 = vunpack.c.l.b16 %v4729
      %v4826 = vunpack.c.l.b16 %v4730
      %v4827 = vunpack.c.l.b16 %v4731
      %v4828 = vunpack.c.l.b16 %v4732
      %v4829 = vunpack.c.l.b16 %v4733
      %v4830 = vunpack.c.l.b16 %v4734
      %v4831 = vunpack.c.l.b16 %v4735
      %v4832 = vunpack.c.l.b16 %v4736
      %v4833 = vunpack.c.l.b16 %v4737
      %v4834 = vunpack.c.l.b16 %v4738
      %v4835 = vunpack.c.l.b16 %v4739
      %v4836 = vunpack.c.l.b16 %v4740
      %v4837 = vpack.c.b16 %v4822, %v4821
      %v4838 = vpack.c.b16 %v4824, %v4823
      %v4839 = vpack.c.b16 %v4826, %v4825
      %v4840 = vpack.c.b16 %v4828, %v4827
      %v4841 = vpack.c.b16 %v4830, %v4829
      %v4842 = vpack.c.b16 %v4832, %v4831
      %v4843 = vpack.c.b16 %v4834, %v4833
      %v4844 = vpack.c.b16 %v4836, %v4835
      %4853 = vmatprep.subr.bf16.mxu0 0
      %4854 = vmatpush1.bf16.msra.mxu0 %v4844
      %4855 = vmatprep.subr.bf16.mxu0 0
      %4856 = vmatpush1.bf16.msra.mxu0 %v4843
      %4857 = vmatprep.subr.bf16.mxu0 0
      %4858 = vmatpush1.bf16.msra.mxu0 %v4842
      %4859 = vmatprep.subr.bf16.mxu0 0
      %4860 = vmatpush1.bf16.msra.mxu0 %v4841
      %4861 = vmatprep.subr.bf16.mxu0 0
      %4862 = vmatpush1.bf16.msra.mxu0 %v4840
      %4863 = vmatprep.subr.bf16.mxu0 0
      %4864 = vmatpush1.bf16.msra.mxu0 %v4839
      %4865 = vmatprep.subr.bf16.mxu0 0
      %4866 = vmatpush1.bf16.msra.mxu0 %v4838
      %4867 = vmatprep.subr.bf16.mxu0 0
      %4868 = vmatpush1.bf16.msra.mxu0 %v4837
      %4869 = vmatprep.subr.bf16.mxu0 0
      %4870 = vmatpush2.bf16.msra.mxu0 0
      %4871 = vmatprep.subr.bf16.mxu0 0
      %4872 = vmatpush2.bf16.msra.mxu0 0
      %4873 = vmatprep.subr.bf16.mxu0 0
      %4874 = vmatpush2.bf16.msra.mxu0 0
      %4875 = vmatprep.subr.bf16.mxu0 0
      %4876 = vmatpush2.bf16.msra.mxu0 0
      %4877 = vmatprep.subr.bf16.mxu0 0
      %4878 = vmatpush2.bf16.msra.mxu0 0
      %4879 = vmatprep.subr.bf16.mxu0 0
      %4880 = vmatpush2.bf16.msra.mxu0 0
      %4881 = vmatprep.subr.bf16.mxu0 0
      %4882 = vmatpush2.bf16.msra.mxu0 0
      %4883 = vmatprep.subr.bf16.mxu0 0
      %4884 = vmatpush2.bf16.msra.mxu0 0
      %4885 = vmatprep.mubr.bf16.mxu0 0
      %4886 = vmatmul.mubr.bf16.gmra.mxu0 %v4773
      %v4887 = vpop.f32.mrf.mxu0
      %v4888 = vadd.f32 0.0, %v4887
      %v4889 = vpop.f32.mrf.mxu0
      %v4890 = vpop.f32.mrf.mxu0
      %v4891 = vadd.f32 0.0, %v4890
      %v4892 = vpop.f32.mrf.mxu0
      %4893 = vmatprep.mubr.bf16.mxu0 0
      %4894 = vmatmul.mubr.bf16.gmra.mxu0 %v4774
      %v4895 = vpop.f32.mrf.mxu0
      %v4896 = vadd.f32 0.0, %v4895
      %v4897 = vpop.f32.mrf.mxu0
      %v4898 = vpop.f32.mrf.mxu0
      %v4899 = vadd.f32 0.0, %v4898
      %v4900 = vpop.f32.mrf.mxu0
      %4901 = vmatprep.mubr.bf16.mxu0 0
      %4902 = vmatmul.mubr.bf16.gmra.mxu0 %v4775
      %v4903 = vpop.f32.mrf.mxu0
      %v4904 = vadd.f32 0.0, %v4903
      %v4905 = vpop.f32.mrf.mxu0
      %v4906 = vpop.f32.mrf.mxu0
      %v4907 = vadd.f32 0.0, %v4906
      %v4908 = vpop.f32.mrf.mxu0
      %4909 = vmatprep.mubr.bf16.mxu0 0
      %4910 = vmatmul.mubr.bf16.gmra.mxu0 %v4776
      %v4911 = vpop.f32.mrf.mxu0
      %v4912 = vadd.f32 0.0, %v4911
      %v4913 = vpop.f32.mrf.mxu0
      %v4914 = vpop.f32.mrf.mxu0
      %v4915 = vadd.f32 0.0, %v4914
      %v4916 = vpop.f32.mrf.mxu0
      %4917 = vmatprep.mubr.bf16.mxu0 0
      %4918 = vmatmul.mubr.bf16.gmra.mxu0 %v4777
      %v4919 = vpop.f32.mrf.mxu0
      %v4920 = vadd.f32 0.0, %v4919
      %v4921 = vpop.f32.mrf.mxu0
      %v4922 = vpop.f32.mrf.mxu0
      %v4923 = vadd.f32 0.0, %v4922
      %v4924 = vpop.f32.mrf.mxu0
      %4925 = vmatprep.mubr.bf16.mxu0 0
      %4926 = vmatmul.mubr.bf16.gmra.mxu0 %v4778
      %v4927 = vpop.f32.mrf.mxu0
      %v4928 = vadd.f32 0.0, %v4927
      %v4929 = vpop.f32.mrf.mxu0
      %v4930 = vpop.f32.mrf.mxu0
      %v4931 = vadd.f32 0.0, %v4930
      %v4932 = vpop.f32.mrf.mxu0
      %4933 = vmatprep.mubr.bf16.mxu0 0
      %4934 = vmatmul.mubr.bf16.gmra.mxu0 %v4779
      %v4935 = vpop.f32.mrf.mxu0
      %v4936 = vadd.f32 0.0, %v4935
      %v4937 = vpop.f32.mrf.mxu0
      %v4938 = vpop.f32.mrf.mxu0
      %v4939 = vadd.f32 0.0, %v4938
      %v4940 = vpop.f32.mrf.mxu0
      %4941 = vmatprep.mubr.bf16.mxu0 0
      %4942 = vmatmul.mubr.bf16.gmra.mxu0 %v4780
      %v4943 = vpop.f32.mrf.mxu0
      %v4944 = vadd.f32 0.0, %v4943
      %v4945 = vpop.f32.mrf.mxu0
      %v4946 = vpop.f32.mrf.mxu0
      %v4947 = vadd.f32 0.0, %v4946
      %v4948 = vpop.f32.mrf.mxu0
      %4949 = vmatprep.mubr.bf16.mxu0 0
      %4950 = vmatmul.mubr.bf16.gmra.mxu0 %v4781
      %v4951 = vpop.f32.mrf.mxu0
      %v4952 = vadd.f32 0.0, %v4951
      %v4953 = vpop.f32.mrf.mxu0
      %v4954 = vpop.f32.mrf.mxu0
      %v4955 = vadd.f32 0.0, %v4954
      %v4956 = vpop.f32.mrf.mxu0
      %4957 = vmatprep.mubr.bf16.mxu0 0
      %4958 = vmatmul.mubr.bf16.gmra.mxu0 %v4782
      %v4959 = vpop.f32.mrf.mxu0
      %v4960 = vadd.f32 0.0, %v4959
      %v4961 = vpop.f32.mrf.mxu0
      %v4962 = vpop.f32.mrf.mxu0
      %v4963 = vadd.f32 0.0, %v4962
      %v4964 = vpop.f32.mrf.mxu0
      %4965 = vmatprep.mubr.bf16.mxu0 0
      %4966 = vmatmul.mubr.bf16.gmra.mxu0 %v4783
      %v4967 = vpop.f32.mrf.mxu0
      %v4968 = vadd.f32 0.0, %v4967
      %v4969 = vpop.f32.mrf.mxu0
      %v4970 = vpop.f32.mrf.mxu0
      %v4971 = vadd.f32 0.0, %v4970
      %v4972 = vpop.f32.mrf.mxu0
      %4973 = vmatprep.mubr.bf16.mxu0 0
      %4974 = vmatmul.mubr.bf16.gmra.mxu0 %v4784
      %v4975 = vpop.f32.mrf.mxu0
      %v4976 = vadd.f32 0.0, %v4975
      %v4977 = vpop.f32.mrf.mxu0
      %v4978 = vpop.f32.mrf.mxu0
      %v4979 = vadd.f32 0.0, %v4978
      %v4980 = vpop.f32.mrf.mxu0
      %4981 = vmatprep.mubr.bf16.mxu0 0
      %4982 = vmatmul.mubr.bf16.gmra.mxu0 %v4785
      %v4983 = vpop.f32.mrf.mxu0
      %v4984 = vadd.f32 0.0, %v4983
      %v4985 = vpop.f32.mrf.mxu0
      %v4986 = vpop.f32.mrf.mxu0
      %v4987 = vadd.f32 0.0, %v4986
      %v4988 = vpop.f32.mrf.mxu0
      %4989 = vmatprep.mubr.bf16.mxu0 0
      %4990 = vmatmul.mubr.bf16.gmra.mxu0 %v4786
      %v4991 = vpop.f32.mrf.mxu0
      %v4992 = vadd.f32 0.0, %v4991
      %v4993 = vpop.f32.mrf.mxu0
      %v4994 = vpop.f32.mrf.mxu0
      %v4995 = vadd.f32 0.0, %v4994
      %v4996 = vpop.f32.mrf.mxu0
      %4997 = vmatprep.mubr.bf16.mxu0 0
      %4998 = vmatmul.mubr.bf16.gmra.mxu0 %v4787
      %v4999 = vpop.f32.mrf.mxu0
      %v5000 = vadd.f32 0.0, %v4999
      %v5001 = vpop.f32.mrf.mxu0
      %v5002 = vpop.f32.mrf.mxu0
      %v5003 = vadd.f32 0.0, %v5002
      %v5004 = vpop.f32.mrf.mxu0
      %5005 = vmatprep.mubr.bf16.mxu0 0
      %5006 = vmatmul.mubr.bf16.gmra.mxu0 %v4788
      %v5007 = vpop.f32.mrf.mxu0
      %v5008 = vadd.f32 0.0, %v5007
      %v5009 = vpop.f32.mrf.mxu0
      %v5010 = vpop.f32.mrf.mxu0
      %v5011 = vadd.f32 0.0, %v5010
      %v5012 = vpop.f32.mrf.mxu0
      %5013 = vdwg.mxu0
      %v5014 = vadd.f32 %v4516, %v4888
      %v5015 = vadd.f32 %v4517, %v4891
      %v5016 = vadd.f32 %v4518, %v4896
      %v5017 = vadd.f32 %v4519, %v4899
      %v5018 = vadd.f32 %v4520, %v4904
      %v5019 = vadd.f32 %v4521, %v4907
      %v5020 = vadd.f32 %v4522, %v4912
      %v5021 = vadd.f32 %v4523, %v4915
      %v5022 = vadd.f32 %v4524, %v4920
      %v5023 = vadd.f32 %v4525, %v4923
      %v5024 = vadd.f32 %v4526, %v4928
      %v5025 = vadd.f32 %v4527, %v4931
      %v5026 = vadd.f32 %v4528, %v4936
      %v5027 = vadd.f32 %v4529, %v4939
      %v5028 = vadd.f32 %v4530, %v4944
      %v5029 = vadd.f32 %v4531, %v4947
      %v5030 = vadd.f32 %v4532, %v4952
      %v5031 = vadd.f32 %v4533, %v4955
      %v5032 = vadd.f32 %v4534, %v4960
      %v5033 = vadd.f32 %v4535, %v4963
      %v5034 = vadd.f32 %v4536, %v4968
      %v5035 = vadd.f32 %v4537, %v4971
      %v5036 = vadd.f32 %v4538, %v4976
      %v5037 = vadd.f32 %v4539, %v4979
      %v5038 = vadd.f32 %v4540, %v4984
      %v5039 = vadd.f32 %v4541, %v4987
      %v5040 = vadd.f32 %v4542, %v4992
      %v5041 = vadd.f32 %v4543, %v4995
      %v5042 = vadd.f32 %v4544, %v5000
      %v5043 = vadd.f32 %v4545, %v5003
      %v5044 = vadd.f32 %v4546, %v5008
      %v5045 = vadd.f32 %v4547, %v5011
      %5046 = vst [vmem:[%s216] sm:$0xff] %v5014
      %5047 = vst [vmem:[%s216 + $0x8] sm:$0xff] %v5015
      %5048 = vst [vmem:[%s216 + $0x10] sm:$0xff] %v5016
      %5049 = vst [vmem:[%s216 + $0x18] sm:$0xff] %v5017
      %5050 = vst [vmem:[%s216 + $0x20] sm:$0xff] %v5018
      %5051 = vst [vmem:[%s216 + $0x28] sm:$0xff] %v5019
      %5052 = vst [vmem:[%s216 + $0x30] sm:$0xff] %v5020
      %5053 = vst [vmem:[%s216 + $0x38] sm:$0xff] %v5021
      %5054 = vst [vmem:[%s216 + $0x40] sm:$0xff] %v5022
      %5055 = vst [vmem:[%s216 + $0x48] sm:$0xff] %v5023
      %5056 = vst [vmem:[%s216 + $0x50] sm:$0xff] %v5024
      %5057 = vst [vmem:[%s216 + $0x58] sm:$0xff] %v5025
      %5058 = vst [vmem:[%s216 + $0x60] sm:$0xff] %v5026
      %5059 = vst [vmem:[%s216 + $0x68] sm:$0xff] %v5027
      %5060 = vst [vmem:[%s216 + $0x70] sm:$0xff] %v5028
      %5061 = vst [vmem:[%s216 + $0x78] sm:$0xff] %v5029
      %5062 = vst [vmem:[%s216 + $0x80] sm:$0xff] %v5030
      %5063 = vst [vmem:[%s216 + $0x88] sm:$0xff] %v5031
      %5064 = vst [vmem:[%s216 + $0x90] sm:$0xff] %v5032
      %5065 = vst [vmem:[%s216 + $0x98] sm:$0xff] %v5033
      %5066 = vst [vmem:[%s216 + $0xa0] sm:$0xff] %v5034
      %5067 = vst [vmem:[%s216 + $0xa8] sm:$0xff] %v5035
      %5068 = vst [vmem:[%s216 + $0xb0] sm:$0xff] %v5036
      %5069 = vst [vmem:[%s216 + $0xb8] sm:$0xff] %v5037
      %5070 = vst [vmem:[%s216 + $0xc0] sm:$0xff] %v5038
      %5071 = vst [vmem:[%s216 + $0xc8] sm:$0xff] %v5039
      %5072 = vst [vmem:[%s216 + $0xd0] sm:$0xff] %v5040
      %5073 = vst [vmem:[%s216 + $0xd8] sm:$0xff] %v5041
      %5074 = vst [vmem:[%s216 + $0xe0] sm:$0xff] %v5042
      %5075 = vst [vmem:[%s216 + $0xe8] sm:$0xff] %v5043
      %5076 = vst [vmem:[%s216 + $0xf0] sm:$0xff] %v5044
      %5077 = vst [vmem:[%s216 + $0xf8] sm:$0xff] %v5045
      %v5078 = vld [vmem:[%s3] sm:$0x1]
      %v5079 = vadd.f32 %v5014, %v5015
      %v5080 = vadd.f32 %v5079, %v5016
      %v5081 = vadd.f32 %v5080, %v5017
      %v5082 = vadd.f32 %v5081, %v5018
      %v5083 = vadd.f32 %v5082, %v5019
      %v5084 = vadd.f32 %v5083, %v5020
      %v5085 = vadd.f32 %v5084, %v5021
      %v5086 = vadd.f32 %v5085, %v5022
      %v5087 = vadd.f32 %v5086, %v5023
      %v5088 = vadd.f32 %v5087, %v5024
      %v5089 = vadd.f32 %v5088, %v5025
      %v5090 = vadd.f32 %v5089, %v5026
      %v5091 = vadd.f32 %v5090, %v5027
      %v5092 = vadd.f32 %v5091, %v5028
      %v5093 = vadd.f32 %v5092, %v5029
      %v5094 = vadd.f32 %v5093, %v5030
      %v5095 = vadd.f32 %v5094, %v5031
      %v5096 = vadd.f32 %v5095, %v5032
      %v5097 = vadd.f32 %v5096, %v5033
      %v5098 = vadd.f32 %v5097, %v5034
      %v5099 = vadd.f32 %v5098, %v5035
      %v5100 = vadd.f32 %v5099, %v5036
      %v5101 = vadd.f32 %v5100, %v5037
      %v5102 = vadd.f32 %v5101, %v5038
      %v5103 = vadd.f32 %v5102, %v5039
      %v5104 = vadd.f32 %v5103, %v5040
      %v5105 = vadd.f32 %v5104, %v5041
      %v5106 = vadd.f32 %v5105, %v5042
      %v5107 = vadd.f32 %v5106, %v5043
      %v5108 = vadd.f32 %v5107, %v5044
      %v5109 = vadd.f32 %v5108, %v5045
      %v5110 = vrot.slane %v5109, 4
      %v5111 = vadd.f32 %v5109, %v5110
      %v5112 = vrot.slane %v5111, 2
      %v5113 = vadd.f32 %v5111, %v5112
      %v5114 = vrot.slane %v5113, 1
      %v5115 = vadd.f32 %v5113, %v5114
      %v5116 = vadd.f32 %v5078, %v5115
      %5117 = vst [vmem:[%s3] sm:$0x1] %v5116
      %v5118 = vld [vmem:[%s4] sm:$0x1]
      %v5119 = vmul.f32 %v5014, %v5014
      %v5120 = vmul.f32 %v5015, %v5015
      %v5121 = vmul.f32 %v5016, %v5016
      %v5122 = vmul.f32 %v5017, %v5017
      %v5123 = vmul.f32 %v5018, %v5018
      %v5124 = vmul.f32 %v5019, %v5019
      %v5125 = vmul.f32 %v5020, %v5020
      %v5126 = vmul.f32 %v5021, %v5021
      %v5127 = vmul.f32 %v5022, %v5022
      %v5128 = vmul.f32 %v5023, %v5023
      %v5129 = vmul.f32 %v5024, %v5024
      %v5130 = vmul.f32 %v5025, %v5025
      %v5131 = vmul.f32 %v5026, %v5026
      %v5132 = vmul.f32 %v5027, %v5027
      %v5133 = vmul.f32 %v5028, %v5028
      %v5134 = vmul.f32 %v5029, %v5029
      %v5135 = vmul.f32 %v5030, %v5030
      %v5136 = vmul.f32 %v5031, %v5031
      %v5137 = vmul.f32 %v5032, %v5032
      %v5138 = vmul.f32 %v5033, %v5033
      %v5139 = vmul.f32 %v5034, %v5034
      %v5140 = vmul.f32 %v5035, %v5035
      %v5141 = vmul.f32 %v5036, %v5036
      %v5142 = vmul.f32 %v5037, %v5037
      %v5143 = vmul.f32 %v5038, %v5038
      %v5144 = vmul.f32 %v5039, %v5039
      %v5145 = vmul.f32 %v5040, %v5040
      %v5146 = vmul.f32 %v5041, %v5041
      %v5147 = vmul.f32 %v5042, %v5042
      %v5148 = vmul.f32 %v5043, %v5043
      %v5149 = vmul.f32 %v5044, %v5044
      %v5150 = vmul.f32 %v5045, %v5045
      %v5151 = vadd.f32 %v5119, %v5120
      %v5152 = vadd.f32 %v5151, %v5121
      %v5153 = vadd.f32 %v5152, %v5122
      %v5154 = vadd.f32 %v5153, %v5123
      %v5155 = vadd.f32 %v5154, %v5124
      %v5156 = vadd.f32 %v5155, %v5125
      %v5157 = vadd.f32 %v5156, %v5126
      %v5158 = vadd.f32 %v5157, %v5127
      %v5159 = vadd.f32 %v5158, %v5128
      %v5160 = vadd.f32 %v5159, %v5129
      %v5161 = vadd.f32 %v5160, %v5130
      %v5162 = vadd.f32 %v5161, %v5131
      %v5163 = vadd.f32 %v5162, %v5132
      %v5164 = vadd.f32 %v5163, %v5133
      %v5165 = vadd.f32 %v5164, %v5134
      %v5166 = vadd.f32 %v5165, %v5135
      %v5167 = vadd.f32 %v5166, %v5136
      %v5168 = vadd.f32 %v5167, %v5137
      %v5169 = vadd.f32 %v5168, %v5138
      %v5170 = vadd.f32 %v5169, %v5139
      %v5171 = vadd.f32 %v5170, %v5140
      %v5172 = vadd.f32 %v5171, %v5141
      %v5173 = vadd.f32 %v5172, %v5142
      %v5174 = vadd.f32 %v5173, %v5143
      %v5175 = vadd.f32 %v5174, %v5144
      %v5176 = vadd.f32 %v5175, %v5145
      %v5177 = vadd.f32 %v5176, %v5146
      %v5178 = vadd.f32 %v5177, %v5147
      %v5179 = vadd.f32 %v5178, %v5148
      %v5180 = vadd.f32 %v5179, %v5149
      %v5181 = vadd.f32 %v5180, %v5150
      %v5182 = vrot.slane %v5181, 4
      %v5183 = vadd.f32 %v5181, %v5182
      %v5184 = vrot.slane %v5183, 2
      %v5185 = vadd.f32 %v5183, %v5184
      %v5186 = vrot.slane %v5185, 1
      %v5187 = vadd.f32 %v5185, %v5186
      %v5188 = vadd.f32 %v5118, %v5187
      %5189 = vst [vmem:[%s4] sm:$0x1] %v5188
      %s5190 = smul.u32 16, %s21
      %p5191 = scmp.lt.s32.totalorder %s20, 1
      %s5192 = scalar_select %p5191, %s20, 1
      %p5193 = scmp.lt.s32.totalorder %s5190, 15
      %s5194 = scalar_select %p5193, %s5190, 15
      %s5195 = smul.addr %s5194, 2
      %s5196 = smul.addr %s5192, 32
      %s5197 = sadd.s32 %s5195, %s5196
      %s5198 = smul.addr %s5197, 8
      %s5199 = scalar_lea.vmem %s2, %s5198
      // Predicated region
      $region33: #{fuse_forward.4} parent=27 // pred_check
        %p5200 = pneg %p95
      $region34: #{fuse_forward.4} parent=27 // pred_check_branch
        %5202 = sbr.rel (%p5200) target = $region36
      $region35: #{fuse_forward.4} parent=27 // pred_region
        %s5203 = smul.u32 16, %s21
      $region36: #{fuse_forward.4} parent=27 // pred_fallthru
        _
      // Predicated region
      $region37: #{fuse_forward.4} parent=27 // pred_check
        %p5204 = pneg %p116
      $region38: #{fuse_forward.4} parent=27 // pred_check_branch
        %5206 = sbr.rel (%p5204) target = $region40
      $region39: #{fuse_forward.4} parent=27 // pred_region
        _
      $region40: #{fuse_forward.4} parent=27 // pred_fallthru
        _
      // Predicated region
      $region41: #{fuse_forward.4} parent=27 // pred_check
        %p5207 = pneg %p137
      $region42: #{fuse_forward.4} parent=27 // pred_check_branch
        %5209 = sbr.rel (%p5207) target = $region44
      $region43: #{fuse_forward.4} parent=27 // pred_region
        _
      $region44: #{fuse_forward.4} parent=27 // pred_fallthru
        _
      // Predicated region
      $region45: #{fuse_forward.4} parent=27 // pred_check
        %p5210 = pneg %p116
      $region46: #{fuse_forward.4} parent=27 // pred_check_branch
        %5212 = sbr.rel (%p5210) target = $region48
      $region47: #{fuse_forward.4} parent=27 // pred_region
        _
      $region48: #{fuse_forward.4} parent=27 // pred_fallthru
        _
      // Predicated region
      $region49: #{fuse_forward.4} parent=27 // pred_check
        %p5213 = pneg %p137
      $region50: #{fuse_forward.4} parent=27 // pred_check_branch
        %5215 = sbr.rel (%p5213) target = $region52
      $region51: #{fuse_forward.4} parent=27 // pred_region
        _
      $region52: #{fuse_forward.4} parent=27 // pred_fallthru
        _
    $region28: #{fuse_forward.4} parent=5 // pred_fallthru
      _
    %p5216 = scmp.le.s32.totalorder 2, %s11
    // Predicated region
    $region53: #{fuse_forward.4} parent=5 // pred_check
      %p5217 = pneg %p5216
    $region54: #{fuse_forward.4} parent=5 // pred_check_branch
      %5219 = sbr.rel (%p5217) target = $region56
    $region55: #{fuse_forward.4} parent=5 // pred_region
      %s5220 = ssub.s32 %s11, 2
      // Predicated region
      $region57: #{fuse_forward.4} parent=55 // pred_check
        %p5221 = pneg %p101
      $region58: #{fuse_forward.4} parent=55 // pred_check_branch
        %5223 = sbr.rel (%p5221) target = $region60
      $region59: #{fuse_forward.4} parent=55 // pred_region
        %s5224 = smul.u32 16, %s23
        %p5225 = scmp.lt.s32.totalorder %s22, 1
        %s5226 = scalar_select %p5225, %s22, 1
        %p5227 = scmp.lt.s32.totalorder %s5224, 15
        %s5228 = scalar_select %p5227, %s5224, 15
        %s5229 = smul.addr %s5228, 2
        %s5230 = smul.addr %s5226, 32
        %s5231 = sadd.s32 %s5229, %s5230
        %s5232 = smul.addr %s5231, 8
        %s5233 = scalar_lea.vmem %s2, %s5232
      $region60: #{fuse_forward.4} parent=55 // pred_fallthru
        _
    $region56: #{fuse_forward.4} parent=5 // pred_fallthru
      _
  $region6: #{fuse_forward.4} parent=0 // loop_footer
    %s15 = sadd.s32 1, %s11
  $region7: #{fuse_forward.4} parent=0 // loop_footer_branch
    %10 = sbr.rel target = $region3
  $region8: #{fuse_forward.4} parent=0 // loop_exit
    _

</llo_original>
